<compile_context>
chip_gen: v5e
topology: v5e:2x2
jax: 0.10.0
libtpu: 0.0.40
codegen_flags: <defaults>
</compile_context>

<pallas_src>
import math

import jax
import jax.numpy as jnp
from jax.experimental import pallas as pl
from jax.experimental.pallas import tpu as pltpu

# ----------------------- module-consistent (small) config -----------------------
B = 2
HORIZON = 8                  # T (action horizon)
N_OBS_STEPS = 2
INPUT_DIM = 4                # observation.tcppose dim
OUTPUT_DIM = 4               # action_tcp dim
COND_DIM = 8                 # global_cond_dim
COND_PER_STEP = COND_DIM // N_OBS_STEPS
N_LAYER = 2
N_HEAD = 4
N_EMB = 32
HEAD_DIM = N_EMB // N_HEAD
T_COND = 1 + N_OBS_STEPS     # time token + obs tokens
CAUSAL_ATTN = True           # time_as_cond=True, obs_as_cond=True, n_cond_layers=0
OUT_PAD = 128                # lane-dense padded head output width
NEG = -1e9                   # finite "masked" value (robust vs -inf)
LN_EPS = 1e-5


# --------------------------- packed-slab static layouts ---------------------------
def _entries_vec():
    """f32 (rows, 128) slab: biases, LN params, pos embeddings, additive masks."""
    ent = [
        ("tpos", B * HORIZON, N_EMB),
        ("cpos_t", 1, N_EMB),
        ("cpos_o", B * N_OBS_STEPS, N_EMB),
        ("smask", B * HORIZON, B * HORIZON),
        ("mmask", B * HORIZON, B * T_COND),
        ("b_in", 1, N_EMB),
        ("b_obs", 1, N_EMB),
        ("enc1_b", 1, 4 * N_EMB),
        ("enc2_b", 1, N_EMB),
        ("lnf_w", 1, N_EMB),
        ("lnf_b", 1, N_EMB),
        ("head_b", 1, OUT_PAD),
    ]
    for l in range(N_LAYER):
        ent += [
            (f"n1_w_{l}", 1, N_EMB), (f"n1_b_{l}", 1, N_EMB),
            (f"n2_w_{l}", 1, N_EMB), (f"n2_b_{l}", 1, N_EMB),
            (f"n3_w_{l}", 1, N_EMB), (f"n3_b_{l}", 1, N_EMB),
            (f"sa_bqkv_{l}", 1, 3 * N_EMB),
            (f"sa_bo_{l}", 1, N_EMB),
            (f"ca_bq_{l}", 1, N_EMB),
            (f"ca_bkv_{l}", 1, 2 * N_EMB),
            (f"ca_bo_{l}", 1, N_EMB),
            (f"ff1_b_{l}", 1, 4 * N_EMB),
            (f"ff2_b_{l}", 1, N_EMB),
        ]
    return ent


def _entries_wmx():
    """bf16 (rows, 128) slab: every matmul weight (already transposed / fused / scaled)."""
    ent = [
        ("w_in", INPUT_DIM, N_EMB),
        ("w_obs", COND_PER_STEP, N_EMB),
        ("enc1_w", N_EMB, 4 * N_EMB),
        ("enc2_w", 4 * N_EMB, N_EMB),
        ("head_w", N_EMB, OUT_PAD),
    ]
    for l in range(N_LAYER):
        ent += [
            (f"sa_wqkv_{l}", N_EMB, 3 * N_EMB),   # [Wq*scale | Wk | Wv]
            (f"sa_wo_{l}", N_EMB, N_EMB),
            (f"ca_wq_{l}", N_EMB, N_EMB),         # Wq*scale
            (f"ca_wkv_{l}", N_EMB, 2 * N_EMB),    # [Wk | Wv]
            (f"ca_wo_{l}", N_EMB, N_EMB),
            (f"ff1_w_{l}", N_EMB, 4 * N_EMB),
            (f"ff2_w_{l}", 4 * N_EMB, N_EMB),
        ]
    return ent


def _build_layout(entries, row_align):
    layout, off = {}, 0
    for name, rows, cols in entries:
        layout[name] = (off, rows, cols)
        off += ((rows + row_align - 1) // row_align) * row_align
    return layout, off


VEC_LAYOUT, VEC_ROWS = _build_layout(_entries_vec(), 8)     # f32 tile height
WMX_LAYOUT, WMX_ROWS = _build_layout(_entries_wmx(), 16)    # bf16 tile height


# ------------------------------ in-kernel helpers --------------------------------
def _layer_norm(x, w, b):
    mean = jnp.mean(x, axis=-1, keepdims=True)
    xc = x - mean
    var = jnp.mean(xc * xc, axis=-1, keepdims=True)
    return xc * jax.lax.rsqrt(var + LN_EPS) * w + b


# ------------------------------- fused forward kernel ----------------------------
def _forward_kernel(sample_ref, temb_ref, cond_ref, vec_ref, wmx_ref, out_ref, mem_ref):
    f32, bf16 = jnp.float32, jnp.bfloat16

    def vec(name):
        off, rows, cols = VEC_LAYOUT[name]
        return vec_ref[off:off + rows, 0:cols]

    def wmx(name):
        off, rows, cols = WMX_LAYOUT[name]
        return wmx_ref[off:off + rows, 0:cols]

    def mm(a, w_name, b_name=None):
        """bf16 MXU matmul with f32 accumulation (+ optional f32 bias row)."""
        out = jnp.dot(a.astype(bf16), wmx(w_name), preferred_element_type=f32)
        if b_name is not None:
            out = out + vec(b_name)
        return out

    # ---- conditioning branch: [time token, obs tokens] assembled in a VMEM scratch ----
    mem_ref[0:B, :] = temb_ref[...] + vec("cpos_t")                               # (B, E)
    mem_ref[B:B + B * N_OBS_STEPS, :] = (
        mm(cond_ref[...], "w_obs", "b_obs") + vec("cpos_o"))                      # (B*n_obs, E)
    mem_in = mem_ref[...]                                                         # (M, E)

    # cond encoder: Linear(E,4E) -> Mish -> Linear(4E,E)
    h = mm(mem_in, "enc1_w", "enc1_b")
    h = h * jnp.tanh(jax.nn.softplus(h))                                          # Mish
    memory = mm(h, "enc2_w", "enc2_b")                                            # (M, E)

    # ---- decoder input embedding + positional embedding ----
    x = mm(sample_ref[...], "w_in", "b_in") + vec("tpos")                         # (B*T, E)

    smask = vec("smask")                                                          # (R, R)
    mmask = vec("mmask")                                                          # (R, M)

    def attn_core(q_all, k_all, v_all, mask, wo_name, bo_name):
        """q/k/v already projected (scale folded into q). Per-head lane slices, fused out-proj."""
        qb, kb, vb = q_all.astype(bf16), k_all.astype(bf16), v_all.astype(bf16)
        ctx = []
        for hd in range(N_HEAD):                  # static unroll; tiny lane slices
            sl = slice(hd * HEAD_DIM, (hd + 1) * HEAD_DIM)
            s = jax.lax.dot_general(qb[:, sl], kb[:, sl], (((1,), (1,)), ((), ())),
                                    preferred_element_type=f32) + mask
            s = s - jnp.max(s, axis=-1, keepdims=True)
            p = jnp.exp(s)
            p = p * pl.reciprocal(jnp.sum(p, axis=-1, keepdims=True), approx=True)
            ctx.append(jnp.dot(p.astype(bf16), vb[:, sl], preferred_element_type=f32))
        ctx = jnp.concatenate(ctx, axis=-1)                                       # (Rq, E)
        return mm(ctx, wo_name, bo_name)

    # ---- pre-norm TransformerDecoder layers (static unroll; weights stay in VMEM) ----
    for l in range(N_LAYER):
        # self-attention: single fused QKV projection
        xn = _layer_norm(x, vec(f"n1_w_{l}"), vec(f"n1_b_{l}"))
        qkv = mm(xn, f"sa_wqkv_{l}", f"sa_bqkv_{l}")                              # (R, 3E)
        x = x + attn_core(qkv[:, 0:N_EMB], qkv[:, N_EMB:2 * N_EMB],
                          qkv[:, 2 * N_EMB:3 * N_EMB],
                          smask, f"sa_wo_{l}", f"sa_bo_{l}")

        # cross-attention: q from target, fused KV from memory
        xn = _layer_norm(x, vec(f"n2_w_{l}"), vec(f"n2_b_{l}"))
        q_all = mm(xn, f"ca_wq_{l}", f"ca_bq_{l}")                                # (R, E)
        kv = mm(memory, f"ca_wkv_{l}", f"ca_bkv_{l}")                             # (M, 2E)
        x = x + attn_core(q_all, kv[:, 0:N_EMB], kv[:, N_EMB:2 * N_EMB],
                          mmask, f"ca_wo_{l}", f"ca_bo_{l}")

        # feed-forward
        xn = _layer_norm(x, vec(f"n3_w_{l}"), vec(f"n3_b_{l}"))
        ffh = mm(xn, f"ff1_w_{l}", f"ff1_b_{l}")
        ffh = jax.nn.gelu(ffh, approximate=True)      # tanh GELU (EUP); ~erf to <4e-3 abs
        x = x + mm(ffh, f"ff2_w_{l}", f"ff2_b_{l}")

    # ---- final norm + (lane-dense zero-padded) head ----
    xn = _layer_norm(x, vec("lnf_w"), vec("lnf_b"))
    out_ref[...] = mm(xn, "head_w", "head_b")


# ------------------------------- parameter handling ------------------------------
def init_raw_params(key):
    """Parameters in PyTorch nn.Linear layout (out_features, in_features)."""
    keys = iter(jax.random.split(key, 32))

    def nrm(shape):
        return (0.02 * jax.random.normal(next(keys), shape)).astype(jnp.float32)

    E = N_EMB
    p = {
        "input_emb_w": nrm((E, INPUT_DIM)), "input_emb_b": jnp.zeros((E,), jnp.float32),
        "pos_emb": nrm((1, HORIZON, E)),
        "cond_obs_w": nrm((E, COND_PER_STEP)), "cond_obs_b": jnp.zeros((E,), jnp.float32),
        "cond_pos_emb": nrm((1, T_COND, E)),
        # encoder = Linear(E,4E) -> Mish -> Linear(4E,E)  (n_cond_layers == 0 path)
        "enc_l1_w": nrm((4 * E, E)), "enc_l1_b": jnp.zeros((4 * E,), jnp.float32),
        "enc_l2_w": nrm((E, 4 * E)), "enc_l2_b": jnp.zeros((E,), jnp.float32),
        "ln_f_w": jnp.ones((E,), jnp.float32), "ln_f_b": jnp.zeros((E,), jnp.float32),
        "head_w": nrm((OUTPUT_DIM, E)), "head_b": jnp.zeros((OUTPUT_DIM,), jnp.float32),
        "layers": [],
    }
    for _ in range(N_LAYER):
        p["layers"].append({
            "sa_in_w": nrm((3 * E, E)), "sa_in_b": jnp.zeros((3 * E,), jnp.float32),
            "sa_out_w": nrm((E, E)), "sa_out_b": jnp.zeros((E,), jnp.float32),
            "ca_in_w": nrm((3 * E, E)), "ca_in_b": jnp.zeros((3 * E,), jnp.float32),
            "ca_out_w": nrm((E, E)), "ca_out_b": jnp.zeros((E,), jnp.float32),
            "ff1_w": nrm((4 * E, E)), "ff1_b": jnp.zeros((4 * E,), jnp.float32),
            "ff2_w": nrm((E, 4 * E)), "ff2_b": jnp.zeros((E,), jnp.float32),
            "n1_w": jnp.ones((E,), jnp.float32), "n1_b": jnp.zeros((E,), jnp.float32),
            "n2_w": jnp.ones((E,), jnp.float32), "n2_b": jnp.zeros((E,), jnp.float32),
            "n3_w": jnp.ones((E,), jnp.float32), "n3_b": jnp.zeros((E,), jnp.float32),
        })
    return p


def pack_params(p, batch_size):
    """One-time transform of PyTorch-layout params into two kernel-ready slabs."""
    E = N_EMB
    Bv, T, n_obs = batch_size, HORIZON, N_OBS_STEPS
    scale = 1.0 / math.sqrt(HEAD_DIM)

    vec = jnp.zeros((VEC_ROWS, 128), jnp.float32)
    wmx = jnp.zeros((WMX_ROWS, 128), jnp.float32)     # built f32, cast to bf16 at the end

    def vput(slab, name, arr):
        off, rows, cols = VEC_LAYOUT[name]
        a = jnp.asarray(arr, jnp.float32).reshape(rows, cols)
        return slab.at[off:off + rows, :cols].set(a)

    def wput(slab, name, arr):
        off, rows, cols = WMX_LAYOUT[name]
        a = jnp.asarray(arr, jnp.float32).reshape(rows, cols)
        return slab.at[off:off + rows, :cols].set(a)

    def lin_t(w):                 # (out, in) -> (in, out)
        return jnp.transpose(w)

    # ---- global weights ----
    wmx = wput(wmx, "w_in", lin_t(p["input_emb_w"]))
    wmx = wput(wmx, "w_obs", lin_t(p["cond_obs_w"]))
    wmx = wput(wmx, "enc1_w", lin_t(p["enc_l1_w"]))
    wmx = wput(wmx, "enc2_w", lin_t(p["enc_l2_w"]))
    head_w = jnp.zeros((E, OUT_PAD), jnp.float32).at[:, :OUTPUT_DIM].set(lin_t(p["head_w"]))
    wmx = wput(wmx, "head_w", head_w)                     # zero-padded -> lane-dense output

    vec = vput(vec, "b_in", p["input_emb_b"])
    vec = vput(vec, "b_obs", p["cond_obs_b"])
    vec = vput(vec, "enc1_b", p["enc_l1_b"])
    vec = vput(vec, "enc2_b", p["enc_l2_b"])
    vec = vput(vec, "lnf_w", p["ln_f_w"])
    vec = vput(vec, "lnf_b", p["ln_f_b"])
    head_b = jnp.zeros((OUT_PAD,), jnp.float32).at[:OUTPUT_DIM].set(p["head_b"])
    vec = vput(vec, "head_b", head_b)

    # ---- positional slabs (flattened batch-major row layout) ----
    vec = vput(vec, "tpos", jnp.tile(p["pos_emb"][0, :T, :], (Bv, 1)))
    vec = vput(vec, "cpos_t", p["cond_pos_emb"][0, 0:1, :])
    vec = vput(vec, "cpos_o", jnp.tile(p["cond_pos_emb"][0, 1:1 + n_obs, :], (Bv, 1)))

    # ---- additive attention masks over flattened rows (block-diagonal across batch) ----
    R = Bv * T
    r = jnp.arange(R)
    b_r, t_r = r // T, r % T
    if CAUSAL_ATTN:
        allowed_s = (b_r[:, None] == b_r[None, :]) & (t_r[None, :] <= t_r[:, None])
    else:
        allowed_s = b_r[:, None] == b_r[None, :]
    vec = vput(vec, "smask", jnp.where(allowed_s, 0.0, NEG))

    M = Bv * T_COND       # memory rows: [time(b=0..B-1), obs(b,k) b-major]
    m = jnp.arange(M)
    is_time = m < Bv
    b_m = jnp.where(is_time, m, (m - Bv) // n_obs)
    s_m = jnp.where(is_time, 0, 1 + (m - Bv) % n_obs)
    if CAUSAL_ATTN:
        # same rule as the PyTorch module's memory_mask: allowed where t >= s - 1
        allowed_m = (b_r[:, None] == b_m[None, :]) & (t_r[:, None] >= s_m[None, :] - 1)
    else:
        allowed_m = b_r[:, None] == b_m[None, :]
    vec = vput(vec, "mmask", jnp.where(allowed_m, 0.0, NEG))

    # ---- per-layer weights: fused QKV / fused KV, 1/sqrt(D) folded into Wq & bq ----
    for l, L in enumerate(p["layers"]):
        wq, wk, wv = jnp.split(L["sa_in_w"], 3, axis=0)
        bq, bk, bv = jnp.split(L["sa_in_b"], 3, axis=0)
        wmx = wput(wmx, f"sa_wqkv_{l}",
                   jnp.concatenate([lin_t(wq) * scale, lin_t(wk), lin_t(wv)], axis=1))
        vec = vput(vec, f"sa_bqkv_{l}", jnp.concatenate([bq * scale, bk, bv]))
        wmx = wput(wmx, f"sa_wo_{l}", lin_t(L["sa_out_w"]))
        vec = vput(vec, f"sa_bo_{l}", L["sa_out_b"])

        wq, wk, wv = jnp.split(L["ca_in_w"], 3, axis=0)
        bq, bk, bv = jnp.split(L["ca_in_b"], 3, axis=0)
        wmx = wput(wmx, f"ca_wq_{l}", lin_t(wq) * scale)
        vec = vput(vec, f"ca_bq_{l}", bq * scale)
        wmx = wput(wmx, f"ca_wkv_{l}", jnp.concatenate([lin_t(wk), lin_t(wv)], axis=1))
        vec = vput(vec, f"ca_bkv_{l}", jnp.concatenate([bk, bv]))
        wmx = wput(wmx, f"ca_wo_{l}", lin_t(L["ca_out_w"]))
        vec = vput(vec, f"ca_bo_{l}", L["ca_out_b"])

        wmx = wput(wmx, f"ff1_w_{l}", lin_t(L["ff1_w"]))
        vec = vput(vec, f"ff1_b_{l}", L["ff1_b"])
        wmx = wput(wmx, f"ff2_w_{l}", lin_t(L["ff2_w"]))
        vec = vput(vec, f"ff2_b_{l}", L["ff2_b"])

        for n in ("n1", "n2", "n3"):
            vec = vput(vec, f"{n}_w_{l}", L[f"{n}_w"])
            vec = vput(vec, f"{n}_b_{l}", L[f"{n}_b"])

    return {"vec": vec, "wmx": wmx.astype(jnp.bfloat16)}


# ------------------------------------ forward -------------------------------------
def forward(packed, sample, timesteps, global_cond):
    """sample: (B, T, input_dim); timesteps: (B,) int; global_cond: (B, cond_dim)."""
    E = N_EMB
    Bv, T, _ = sample.shape
    R = Bv * T

    # Sinusoidal diffusion-step embedding: kept in the wrapper (B*E = 64 floats, one tiny
    # fused XLA op) — avoids relying on in-kernel sin lowering; everything else is fused.
    half = E // 2
    freqs = jnp.exp(jnp.arange(half, dtype=jnp.float32) * (-math.log(10000.0) / (half - 1)))
    ang = timesteps.astype(jnp.float32)[:, None] * freqs[None, :]
    temb = jnp.concatenate([jnp.sin(ang), jnp.cos(ang)], axis=-1)                 # (B, E)

    sample_flat = sample.reshape(R, INPUT_DIM)
    cond_flat = global_cond.reshape(Bv * N_OBS_STEPS, COND_PER_STEP)

    out_pad = pl.pallas_call(
        _forward_kernel,
        out_shape=jax.ShapeDtypeStruct((R, OUT_PAD), jnp.float32),
        in_specs=[pl.BlockSpec(memory_space=pltpu.MemorySpace.VMEM)] * 5,
        out_specs=pl.BlockSpec(memory_space=pltpu.MemorySpace.VMEM),
        scratch_shapes=[pltpu.VMEM((Bv * T_COND, N_EMB), jnp.float32)],
        compiler_params=pltpu.CompilerParams(vmem_limit_bytes=32 * 1024 * 1024),
    )(sample_flat, temb, cond_flat, packed["vec"], packed["wmx"])

    return out_pad[:, :OUTPUT_DIM].reshape(Bv, T, OUTPUT_DIM)


# ------------------------------------- main ----------------------------------------
if __name__ == "__main__":
    key = jax.random.PRNGKey(0)
    kp, kx, kc = jax.random.split(key, 3)

    raw = init_raw_params(kp)
    packed = pack_params(raw, batch_size=B)      # one-time packing into 2 slabs (f32 + bf16)

    x = jax.random.normal(kx, (B, HORIZON, INPUT_DIM), dtype=jnp.float32)
    timesteps = jnp.array([3, 7], dtype=jnp.int32)
    global_cond = jax.random.normal(kc, (B, COND_DIM), dtype=jnp.float32)

    out = jax.jit(forward)(packed, x, timesteps, global_cond)
    out = jax.block_until_ready(out)
    assert out.shape == (B, HORIZON, OUTPUT_DIM)
    assert bool(jnp.all(jnp.isfinite(out)))
    print("KERNEL_OK")
</pallas_src>

<mosaic_0001>
module attributes {stable_mosaic.version = 11 : i64} {
  func.func @_forward_kernel(%arg0: memref<16x4xf32, #tpu.memory_space<vmem>>, %arg1: memref<2x32xf32, #tpu.memory_space<vmem>>, %arg2: memref<4x4xf32, #tpu.memory_space<vmem>>, %arg3: memref<328x128xf32, #tpu.memory_space<vmem>>, %arg4: memref<864x128xbf16, #tpu.memory_space<vmem>>, %arg5: memref<16x128xf32, #tpu.memory_space<vmem>>, %arg6: memref<6x32xf32, #tpu.memory_space<vmem>>) attributes {dimension_semantics = [], scalar_prefetch = 0 : i64, scratch_operands = 1 : i64, tpu.core_type = #tpu.core_type<tc>} {
    %c0 = arith.constant 0 : index
    %c0_0 = arith.constant 0 : index
    %0 = vector.load %arg1[%c0, %c0_0] : memref<2x32xf32, #tpu.memory_space<vmem>>, vector<2x32xf32>
    %c16 = arith.constant 16 : index
    %c0_1 = arith.constant 0 : index
    %1 = vector.load %arg3[%c16, %c0_1] : memref<328x128xf32, #tpu.memory_space<vmem>>, vector<1x32xf32>
    %2 = vector.broadcast %1 : vector<1x32xf32> to vector<2x32xf32>
    %3 = arith.addf %0, %2 : vector<2x32xf32>
    %c0_2 = arith.constant 0 : index
    %c0_3 = arith.constant 0 : index
    %4 = vector.load %arg6[%c0_2, %c0_3] : memref<6x32xf32, #tpu.memory_space<vmem>>, vector<2x32xf32>
    tpu.vector_store %arg6[%c0_2, %c0_3], %3 {strides = array<i32>} : memref<6x32xf32, #tpu.memory_space<vmem>>, vector<2x32xf32>,
    %c0_4 = arith.constant 0 : index
    %c0_5 = arith.constant 0 : index
    %5 = vector.load %arg2[%c0_4, %c0_5] : memref<4x4xf32, #tpu.memory_space<vmem>>, vector<4x4xf32>
    %6 = arith.truncf %5 : vector<4x4xf32> to vector<4x4xbf16>
    %c16_6 = arith.constant 16 : index
    %c0_7 = arith.constant 0 : index
    %7 = vector.load %arg4[%c16_6, %c0_7] : memref<864x128xbf16, #tpu.memory_space<vmem>>, vector<4x32xbf16>
    %cst = arith.constant dense<0.000000e+00> : vector<4x32xf32>
    %8 = tpu.matmul %6, %7, %cst {dimension_numbers = #tpu.dot_dimension_numbers<[1], [0], [0], [1], [0, 0, 1, 1], [], []>} : vector<4x4xbf16>, vector<4x32xbf16>, vector<4x32xf32> -> vector<4x32xf32>
    %c72 = arith.constant 72 : index
    %c0_8 = arith.constant 0 : index
    %9 = vector.load %arg3[%c72, %c0_8] : memref<328x128xf32, #tpu.memory_space<vmem>>, vector<1x32xf32>
    %10 = vector.broadcast %9 : vector<1x32xf32> to vector<4x32xf32>
    %11 = arith.addf %8, %10 : vector<4x32xf32>
    %c24 = arith.constant 24 : index
    %c0_9 = arith.constant 0 : index
    %12 = vector.load %arg3[%c24, %c0_9] : memref<328x128xf32, #tpu.memory_space<vmem>>, vector<4x32xf32>
    %13 = arith.addf %11, %12 : vector<4x32xf32>
    %c2 = arith.constant 2 : index
    %c0_10 = arith.constant 0 : index
    %14 = vector.load %arg6[%c2, %c0_10] : memref<6x32xf32, #tpu.memory_space<vmem>>, vector<4x32xf32>
    tpu.vector_store %arg6[%c2, %c0_10], %13 {strides = array<i32>} : memref<6x32xf32, #tpu.memory_space<vmem>>, vector<4x32xf32>,
    %c0_11 = arith.constant 0 : index
    %c0_12 = arith.constant 0 : index
    %15 = vector.load %arg6[%c0_11, %c0_12] : memref<6x32xf32, #tpu.memory_space<vmem>>, vector<6x32xf32>
    %16 = arith.truncf %15 : vector<6x32xf32> to vector<6x32xbf16>
    %c32 = arith.constant 32 : index
    %c0_13 = arith.constant 0 : index
    %17 = vector.load %arg4[%c32, %c0_13] : memref<864x128xbf16, #tpu.memory_space<vmem>>, vector<32x128xbf16>
    %cst_14 = arith.constant dense<0.000000e+00> : vector<6x128xf32>
    %18 = tpu.matmul %16, %17, %cst_14 {dimension_numbers = #tpu.dot_dimension_numbers<[1], [0], [0], [1], [0, 0, 1, 1], [], []>} : vector<6x32xbf16>, vector<32x128xbf16>, vector<6x128xf32> -> vector<6x128xf32>
    %c80 = arith.constant 80 : index
    %c0_15 = arith.constant 0 : index
    %19 = vector.load %arg3[%c80, %c0_15] : memref<328x128xf32, #tpu.memory_space<vmem>>, vector<1x128xf32>
    %20 = vector.broadcast %19 : vector<1x128xf32> to vector<6x128xf32>
    %21 = arith.addf %18, %20 : vector<6x128xf32>
    %cst_16 = arith.constant 0.000000e+00 : f32
    %22 = vector.broadcast %cst_16 : f32 to vector<6x128xf32>
    %23 = arith.maximumf %21, %22 : vector<6x128xf32>
    %24 = vector.broadcast %cst_16 : f32 to vector<6x128xf32>
    %25 = arith.subf %21, %24 : vector<6x128xf32>
    %26 = arith.cmpf one, %25, %25 : vector<6x128xf32>
    %27 = vector.broadcast %cst_16 : f32 to vector<6x128xf32>
    %28 = arith.addf %21, %27 : vector<6x128xf32>
    %29 = math.absf %25 : vector<6x128xf32>
    %cst_17 = arith.constant 0.000000e+00 : f32
    %30 = vector.broadcast %cst_17 : f32 to vector<6x128xf32>
    %31 = arith.subf %30, %29 : vector<6x128xf32>
    %32 = math.exp %31 : vector<6x128xf32>
    %33 = math.log1p %32 : vector<6x128xf32>
    %34 = arith.addf %23, %33 : vector<6x128xf32>
    %35 = arith.select %26, %28, %34 : vector<6x128xi1>, vector<6x128xf32>
    %36 = math.tanh %35 : vector<6x128xf32>
    %37 = arith.mulf %21, %36 : vector<6x128xf32>
    %38 = arith.truncf %37 : vector<6x128xf32> to vector<6x128xbf16>
    %c64 = arith.constant 64 : index
    %c0_18 = arith.constant 0 : index
    %39 = vector.load %arg4[%c64, %c0_18] : memref<864x128xbf16, #tpu.memory_space<vmem>>, vector<128x32xbf16>
    %cst_19 = arith.constant dense<0.000000e+00> : vector<6x32xf32>
    %40 = tpu.matmul %38, %39, %cst_19 {dimension_numbers = #tpu.dot_dimension_numbers<[1], [0], [0], [1], [0, 0, 1, 1], [], []>} : vector<6x128xbf16>, vector<128x32xbf16>, vector<6x32xf32> -> vector<6x32xf32>
    %c88 = arith.constant 88 : index
    %c0_20 = arith.constant 0 : index
    %41 = vector.load %arg3[%c88, %c0_20] : memref<328x128xf32, #tpu.memory_space<vmem>>, vector<1x32xf32>
    %42 = vector.broadcast %41 : vector<1x32xf32> to vector<6x32xf32>
    %43 = arith.addf %40, %42 : vector<6x32xf32>
    %c0_21 = arith.constant 0 : index
    %c0_22 = arith.constant 0 : index
    %44 = vector.load %arg0[%c0_21, %c0_22] : memref<16x4xf32, #tpu.memory_space<vmem>>, vector<16x4xf32>
    %45 = arith.truncf %44 : vector<16x4xf32> to vector<16x4xbf16>
    %c0_23 = arith.constant 0 : index
    %c0_24 = arith.constant 0 : index
    %46 = vector.load %arg4[%c0_23, %c0_24] : memref<864x128xbf16, #tpu.memory_space<vmem>>, vector<4x32xbf16>
    %cst_25 = arith.constant dense<0.000000e+00> : vector<16x32xf32>
    %47 = tpu.matmul %45, %46, %cst_25 {dimension_numbers = #tpu.dot_dimension_numbers<[1], [0], [0], [1], [0, 0, 1, 1], [], []>} : vector<16x4xbf16>, vector<4x32xbf16>, vector<16x32xf32> -> vector<16x32xf32>
    %c64_26 = arith.constant 64 : index
    %c0_27 = arith.constant 0 : index
    %48 = vector.load %arg3[%c64_26, %c0_27] : memref<328x128xf32, #tpu.memory_space<vmem>>, vector<1x32xf32>
    %49 = vector.broadcast %48 : vector<1x32xf32> to vector<16x32xf32>
    %50 = arith.addf %47, %49 : vector<16x32xf32>
    %c0_28 = arith.constant 0 : index
    %c0_29 = arith.constant 0 : index
    %51 = vector.load %arg3[%c0_28, %c0_29] : memref<328x128xf32, #tpu.memory_space<vmem>>, vector<16x32xf32>
    %52 = arith.addf %50, %51 : vector<16x32xf32>
    %c32_30 = arith.constant 32 : index
    %c0_31 = arith.constant 0 : index
    %53 = vector.load %arg3[%c32_30, %c0_31] : memref<328x128xf32, #tpu.memory_space<vmem>>, vector<16x16xf32>
    %c48 = arith.constant 48 : index
    %c0_32 = arith.constant 0 : index
    %54 = vector.load %arg3[%c48, %c0_32] : memref<328x128xf32, #tpu.memory_space<vmem>>, vector<16x6xf32>
    %c120 = arith.constant 120 : index
    %c0_33 = arith.constant 0 : index
    %55 = vector.load %arg3[%c120, %c0_33] : memref<328x128xf32, #tpu.memory_space<vmem>>, vector<1x32xf32>
    %c128 = arith.constant 128 : index
    %c0_34 = arith.constant 0 : index
    %56 = vector.load %arg3[%c128, %c0_34] : memref<328x128xf32, #tpu.memory_space<vmem>>, vector<1x32xf32>
    %cst_35 = arith.constant dense<0.000000e+00> : vector<16xf32>
    %57 = vector.multi_reduction <add>, %52, %cst_35 [1] : vector<16x32xf32> to vector<16xf32>
    %58 = vector.shape_cast %57 : vector<16xf32> to vector<16x1xf32>
    %cst_36 = arith.constant 3.200000e+01 : f32
    %59 = vector.broadcast %cst_36 : f32 to vector<16x1xf32>
    %60 = arith.divf %58, %59 : vector<16x1xf32>
    %61 = vector.broadcast %60 : vector<16x1xf32> to vector<16x32xf32>
    %62 = arith.subf %52, %61 : vector<16x32xf32>
    %63 = arith.mulf %62, %62 : vector<16x32xf32>
    %cst_37 = arith.constant dense<0.000000e+00> : vector<16xf32>
    %64 = vector.multi_reduction <add>, %63, %cst_37 [1] : vector<16x32xf32> to vector<16xf32>
    %65 = vector.shape_cast %64 : vector<16xf32> to vector<16x1xf32>
    %cst_38 = arith.constant 3.200000e+01 : f32
    %66 = vector.broadcast %cst_38 : f32 to vector<16x1xf32>
    %67 = arith.divf %65, %66 : vector<16x1xf32>
    %cst_39 = arith.constant 9.99999974E-6 : f32
    %68 = vector.broadcast %cst_39 : f32 to vector<16x1xf32>
    %69 = arith.addf %67, %68 : vector<16x1xf32>
    %70 = math.rsqrt %69 : vector<16x1xf32>
    %71 = vector.broadcast %70 : vector<16x1xf32> to vector<16x32xf32>
    %72 = arith.mulf %62, %71 : vector<16x32xf32>
    %73 = vector.broadcast %55 : vector<1x32xf32> to vector<16x32xf32>
    %74 = arith.mulf %72, %73 : vector<16x32xf32>
    %75 = vector.broadcast %56 : vector<1x32xf32> to vector<16x32xf32>
    %76 = arith.addf %74, %75 : vector<16x32xf32>
    %77 = arith.truncf %76 : vector<16x32xf32> to vector<16x32xbf16>
    %c224 = arith.constant 224 : index
    %c0_40 = arith.constant 0 : index
    %78 = vector.load %arg4[%c224, %c0_40] : memref<864x128xbf16, #tpu.memory_space<vmem>>, vector<32x96xbf16>
    %cst_41 = arith.constant dense<0.000000e+00> : vector<16x96xf32>
    %79 = tpu.matmul %77, %78, %cst_41 {dimension_numbers = #tpu.dot_dimension_numbers<[1], [0], [0], [1], [0, 0, 1, 1], [], []>} : vector<16x32xbf16>, vector<32x96xbf16>, vector<16x96xf32> -> vector<16x96xf32>
    %c168 = arith.constant 168 : index
    %c0_42 = arith.constant 0 : index
    %80 = vector.load %arg3[%c168, %c0_42] : memref<328x128xf32, #tpu.memory_space<vmem>>, vector<1x96xf32>
    %81 = vector.broadcast %80 : vector<1x96xf32> to vector<16x96xf32>
    %82 = arith.addf %79, %81 : vector<16x96xf32>
    %83 = vector.extract_strided_slice %82 {offsets = [0, 0], sizes = [16, 32], strides = [1, 1]} : vector<16x96xf32> to vector<16x32xf32>
    %84 = vector.extract_strided_slice %82 {offsets = [0, 32], sizes = [16, 32], strides = [1, 1]} : vector<16x96xf32> to vector<16x32xf32>
    %85 = vector.extract_strided_slice %82 {offsets = [0, 64], sizes = [16, 32], strides = [1, 1]} : vector<16x96xf32> to vector<16x32xf32>
    %86 = arith.truncf %83 : vector<16x32xf32> to vector<16x32xbf16>
    %87 = arith.truncf %84 : vector<16x32xf32> to vector<16x32xbf16>
    %88 = arith.truncf %85 : vector<16x32xf32> to vector<16x32xbf16>
    %89 = vector.extract_strided_slice %86 {offsets = [0, 0], sizes = [16, 8], strides = [1, 1]} : vector<16x32xbf16> to vector<16x8xbf16>
    %90 = vector.extract_strided_slice %87 {offsets = [0, 0], sizes = [16, 8], strides = [1, 1]} : vector<16x32xbf16> to vector<16x8xbf16>
    %cst_43 = arith.constant dense<0.000000e+00> : vector<16x16xf32>
    %91 = tpu.matmul %89, %90, %cst_43 {dimension_numbers = #tpu.dot_dimension_numbers<[1], [1], [0], [0], [0, 0, 1, 0], [], []>} : vector<16x8xbf16>, vector<16x8xbf16>, vector<16x16xf32> -> vector<16x16xf32>
    %92 = arith.addf %91, %53 : vector<16x16xf32>
    %cst_44 = arith.constant dense<0xFF800000> : vector<16xf32>
    %93 = vector.multi_reduction <maximumf>, %92, %cst_44 [1] : vector<16x16xf32> to vector<16xf32>
    %94 = vector.shape_cast %93 : vector<16xf32> to vector<16x1xf32>
    %95 = vector.broadcast %94 : vector<16x1xf32> to vector<16x16xf32>
    %96 = arith.subf %92, %95 : vector<16x16xf32>
    %97 = math.exp %96 : vector<16x16xf32>
    %cst_45 = arith.constant dense<0.000000e+00> : vector<16xf32>
    %98 = vector.multi_reduction <add>, %97, %cst_45 [1] : vector<16x16xf32> to vector<16xf32>
    %99 = vector.shape_cast %98 : vector<16xf32> to vector<16x1xf32>
    %100 = tpu.reciprocal %99 {approx = true} : vector<16x1xf32> -> vector<16x1xf32>
    %101 = vector.broadcast %100 : vector<16x1xf32> to vector<16x16xf32>
    %102 = arith.mulf %97, %101 : vector<16x16xf32>
    %103 = arith.truncf %102 : vector<16x16xf32> to vector<16x16xbf16>
    %104 = vector.extract_strided_slice %88 {offsets = [0, 0], sizes = [16, 8], strides = [1, 1]} : vector<16x32xbf16> to vector<16x8xbf16>
    %cst_46 = arith.constant dense<0.000000e+00> : vector<16x8xf32>
    %105 = tpu.matmul %103, %104, %cst_46 {dimension_numbers = #tpu.dot_dimension_numbers<[1], [0], [0], [1], [0, 0, 1, 1], [], []>} : vector<16x16xbf16>, vector<16x8xbf16>, vector<16x8xf32> -> vector<16x8xf32>
    %106 = vector.extract_strided_slice %86 {offsets = [0, 8], sizes = [16, 8], strides = [1, 1]} : vector<16x32xbf16> to vector<16x8xbf16>
    %107 = vector.extract_strided_slice %87 {offsets = [0, 8], sizes = [16, 8], strides = [1, 1]} : vector<16x32xbf16> to vector<16x8xbf16>
    %cst_47 = arith.constant dense<0.000000e+00> : vector<16x16xf32>
    %108 = tpu.matmul %106, %107, %cst_47 {dimension_numbers = #tpu.dot_dimension_numbers<[1], [1], [0], [0], [0, 0, 1, 0], [], []>} : vector<16x8xbf16>, vector<16x8xbf16>, vector<16x16xf32> -> vector<16x16xf32>
    %109 = arith.addf %108, %53 : vector<16x16xf32>
    %cst_48 = arith.constant dense<0xFF800000> : vector<16xf32>
    %110 = vector.multi_reduction <maximumf>, %109, %cst_48 [1] : vector<16x16xf32> to vector<16xf32>
    %111 = vector.shape_cast %110 : vector<16xf32> to vector<16x1xf32>
    %112 = vector.broadcast %111 : vector<16x1xf32> to vector<16x16xf32>
    %113 = arith.subf %109, %112 : vector<16x16xf32>
    %114 = math.exp %113 : vector<16x16xf32>
    %cst_49 = arith.constant dense<0.000000e+00> : vector<16xf32>
    %115 = vector.multi_reduction <add>, %114, %cst_49 [1] : vector<16x16xf32> to vector<16xf32>
    %116 = vector.shape_cast %115 : vector<16xf32> to vector<16x1xf32>
    %117 = tpu.reciprocal %116 {approx = true} : vector<16x1xf32> -> vector<16x1xf32>
    %118 = vector.broadcast %117 : vector<16x1xf32> to vector<16x16xf32>
    %119 = arith.mulf %114, %118 : vector<16x16xf32>
    %120 = arith.truncf %119 : vector<16x16xf32> to vector<16x16xbf16>
    %121 = vector.extract_strided_slice %88 {offsets = [0, 8], sizes = [16, 8], strides = [1, 1]} : vector<16x32xbf16> to vector<16x8xbf16>
    %cst_50 = arith.constant dense<0.000000e+00> : vector<16x8xf32>
    %122 = tpu.matmul %120, %121, %cst_50 {dimension_numbers = #tpu.dot_dimension_numbers<[1], [0], [0], [1], [0, 0, 1, 1], [], []>} : vector<16x16xbf16>, vector<16x8xbf16>, vector<16x8xf32> -> vector<16x8xf32>
    %123 = vector.extract_strided_slice %86 {offsets = [0, 16], sizes = [16, 8], strides = [1, 1]} : vector<16x32xbf16> to vector<16x8xbf16>
    %124 = vector.extract_strided_slice %87 {offsets = [0, 16], sizes = [16, 8], strides = [1, 1]} : vector<16x32xbf16> to vector<16x8xbf16>
    %cst_51 = arith.constant dense<0.000000e+00> : vector<16x16xf32>
    %125 = tpu.matmul %123, %124, %cst_51 {dimension_numbers = #tpu.dot_dimension_numbers<[1], [1], [0], [0], [0, 0, 1, 0], [], []>} : vector<16x8xbf16>, vector<16x8xbf16>, vector<16x16xf32> -> vector<16x16xf32>
    %126 = arith.addf %125, %53 : vector<16x16xf32>
    %cst_52 = arith.constant dense<0xFF800000> : vector<16xf32>
    %127 = vector.multi_reduction <maximumf>, %126, %cst_52 [1] : vector<16x16xf32> to vector<16xf32>
    %128 = vector.shape_cast %127 : vector<16xf32> to vector<16x1xf32>
    %129 = vector.broadcast %128 : vector<16x1xf32> to vector<16x16xf32>
    %130 = arith.subf %126, %129 : vector<16x16xf32>
    %131 = math.exp %130 : vector<16x16xf32>
    %cst_53 = arith.constant dense<0.000000e+00> : vector<16xf32>
    %132 = vector.multi_reduction <add>, %131, %cst_53 [1] : vector<16x16xf32> to vector<16xf32>
    %133 = vector.shape_cast %132 : vector<16xf32> to vector<16x1xf32>
    %134 = tpu.reciprocal %133 {approx = true} : vector<16x1xf32> -> vector<16x1xf32>
    %135 = vector.broadcast %134 : vector<16x1xf32> to vector<16x16xf32>
    %136 = arith.mulf %131, %135 : vector<16x16xf32>
    %137 = arith.truncf %136 : vector<16x16xf32> to vector<16x16xbf16>
    %138 = vector.extract_strided_slice %88 {offsets = [0, 16], sizes = [16, 8], strides = [1, 1]} : vector<16x32xbf16> to vector<16x8xbf16>
    %cst_54 = arith.constant dense<0.000000e+00> : vector<16x8xf32>
    %139 = tpu.matmul %137, %138, %cst_54 {dimension_numbers = #tpu.dot_dimension_numbers<[1], [0], [0], [1], [0, 0, 1, 1], [], []>} : vector<16x16xbf16>, vector<16x8xbf16>, vector<16x8xf32> -> vector<16x8xf32>
    %140 = vector.extract_strided_slice %86 {offsets = [0, 24], sizes = [16, 8], strides = [1, 1]} : vector<16x32xbf16> to vector<16x8xbf16>
    %141 = vector.extract_strided_slice %87 {offsets = [0, 24], sizes = [16, 8], strides = [1, 1]} : vector<16x32xbf16> to vector<16x8xbf16>
    %cst_55 = arith.constant dense<0.000000e+00> : vector<16x16xf32>
    %142 = tpu.matmul %140, %141, %cst_55 {dimension_numbers = #tpu.dot_dimension_numbers<[1], [1], [0], [0], [0, 0, 1, 0], [], []>} : vector<16x8xbf16>, vector<16x8xbf16>, vector<16x16xf32> -> vector<16x16xf32>
    %143 = arith.addf %142, %53 : vector<16x16xf32>
    %cst_56 = arith.constant dense<0xFF800000> : vector<16xf32>
    %144 = vector.multi_reduction <maximumf>, %143, %cst_56 [1] : vector<16x16xf32> to vector<16xf32>
    %145 = vector.shape_cast %144 : vector<16xf32> to vector<16x1xf32>
    %146 = vector.broadcast %145 : vector<16x1xf32> to vector<16x16xf32>
    %147 = arith.subf %143, %146 : vector<16x16xf32>
    %148 = math.exp %147 : vector<16x16xf32>
    %cst_57 = arith.constant dense<0.000000e+00> : vector<16xf32>
    %149 = vector.multi_reduction <add>, %148, %cst_57 [1] : vector<16x16xf32> to vector<16xf32>
    %150 = vector.shape_cast %149 : vector<16xf32> to vector<16x1xf32>
    %151 = tpu.reciprocal %150 {approx = true} : vector<16x1xf32> -> vector<16x1xf32>
    %152 = vector.broadcast %151 : vector<16x1xf32> to vector<16x16xf32>
    %153 = arith.mulf %148, %152 : vector<16x16xf32>
    %154 = arith.truncf %153 : vector<16x16xf32> to vector<16x16xbf16>
    %155 = vector.extract_strided_slice %88 {offsets = [0, 24], sizes = [16, 8], strides = [1, 1]} : vector<16x32xbf16> to vector<16x8xbf16>
    %cst_58 = arith.constant dense<0.000000e+00> : vector<16x8xf32>
    %156 = tpu.matmul %154, %155, %cst_58 {dimension_numbers = #tpu.dot_dimension_numbers<[1], [0], [0], [1], [0, 0, 1, 1], [], []>} : vector<16x16xbf16>, vector<16x8xbf16>, vector<16x8xf32> -> vector<16x8xf32>
    %157 = tpu.concatenate %105, %122, %139, %156 in 1 : vector<16x8xf32>, vector<16x8xf32>, vector<16x8xf32>, vector<16x8xf32> -> vector<16x32xf32>
    %158 = arith.truncf %157 : vector<16x32xf32> to vector<16x32xbf16>
    %c256 = arith.constant 256 : index
    %c0_59 = arith.constant 0 : index
    %159 = vector.load %arg4[%c256, %c0_59] : memref<864x128xbf16, #tpu.memory_space<vmem>>, vector<32x32xbf16>
    %cst_60 = arith.constant dense<0.000000e+00> : vector<16x32xf32>
    %160 = tpu.matmul %158, %159, %cst_60 {dimension_numbers = #tpu.dot_dimension_numbers<[1], [0], [0], [1], [0, 0, 1, 1], [], []>} : vector<16x32xbf16>, vector<32x32xbf16>, vector<16x32xf32> -> vector<16x32xf32>
    %c176 = arith.constant 176 : index
    %c0_61 = arith.constant 0 : index
    %161 = vector.load %arg3[%c176, %c0_61] : memref<328x128xf32, #tpu.memory_space<vmem>>, vector<1x32xf32>
    %162 = vector.broadcast %161 : vector<1x32xf32> to vector<16x32xf32>
    %163 = arith.addf %160, %162 : vector<16x32xf32>
    %164 = arith.addf %52, %163 : vector<16x32xf32>
    %c136 = arith.constant 136 : index
    %c0_62 = arith.constant 0 : index
    %165 = vector.load %arg3[%c136, %c0_62] : memref<328x128xf32, #tpu.memory_space<vmem>>, vector<1x32xf32>
    %c144 = arith.constant 144 : index
    %c0_63 = arith.constant 0 : index
    %166 = vector.load %arg3[%c144, %c0_63] : memref<328x128xf32, #tpu.memory_space<vmem>>, vector<1x32xf32>
    %cst_64 = arith.constant dense<0.000000e+00> : vector<16xf32>
    %167 = vector.multi_reduction <add>, %164, %cst_64 [1] : vector<16x32xf32> to vector<16xf32>
    %168 = vector.shape_cast %167 : vector<16xf32> to vector<16x1xf32>
    %cst_65 = arith.constant 3.200000e+01 : f32
    %169 = vector.broadcast %cst_65 : f32 to vector<16x1xf32>
    %170 = arith.divf %168, %169 : vector<16x1xf32>
    %171 = vector.broadcast %170 : vector<16x1xf32> to vector<16x32xf32>
    %172 = arith.subf %164, %171 : vector<16x32xf32>
    %173 = arith.mulf %172, %172 : vector<16x32xf32>
    %cst_66 = arith.constant dense<0.000000e+00> : vector<16xf32>
    %174 = vector.multi_reduction <add>, %173, %cst_66 [1] : vector<16x32xf32> to vector<16xf32>
    %175 = vector.shape_cast %174 : vector<16xf32> to vector<16x1xf32>
    %cst_67 = arith.constant 3.200000e+01 : f32
    %176 = vector.broadcast %cst_67 : f32 to vector<16x1xf32>
    %177 = arith.divf %175, %176 : vector<16x1xf32>
    %cst_68 = arith.constant 9.99999974E-6 : f32
    %178 = vector.broadcast %cst_68 : f32 to vector<16x1xf32>
    %179 = arith.addf %177, %178 : vector<16x1xf32>
    %180 = math.rsqrt %179 : vector<16x1xf32>
    %181 = vector.broadcast %180 : vector<16x1xf32> to vector<16x32xf32>
    %182 = arith.mulf %172, %181 : vector<16x32xf32>
    %183 = vector.broadcast %165 : vector<1x32xf32> to vector<16x32xf32>
    %184 = arith.mulf %182, %183 : vector<16x32xf32>
    %185 = vector.broadcast %166 : vector<1x32xf32> to vector<16x32xf32>
    %186 = arith.addf %184, %185 : vector<16x32xf32>
    %187 = arith.truncf %186 : vector<16x32xf32> to vector<16x32xbf16>
    %c288 = arith.constant 288 : index
    %c0_69 = arith.constant 0 : index
    %188 = vector.load %arg4[%c288, %c0_69] : memref<864x128xbf16, #tpu.memory_space<vmem>>, vector<32x32xbf16>
    %cst_70 = arith.constant dense<0.000000e+00> : vector<16x32xf32>
    %189 = tpu.matmul %187, %188, %cst_70 {dimension_numbers = #tpu.dot_dimension_numbers<[1], [0], [0], [1], [0, 0, 1, 1], [], []>} : vector<16x32xbf16>, vector<32x32xbf16>, vector<16x32xf32> -> vector<16x32xf32>
    %c184 = arith.constant 184 : index
    %c0_71 = arith.constant 0 : index
    %190 = vector.load %arg3[%c184, %c0_71] : memref<328x128xf32, #tpu.memory_space<vmem>>, vector<1x32xf32>
    %191 = vector.broadcast %190 : vector<1x32xf32> to vector<16x32xf32>
    %192 = arith.addf %189, %191 : vector<16x32xf32>
    %193 = arith.truncf %43 : vector<6x32xf32> to vector<6x32xbf16>
    %c320 = arith.constant 320 : index
    %c0_72 = arith.constant 0 : index
    %194 = vector.load %arg4[%c320, %c0_72] : memref<864x128xbf16, #tpu.memory_space<vmem>>, vector<32x64xbf16>
    %cst_73 = arith.constant dense<0.000000e+00> : vector<6x64xf32>
    %195 = tpu.matmul %193, %194, %cst_73 {dimension_numbers = #tpu.dot_dimension_numbers<[1], [0], [0], [1], [0, 0, 1, 1], [], []>} : vector<6x32xbf16>, vector<32x64xbf16>, vector<6x64xf32> -> vector<6x64xf32>
    %c192 = arith.constant 192 : index
    %c0_74 = arith.constant 0 : index
    %196 = vector.load %arg3[%c192, %c0_74] : memref<328x128xf32, #tpu.memory_space<vmem>>, vector<1x64xf32>
    %197 = vector.broadcast %196 : vector<1x64xf32> to vector<6x64xf32>
    %198 = arith.addf %195, %197 : vector<6x64xf32>
    %199 = vector.extract_strided_slice %198 {offsets = [0, 0], sizes = [6, 32], strides = [1, 1]} : vector<6x64xf32> to vector<6x32xf32>
    %200 = vector.extract_strided_slice %198 {offsets = [0, 32], sizes = [6, 32], strides = [1, 1]} : vector<6x64xf32> to vector<6x32xf32>
    %201 = arith.truncf %192 : vector<16x32xf32> to vector<16x32xbf16>
    %202 = arith.truncf %199 : vector<6x32xf32> to vector<6x32xbf16>
    %203 = arith.truncf %200 : vector<6x32xf32> to vector<6x32xbf16>
    %204 = vector.extract_strided_slice %201 {offsets = [0, 0], sizes = [16, 8], strides = [1, 1]} : vector<16x32xbf16> to vector<16x8xbf16>
    %205 = vector.extract_strided_slice %202 {offsets = [0, 0], sizes = [6, 8], strides = [1, 1]} : vector<6x32xbf16> to vector<6x8xbf16>
    %cst_75 = arith.constant dense<0.000000e+00> : vector<16x6xf32>
    %206 = tpu.matmul %204, %205, %cst_75 {dimension_numbers = #tpu.dot_dimension_numbers<[1], [1], [0], [0], [0, 0, 1, 0], [], []>} : vector<16x8xbf16>, vector<6x8xbf16>, vector<16x6xf32> -> vector<16x6xf32>
    %207 = arith.addf %206, %54 : vector<16x6xf32>
    %cst_76 = arith.constant dense<0xFF800000> : vector<16xf32>
    %208 = vector.multi_reduction <maximumf>, %207, %cst_76 [1] : vector<16x6xf32> to vector<16xf32>
    %209 = vector.shape_cast %208 : vector<16xf32> to vector<16x1xf32>
    %210 = vector.broadcast %209 : vector<16x1xf32> to vector<16x6xf32>
    %211 = arith.subf %207, %210 : vector<16x6xf32>
    %212 = math.exp %211 : vector<16x6xf32>
    %cst_77 = arith.constant dense<0.000000e+00> : vector<16xf32>
    %213 = vector.multi_reduction <add>, %212, %cst_77 [1] : vector<16x6xf32> to vector<16xf32>
    %214 = vector.shape_cast %213 : vector<16xf32> to vector<16x1xf32>
    %215 = tpu.reciprocal %214 {approx = true} : vector<16x1xf32> -> vector<16x1xf32>
    %216 = vector.broadcast %215 : vector<16x1xf32> to vector<16x6xf32>
    %217 = arith.mulf %212, %216 : vector<16x6xf32>
    %218 = arith.truncf %217 : vector<16x6xf32> to vector<16x6xbf16>
    %219 = vector.extract_strided_slice %203 {offsets = [0, 0], sizes = [6, 8], strides = [1, 1]} : vector<6x32xbf16> to vector<6x8xbf16>
    %cst_78 = arith.constant dense<0.000000e+00> : vector<16x8xf32>
    %220 = tpu.matmul %218, %219, %cst_78 {dimension_numbers = #tpu.dot_dimension_numbers<[1], [0], [0], [1], [0, 0, 1, 1], [], []>} : vector<16x6xbf16>, vector<6x8xbf16>, vector<16x8xf32> -> vector<16x8xf32>
    %221 = vector.extract_strided_slice %201 {offsets = [0, 8], sizes = [16, 8], strides = [1, 1]} : vector<16x32xbf16> to vector<16x8xbf16>
    %222 = vector.extract_strided_slice %202 {offsets = [0, 8], sizes = [6, 8], strides = [1, 1]} : vector<6x32xbf16> to vector<6x8xbf16>
    %cst_79 = arith.constant dense<0.000000e+00> : vector<16x6xf32>
    %223 = tpu.matmul %221, %222, %cst_79 {dimension_numbers = #tpu.dot_dimension_numbers<[1], [1], [0], [0], [0, 0, 1, 0], [], []>} : vector<16x8xbf16>, vector<6x8xbf16>, vector<16x6xf32> -> vector<16x6xf32>
    %224 = arith.addf %223, %54 : vector<16x6xf32>
    %cst_80 = arith.constant dense<0xFF800000> : vector<16xf32>
    %225 = vector.multi_reduction <maximumf>, %224, %cst_80 [1] : vector<16x6xf32> to vector<16xf32>
    %226 = vector.shape_cast %225 : vector<16xf32> to vector<16x1xf32>
    %227 = vector.broadcast %226 : vector<16x1xf32> to vector<16x6xf32>
    %228 = arith.subf %224, %227 : vector<16x6xf32>
    %229 = math.exp %228 : vector<16x6xf32>
    %cst_81 = arith.constant dense<0.000000e+00> : vector<16xf32>
    %230 = vector.multi_reduction <add>, %229, %cst_81 [1] : vector<16x6xf32> to vector<16xf32>
    %231 = vector.shape_cast %230 : vector<16xf32> to vector<16x1xf32>
    %232 = tpu.reciprocal %231 {approx = true} : vector<16x1xf32> -> vector<16x1xf32>
    %233 = vector.broadcast %232 : vector<16x1xf32> to vector<16x6xf32>
    %234 = arith.mulf %229, %233 : vector<16x6xf32>
    %235 = arith.truncf %234 : vector<16x6xf32> to vector<16x6xbf16>
    %236 = vector.extract_strided_slice %203 {offsets = [0, 8], sizes = [6, 8], strides = [1, 1]} : vector<6x32xbf16> to vector<6x8xbf16>
    %cst_82 = arith.constant dense<0.000000e+00> : vector<16x8xf32>
    %237 = tpu.matmul %235, %236, %cst_82 {dimension_numbers = #tpu.dot_dimension_numbers<[1], [0], [0], [1], [0, 0, 1, 1], [], []>} : vector<16x6xbf16>, vector<6x8xbf16>, vector<16x8xf32> -> vector<16x8xf32>
    %238 = vector.extract_strided_slice %201 {offsets = [0, 16], sizes = [16, 8], strides = [1, 1]} : vector<16x32xbf16> to vector<16x8xbf16>
    %239 = vector.extract_strided_slice %202 {offsets = [0, 16], sizes = [6, 8], strides = [1, 1]} : vector<6x32xbf16> to vector<6x8xbf16>
    %cst_83 = arith.constant dense<0.000000e+00> : vector<16x6xf32>
    %240 = tpu.matmul %238, %239, %cst_83 {dimension_numbers = #tpu.dot_dimension_numbers<[1], [1], [0], [0], [0, 0, 1, 0], [], []>} : vector<16x8xbf16>, vector<6x8xbf16>, vector<16x6xf32> -> vector<16x6xf32>
    %241 = arith.addf %240, %54 : vector<16x6xf32>
    %cst_84 = arith.constant dense<0xFF800000> : vector<16xf32>
    %242 = vector.multi_reduction <maximumf>, %241, %cst_84 [1] : vector<16x6xf32> to vector<16xf32>
    %243 = vector.shape_cast %242 : vector<16xf32> to vector<16x1xf32>
    %244 = vector.broadcast %243 : vector<16x1xf32> to vector<16x6xf32>
    %245 = arith.subf %241, %244 : vector<16x6xf32>
    %246 = math.exp %245 : vector<16x6xf32>
    %cst_85 = arith.constant dense<0.000000e+00> : vector<16xf32>
    %247 = vector.multi_reduction <add>, %246, %cst_85 [1] : vector<16x6xf32> to vector<16xf32>
    %248 = vector.shape_cast %247 : vector<16xf32> to vector<16x1xf32>
    %249 = tpu.reciprocal %248 {approx = true} : vector<16x1xf32> -> vector<16x1xf32>
    %250 = vector.broadcast %249 : vector<16x1xf32> to vector<16x6xf32>
    %251 = arith.mulf %246, %250 : vector<16x6xf32>
    %252 = arith.truncf %251 : vector<16x6xf32> to vector<16x6xbf16>
    %253 = vector.extract_strided_slice %203 {offsets = [0, 16], sizes = [6, 8], strides = [1, 1]} : vector<6x32xbf16> to vector<6x8xbf16>
    %cst_86 = arith.constant dense<0.000000e+00> : vector<16x8xf32>
    %254 = tpu.matmul %252, %253, %cst_86 {dimension_numbers = #tpu.dot_dimension_numbers<[1], [0], [0], [1], [0, 0, 1, 1], [], []>} : vector<16x6xbf16>, vector<6x8xbf16>, vector<16x8xf32> -> vector<16x8xf32>
    %255 = vector.extract_strided_slice %201 {offsets = [0, 24], sizes = [16, 8], strides = [1, 1]} : vector<16x32xbf16> to vector<16x8xbf16>
    %256 = vector.extract_strided_slice %202 {offsets = [0, 24], sizes = [6, 8], strides = [1, 1]} : vector<6x32xbf16> to vector<6x8xbf16>
    %cst_87 = arith.constant dense<0.000000e+00> : vector<16x6xf32>
    %257 = tpu.matmul %255, %256, %cst_87 {dimension_numbers = #tpu.dot_dimension_numbers<[1], [1], [0], [0], [0, 0, 1, 0], [], []>} : vector<16x8xbf16>, vector<6x8xbf16>, vector<16x6xf32> -> vector<16x6xf32>
    %258 = arith.addf %257, %54 : vector<16x6xf32>
    %cst_88 = arith.constant dense<0xFF800000> : vector<16xf32>
    %259 = vector.multi_reduction <maximumf>, %258, %cst_88 [1] : vector<16x6xf32> to vector<16xf32>
    %260 = vector.shape_cast %259 : vector<16xf32> to vector<16x1xf32>
    %261 = vector.broadcast %260 : vector<16x1xf32> to vector<16x6xf32>
    %262 = arith.subf %258, %261 : vector<16x6xf32>
    %263 = math.exp %262 : vector<16x6xf32>
    %cst_89 = arith.constant dense<0.000000e+00> : vector<16xf32>
    %264 = vector.multi_reduction <add>, %263, %cst_89 [1] : vector<16x6xf32> to vector<16xf32>
    %265 = vector.shape_cast %264 : vector<16xf32> to vector<16x1xf32>
    %266 = tpu.reciprocal %265 {approx = true} : vector<16x1xf32> -> vector<16x1xf32>
    %267 = vector.broadcast %266 : vector<16x1xf32> to vector<16x6xf32>
    %268 = arith.mulf %263, %267 : vector<16x6xf32>
    %269 = arith.truncf %268 : vector<16x6xf32> to vector<16x6xbf16>
    %270 = vector.extract_strided_slice %203 {offsets = [0, 24], sizes = [6, 8], strides = [1, 1]} : vector<6x32xbf16> to vector<6x8xbf16>
    %cst_90 = arith.constant dense<0.000000e+00> : vector<16x8xf32>
    %271 = tpu.matmul %269, %270, %cst_90 {dimension_numbers = #tpu.dot_dimension_numbers<[1], [0], [0], [1], [0, 0, 1, 1], [], []>} : vector<16x6xbf16>, vector<6x8xbf16>, vector<16x8xf32> -> vector<16x8xf32>
    %272 = tpu.concatenate %220, %237, %254, %271 in 1 : vector<16x8xf32>, vector<16x8xf32>, vector<16x8xf32>, vector<16x8xf32> -> vector<16x32xf32>
    %273 = arith.truncf %272 : vector<16x32xf32> to vector<16x32xbf16>
    %c352 = arith.constant 352 : index
    %c0_91 = arith.constant 0 : index
    %274 = vector.load %arg4[%c352, %c0_91] : memref<864x128xbf16, #tpu.memory_space<vmem>>, vector<32x32xbf16>
    %cst_92 = arith.constant dense<0.000000e+00> : vector<16x32xf32>
    %275 = tpu.matmul %273, %274, %cst_92 {dimension_numbers = #tpu.dot_dimension_numbers<[1], [0], [0], [1], [0, 0, 1, 1], [], []>} : vector<16x32xbf16>, vector<32x32xbf16>, vector<16x32xf32> -> vector<16x32xf32>
    %c200 = arith.constant 200 : index
    %c0_93 = arith.constant 0 : index
    %276 = vector.load %arg3[%c200, %c0_93] : memref<328x128xf32, #tpu.memory_space<vmem>>, vector<1x32xf32>
    %277 = vector.broadcast %276 : vector<1x32xf32> to vector<16x32xf32>
    %278 = arith.addf %275, %277 : vector<16x32xf32>
    %279 = arith.addf %164, %278 : vector<16x32xf32>
    %c152 = arith.constant 152 : index
    %c0_94 = arith.constant 0 : index
    %280 = vector.load %arg3[%c152, %c0_94] : memref<328x128xf32, #tpu.memory_space<vmem>>, vector<1x32xf32>
    %c160 = arith.constant 160 : index
    %c0_95 = arith.constant 0 : index
    %281 = vector.load %arg3[%c160, %c0_95] : memref<328x128xf32, #tpu.memory_space<vmem>>, vector<1x32xf32>
    %cst_96 = arith.constant dense<0.000000e+00> : vector<16xf32>
    %282 = vector.multi_reduction <add>, %279, %cst_96 [1] : vector<16x32xf32> to vector<16xf32>
    %283 = vector.shape_cast %282 : vector<16xf32> to vector<16x1xf32>
    %cst_97 = arith.constant 3.200000e+01 : f32
    %284 = vector.broadcast %cst_97 : f32 to vector<16x1xf32>
    %285 = arith.divf %283, %284 : vector<16x1xf32>
    %286 = vector.broadcast %285 : vector<16x1xf32> to vector<16x32xf32>
    %287 = arith.subf %279, %286 : vector<16x32xf32>
    %288 = arith.mulf %287, %287 : vector<16x32xf32>
    %cst_98 = arith.constant dense<0.000000e+00> : vector<16xf32>
    %289 = vector.multi_reduction <add>, %288, %cst_98 [1] : vector<16x32xf32> to vector<16xf32>
    %290 = vector.shape_cast %289 : vector<16xf32> to vector<16x1xf32>
    %cst_99 = arith.constant 3.200000e+01 : f32
    %291 = vector.broadcast %cst_99 : f32 to vector<16x1xf32>
    %292 = arith.divf %290, %291 : vector<16x1xf32>
    %cst_100 = arith.constant 9.99999974E-6 : f32
    %293 = vector.broadcast %cst_100 : f32 to vector<16x1xf32>
    %294 = arith.addf %292, %293 : vector<16x1xf32>
    %295 = math.rsqrt %294 : vector<16x1xf32>
    %296 = vector.broadcast %295 : vector<16x1xf32> to vector<16x32xf32>
    %297 = arith.mulf %287, %296 : vector<16x32xf32>
    %298 = vector.broadcast %280 : vector<1x32xf32> to vector<16x32xf32>
    %299 = arith.mulf %297, %298 : vector<16x32xf32>
    %300 = vector.broadcast %281 : vector<1x32xf32> to vector<16x32xf32>
    %301 = arith.addf %299, %300 : vector<16x32xf32>
    %302 = arith.truncf %301 : vector<16x32xf32> to vector<16x32xbf16>
    %c384 = arith.constant 384 : index
    %c0_101 = arith.constant 0 : index
    %303 = vector.load %arg4[%c384, %c0_101] : memref<864x128xbf16, #tpu.memory_space<vmem>>, vector<32x128xbf16>
    %cst_102 = arith.constant dense<0.000000e+00> : vector<16x128xf32>
    %304 = tpu.matmul %302, %303, %cst_102 {dimension_numbers = #tpu.dot_dimension_numbers<[1], [0], [0], [1], [0, 0, 1, 1], [], []>} : vector<16x32xbf16>, vector<32x128xbf16>, vector<16x128xf32> -> vector<16x128xf32>
    %c208 = arith.constant 208 : index
    %c0_103 = arith.constant 0 : index
    %305 = vector.load %arg3[%c208, %c0_103] : memref<328x128xf32, #tpu.memory_space<vmem>>, vector<1x128xf32>
    %306 = vector.broadcast %305 : vector<1x128xf32> to vector<16x128xf32>
    %307 = arith.addf %304, %306 : vector<16x128xf32>
    %308 = arith.mulf %307, %307 : vector<16x128xf32>
    %309 = arith.mulf %307, %308 : vector<16x128xf32>
    %cst_104 = arith.constant 4.471500e-02 : f32
    %310 = vector.broadcast %cst_104 : f32 to vector<16x128xf32>
    %311 = arith.mulf %310, %309 : vector<16x128xf32>
    %312 = arith.addf %307, %311 : vector<16x128xf32>
    %cst_105 = arith.constant 0.797884583 : f32
    %313 = vector.broadcast %cst_105 : f32 to vector<16x128xf32>
    %314 = arith.mulf %313, %312 : vector<16x128xf32>
    %315 = math.tanh %314 : vector<16x128xf32>
    %cst_106 = arith.constant 1.000000e+00 : f32
    %316 = vector.broadcast %cst_106 : f32 to vector<16x128xf32>
    %317 = arith.addf %316, %315 : vector<16x128xf32>
    %cst_107 = arith.constant 5.000000e-01 : f32
    %318 = vector.broadcast %cst_107 : f32 to vector<16x128xf32>
    %319 = arith.mulf %318, %317 : vector<16x128xf32>
    %320 = arith.mulf %307, %319 : vector<16x128xf32>
    %321 = arith.truncf %320 : vector<16x128xf32> to vector<16x128xbf16>
    %c416 = arith.constant 416 : index
    %c0_108 = arith.constant 0 : index
    %322 = vector.load %arg4[%c416, %c0_108] : memref<864x128xbf16, #tpu.memory_space<vmem>>, vector<128x32xbf16>
    %cst_109 = arith.constant dense<0.000000e+00> : vector<16x32xf32>
    %323 = tpu.matmul %321, %322, %cst_109 {dimension_numbers = #tpu.dot_dimension_numbers<[1], [0], [0], [1], [0, 0, 1, 1], [], []>} : vector<16x128xbf16>, vector<128x32xbf16>, vector<16x32xf32> -> vector<16x32xf32>
    %c216 = arith.constant 216 : index
    %c0_110 = arith.constant 0 : index
    %324 = vector.load %arg3[%c216, %c0_110] : memref<328x128xf32, #tpu.memory_space<vmem>>, vector<1x32xf32>
    %325 = vector.broadcast %324 : vector<1x32xf32> to vector<16x32xf32>
    %326 = arith.addf %323, %325 : vector<16x32xf32>
    %327 = arith.addf %279, %326 : vector<16x32xf32>
    %c224_111 = arith.constant 224 : index
    %c0_112 = arith.constant 0 : index
    %328 = vector.load %arg3[%c224_111, %c0_112] : memref<328x128xf32, #tpu.memory_space<vmem>>, vector<1x32xf32>
    %c232 = arith.constant 232 : index
    %c0_113 = arith.constant 0 : index
    %329 = vector.load %arg3[%c232, %c0_113] : memref<328x128xf32, #tpu.memory_space<vmem>>, vector<1x32xf32>
    %cst_114 = arith.constant dense<0.000000e+00> : vector<16xf32>
    %330 = vector.multi_reduction <add>, %327, %cst_114 [1] : vector<16x32xf32> to vector<16xf32>
    %331 = vector.shape_cast %330 : vector<16xf32> to vector<16x1xf32>
    %cst_115 = arith.constant 3.200000e+01 : f32
    %332 = vector.broadcast %cst_115 : f32 to vector<16x1xf32>
    %333 = arith.divf %331, %332 : vector<16x1xf32>
    %334 = vector.broadcast %333 : vector<16x1xf32> to vector<16x32xf32>
    %335 = arith.subf %327, %334 : vector<16x32xf32>
    %336 = arith.mulf %335, %335 : vector<16x32xf32>
    %cst_116 = arith.constant dense<0.000000e+00> : vector<16xf32>
    %337 = vector.multi_reduction <add>, %336, %cst_116 [1] : vector<16x32xf32> to vector<16xf32>
    %338 = vector.shape_cast %337 : vector<16xf32> to vector<16x1xf32>
    %cst_117 = arith.constant 3.200000e+01 : f32
    %339 = vector.broadcast %cst_117 : f32 to vector<16x1xf32>
    %340 = arith.divf %338, %339 : vector<16x1xf32>
    %cst_118 = arith.constant 9.99999974E-6 : f32
    %341 = vector.broadcast %cst_118 : f32 to vector<16x1xf32>
    %342 = arith.addf %340, %341 : vector<16x1xf32>
    %343 = math.rsqrt %342 : vector<16x1xf32>
    %344 = vector.broadcast %343 : vector<16x1xf32> to vector<16x32xf32>
    %345 = arith.mulf %335, %344 : vector<16x32xf32>
    %346 = vector.broadcast %328 : vector<1x32xf32> to vector<16x32xf32>
    %347 = arith.mulf %345, %346 : vector<16x32xf32>
    %348 = vector.broadcast %329 : vector<1x32xf32> to vector<16x32xf32>
    %349 = arith.addf %347, %348 : vector<16x32xf32>
    %350 = arith.truncf %349 : vector<16x32xf32> to vector<16x32xbf16>
    %c544 = arith.constant 544 : index
    %c0_119 = arith.constant 0 : index
    %351 = vector.load %arg4[%c544, %c0_119] : memref<864x128xbf16, #tpu.memory_space<vmem>>, vector<32x96xbf16>
    %cst_120 = arith.constant dense<0.000000e+00> : vector<16x96xf32>
    %352 = tpu.matmul %350, %351, %cst_120 {dimension_numbers = #tpu.dot_dimension_numbers<[1], [0], [0], [1], [0, 0, 1, 1], [], []>} : vector<16x32xbf16>, vector<32x96xbf16>, vector<16x96xf32> -> vector<16x96xf32>
    %c272 = arith.constant 272 : index
    %c0_121 = arith.constant 0 : index
    %353 = vector.load %arg3[%c272, %c0_121] : memref<328x128xf32, #tpu.memory_space<vmem>>, vector<1x96xf32>
    %354 = vector.broadcast %353 : vector<1x96xf32> to vector<16x96xf32>
    %355 = arith.addf %352, %354 : vector<16x96xf32>
    %356 = vector.extract_strided_slice %355 {offsets = [0, 0], sizes = [16, 32], strides = [1, 1]} : vector<16x96xf32> to vector<16x32xf32>
    %357 = vector.extract_strided_slice %355 {offsets = [0, 32], sizes = [16, 32], strides = [1, 1]} : vector<16x96xf32> to vector<16x32xf32>
    %358 = vector.extract_strided_slice %355 {offsets = [0, 64], sizes = [16, 32], strides = [1, 1]} : vector<16x96xf32> to vector<16x32xf32>
    %359 = arith.truncf %356 : vector<16x32xf32> to vector<16x32xbf16>
    %360 = arith.truncf %357 : vector<16x32xf32> to vector<16x32xbf16>
    %361 = arith.truncf %358 : vector<16x32xf32> to vector<16x32xbf16>
    %362 = vector.extract_strided_slice %359 {offsets = [0, 0], sizes = [16, 8], strides = [1, 1]} : vector<16x32xbf16> to vector<16x8xbf16>
    %363 = vector.extract_strided_slice %360 {offsets = [0, 0], sizes = [16, 8], strides = [1, 1]} : vector<16x32xbf16> to vector<16x8xbf16>
    %cst_122 = arith.constant dense<0.000000e+00> : vector<16x16xf32>
    %364 = tpu.matmul %362, %363, %cst_122 {dimension_numbers = #tpu.dot_dimension_numbers<[1], [1], [0], [0], [0, 0, 1, 0], [], []>} : vector<16x8xbf16>, vector<16x8xbf16>, vector<16x16xf32> -> vector<16x16xf32>
    %365 = arith.addf %364, %53 : vector<16x16xf32>
    %cst_123 = arith.constant dense<0xFF800000> : vector<16xf32>
    %366 = vector.multi_reduction <maximumf>, %365, %cst_123 [1] : vector<16x16xf32> to vector<16xf32>
    %367 = vector.shape_cast %366 : vector<16xf32> to vector<16x1xf32>
    %368 = vector.broadcast %367 : vector<16x1xf32> to vector<16x16xf32>
    %369 = arith.subf %365, %368 : vector<16x16xf32>
    %370 = math.exp %369 : vector<16x16xf32>
    %cst_124 = arith.constant dense<0.000000e+00> : vector<16xf32>
    %371 = vector.multi_reduction <add>, %370, %cst_124 [1] : vector<16x16xf32> to vector<16xf32>
    %372 = vector.shape_cast %371 : vector<16xf32> to vector<16x1xf32>
    %373 = tpu.reciprocal %372 {approx = true} : vector<16x1xf32> -> vector<16x1xf32>
    %374 = vector.broadcast %373 : vector<16x1xf32> to vector<16x16xf32>
    %375 = arith.mulf %370, %374 : vector<16x16xf32>
    %376 = arith.truncf %375 : vector<16x16xf32> to vector<16x16xbf16>
    %377 = vector.extract_strided_slice %361 {offsets = [0, 0], sizes = [16, 8], strides = [1, 1]} : vector<16x32xbf16> to vector<16x8xbf16>
    %cst_125 = arith.constant dense<0.000000e+00> : vector<16x8xf32>
    %378 = tpu.matmul %376, %377, %cst_125 {dimension_numbers = #tpu.dot_dimension_numbers<[1], [0], [0], [1], [0, 0, 1, 1], [], []>} : vector<16x16xbf16>, vector<16x8xbf16>, vector<16x8xf32> -> vector<16x8xf32>
    %379 = vector.extract_strided_slice %359 {offsets = [0, 8], sizes = [16, 8], strides = [1, 1]} : vector<16x32xbf16> to vector<16x8xbf16>
    %380 = vector.extract_strided_slice %360 {offsets = [0, 8], sizes = [16, 8], strides = [1, 1]} : vector<16x32xbf16> to vector<16x8xbf16>
    %cst_126 = arith.constant dense<0.000000e+00> : vector<16x16xf32>
    %381 = tpu.matmul %379, %380, %cst_126 {dimension_numbers = #tpu.dot_dimension_numbers<[1], [1], [0], [0], [0, 0, 1, 0], [], []>} : vector<16x8xbf16>, vector<16x8xbf16>, vector<16x16xf32> -> vector<16x16xf32>
    %382 = arith.addf %381, %53 : vector<16x16xf32>
    %cst_127 = arith.constant dense<0xFF800000> : vector<16xf32>
    %383 = vector.multi_reduction <maximumf>, %382, %cst_127 [1] : vector<16x16xf32> to vector<16xf32>
    %384 = vector.shape_cast %383 : vector<16xf32> to vector<16x1xf32>
    %385 = vector.broadcast %384 : vector<16x1xf32> to vector<16x16xf32>
    %386 = arith.subf %382, %385 : vector<16x16xf32>
    %387 = math.exp %386 : vector<16x16xf32>
    %cst_128 = arith.constant dense<0.000000e+00> : vector<16xf32>
    %388 = vector.multi_reduction <add>, %387, %cst_128 [1] : vector<16x16xf32> to vector<16xf32>
    %389 = vector.shape_cast %388 : vector<16xf32> to vector<16x1xf32>
    %390 = tpu.reciprocal %389 {approx = true} : vector<16x1xf32> -> vector<16x1xf32>
    %391 = vector.broadcast %390 : vector<16x1xf32> to vector<16x16xf32>
    %392 = arith.mulf %387, %391 : vector<16x16xf32>
    %393 = arith.truncf %392 : vector<16x16xf32> to vector<16x16xbf16>
    %394 = vector.extract_strided_slice %361 {offsets = [0, 8], sizes = [16, 8], strides = [1, 1]} : vector<16x32xbf16> to vector<16x8xbf16>
    %cst_129 = arith.constant dense<0.000000e+00> : vector<16x8xf32>
    %395 = tpu.matmul %393, %394, %cst_129 {dimension_numbers = #tpu.dot_dimension_numbers<[1], [0], [0], [1], [0, 0, 1, 1], [], []>} : vector<16x16xbf16>, vector<16x8xbf16>, vector<16x8xf32> -> vector<16x8xf32>
    %396 = vector.extract_strided_slice %359 {offsets = [0, 16], sizes = [16, 8], strides = [1, 1]} : vector<16x32xbf16> to vector<16x8xbf16>
    %397 = vector.extract_strided_slice %360 {offsets = [0, 16], sizes = [16, 8], strides = [1, 1]} : vector<16x32xbf16> to vector<16x8xbf16>
    %cst_130 = arith.constant dense<0.000000e+00> : vector<16x16xf32>
    %398 = tpu.matmul %396, %397, %cst_130 {dimension_numbers = #tpu.dot_dimension_numbers<[1], [1], [0], [0], [0, 0, 1, 0], [], []>} : vector<16x8xbf16>, vector<16x8xbf16>, vector<16x16xf32> -> vector<16x16xf32>
    %399 = arith.addf %398, %53 : vector<16x16xf32>
    %cst_131 = arith.constant dense<0xFF800000> : vector<16xf32>
    %400 = vector.multi_reduction <maximumf>, %399, %cst_131 [1] : vector<16x16xf32> to vector<16xf32>
    %401 = vector.shape_cast %400 : vector<16xf32> to vector<16x1xf32>
    %402 = vector.broadcast %401 : vector<16x1xf32> to vector<16x16xf32>
    %403 = arith.subf %399, %402 : vector<16x16xf32>
    %404 = math.exp %403 : vector<16x16xf32>
    %cst_132 = arith.constant dense<0.000000e+00> : vector<16xf32>
    %405 = vector.multi_reduction <add>, %404, %cst_132 [1] : vector<16x16xf32> to vector<16xf32>
    %406 = vector.shape_cast %405 : vector<16xf32> to vector<16x1xf32>
    %407 = tpu.reciprocal %406 {approx = true} : vector<16x1xf32> -> vector<16x1xf32>
    %408 = vector.broadcast %407 : vector<16x1xf32> to vector<16x16xf32>
    %409 = arith.mulf %404, %408 : vector<16x16xf32>
    %410 = arith.truncf %409 : vector<16x16xf32> to vector<16x16xbf16>
    %411 = vector.extract_strided_slice %361 {offsets = [0, 16], sizes = [16, 8], strides = [1, 1]} : vector<16x32xbf16> to vector<16x8xbf16>
    %cst_133 = arith.constant dense<0.000000e+00> : vector<16x8xf32>
    %412 = tpu.matmul %410, %411, %cst_133 {dimension_numbers = #tpu.dot_dimension_numbers<[1], [0], [0], [1], [0, 0, 1, 1], [], []>} : vector<16x16xbf16>, vector<16x8xbf16>, vector<16x8xf32> -> vector<16x8xf32>
    %413 = vector.extract_strided_slice %359 {offsets = [0, 24], sizes = [16, 8], strides = [1, 1]} : vector<16x32xbf16> to vector<16x8xbf16>
    %414 = vector.extract_strided_slice %360 {offsets = [0, 24], sizes = [16, 8], strides = [1, 1]} : vector<16x32xbf16> to vector<16x8xbf16>
    %cst_134 = arith.constant dense<0.000000e+00> : vector<16x16xf32>
    %415 = tpu.matmul %413, %414, %cst_134 {dimension_numbers = #tpu.dot_dimension_numbers<[1], [1], [0], [0], [0, 0, 1, 0], [], []>} : vector<16x8xbf16>, vector<16x8xbf16>, vector<16x16xf32> -> vector<16x16xf32>
    %416 = arith.addf %415, %53 : vector<16x16xf32>
    %cst_135 = arith.constant dense<0xFF800000> : vector<16xf32>
    %417 = vector.multi_reduction <maximumf>, %416, %cst_135 [1] : vector<16x16xf32> to vector<16xf32>
    %418 = vector.shape_cast %417 : vector<16xf32> to vector<16x1xf32>
    %419 = vector.broadcast %418 : vector<16x1xf32> to vector<16x16xf32>
    %420 = arith.subf %416, %419 : vector<16x16xf32>
    %421 = math.exp %420 : vector<16x16xf32>
    %cst_136 = arith.constant dense<0.000000e+00> : vector<16xf32>
    %422 = vector.multi_reduction <add>, %421, %cst_136 [1] : vector<16x16xf32> to vector<16xf32>
    %423 = vector.shape_cast %422 : vector<16xf32> to vector<16x1xf32>
    %424 = tpu.reciprocal %423 {approx = true} : vector<16x1xf32> -> vector<16x1xf32>
    %425 = vector.broadcast %424 : vector<16x1xf32> to vector<16x16xf32>
    %426 = arith.mulf %421, %425 : vector<16x16xf32>
    %427 = arith.truncf %426 : vector<16x16xf32> to vector<16x16xbf16>
    %428 = vector.extract_strided_slice %361 {offsets = [0, 24], sizes = [16, 8], strides = [1, 1]} : vector<16x32xbf16> to vector<16x8xbf16>
    %cst_137 = arith.constant dense<0.000000e+00> : vector<16x8xf32>
    %429 = tpu.matmul %427, %428, %cst_137 {dimension_numbers = #tpu.dot_dimension_numbers<[1], [0], [0], [1], [0, 0, 1, 1], [], []>} : vector<16x16xbf16>, vector<16x8xbf16>, vector<16x8xf32> -> vector<16x8xf32>
    %430 = tpu.concatenate %378, %395, %412, %429 in 1 : vector<16x8xf32>, vector<16x8xf32>, vector<16x8xf32>, vector<16x8xf32> -> vector<16x32xf32>
    %431 = arith.truncf %430 : vector<16x32xf32> to vector<16x32xbf16>
    %c576 = arith.constant 576 : index
    %c0_138 = arith.constant 0 : index
    %432 = vector.load %arg4[%c576, %c0_138] : memref<864x128xbf16, #tpu.memory_space<vmem>>, vector<32x32xbf16>
    %cst_139 = arith.constant dense<0.000000e+00> : vector<16x32xf32>
    %433 = tpu.matmul %431, %432, %cst_139 {dimension_numbers = #tpu.dot_dimension_numbers<[1], [0], [0], [1], [0, 0, 1, 1], [], []>} : vector<16x32xbf16>, vector<32x32xbf16>, vector<16x32xf32> -> vector<16x32xf32>
    %c280 = arith.constant 280 : index
    %c0_140 = arith.constant 0 : index
    %434 = vector.load %arg3[%c280, %c0_140] : memref<328x128xf32, #tpu.memory_space<vmem>>, vector<1x32xf32>
    %435 = vector.broadcast %434 : vector<1x32xf32> to vector<16x32xf32>
    %436 = arith.addf %433, %435 : vector<16x32xf32>
    %437 = arith.addf %327, %436 : vector<16x32xf32>
    %c240 = arith.constant 240 : index
    %c0_141 = arith.constant 0 : index
    %438 = vector.load %arg3[%c240, %c0_141] : memref<328x128xf32, #tpu.memory_space<vmem>>, vector<1x32xf32>
    %c248 = arith.constant 248 : index
    %c0_142 = arith.constant 0 : index
    %439 = vector.load %arg3[%c248, %c0_142] : memref<328x128xf32, #tpu.memory_space<vmem>>, vector<1x32xf32>
    %cst_143 = arith.constant dense<0.000000e+00> : vector<16xf32>
    %440 = vector.multi_reduction <add>, %437, %cst_143 [1] : vector<16x32xf32> to vector<16xf32>
    %441 = vector.shape_cast %440 : vector<16xf32> to vector<16x1xf32>
    %cst_144 = arith.constant 3.200000e+01 : f32
    %442 = vector.broadcast %cst_144 : f32 to vector<16x1xf32>
    %443 = arith.divf %441, %442 : vector<16x1xf32>
    %444 = vector.broadcast %443 : vector<16x1xf32> to vector<16x32xf32>
    %445 = arith.subf %437, %444 : vector<16x32xf32>
    %446 = arith.mulf %445, %445 : vector<16x32xf32>
    %cst_145 = arith.constant dense<0.000000e+00> : vector<16xf32>
    %447 = vector.multi_reduction <add>, %446, %cst_145 [1] : vector<16x32xf32> to vector<16xf32>
    %448 = vector.shape_cast %447 : vector<16xf32> to vector<16x1xf32>
    %cst_146 = arith.constant 3.200000e+01 : f32
    %449 = vector.broadcast %cst_146 : f32 to vector<16x1xf32>
    %450 = arith.divf %448, %449 : vector<16x1xf32>
    %cst_147 = arith.constant 9.99999974E-6 : f32
    %451 = vector.broadcast %cst_147 : f32 to vector<16x1xf32>
    %452 = arith.addf %450, %451 : vector<16x1xf32>
    %453 = math.rsqrt %452 : vector<16x1xf32>
    %454 = vector.broadcast %453 : vector<16x1xf32> to vector<16x32xf32>
    %455 = arith.mulf %445, %454 : vector<16x32xf32>
    %456 = vector.broadcast %438 : vector<1x32xf32> to vector<16x32xf32>
    %457 = arith.mulf %455, %456 : vector<16x32xf32>
    %458 = vector.broadcast %439 : vector<1x32xf32> to vector<16x32xf32>
    %459 = arith.addf %457, %458 : vector<16x32xf32>
    %460 = arith.truncf %459 : vector<16x32xf32> to vector<16x32xbf16>
    %c608 = arith.constant 608 : index
    %c0_148 = arith.constant 0 : index
    %461 = vector.load %arg4[%c608, %c0_148] : memref<864x128xbf16, #tpu.memory_space<vmem>>, vector<32x32xbf16>
    %cst_149 = arith.constant dense<0.000000e+00> : vector<16x32xf32>
    %462 = tpu.matmul %460, %461, %cst_149 {dimension_numbers = #tpu.dot_dimension_numbers<[1], [0], [0], [1], [0, 0, 1, 1], [], []>} : vector<16x32xbf16>, vector<32x32xbf16>, vector<16x32xf32> -> vector<16x32xf32>
    %c288_150 = arith.constant 288 : index
    %c0_151 = arith.constant 0 : index
    %463 = vector.load %arg3[%c288_150, %c0_151] : memref<328x128xf32, #tpu.memory_space<vmem>>, vector<1x32xf32>
    %464 = vector.broadcast %463 : vector<1x32xf32> to vector<16x32xf32>
    %465 = arith.addf %462, %464 : vector<16x32xf32>
    %466 = arith.truncf %43 : vector<6x32xf32> to vector<6x32xbf16>
    %c640 = arith.constant 640 : index
    %c0_152 = arith.constant 0 : index
    %467 = vector.load %arg4[%c640, %c0_152] : memref<864x128xbf16, #tpu.memory_space<vmem>>, vector<32x64xbf16>
    %cst_153 = arith.constant dense<0.000000e+00> : vector<6x64xf32>
    %468 = tpu.matmul %466, %467, %cst_153 {dimension_numbers = #tpu.dot_dimension_numbers<[1], [0], [0], [1], [0, 0, 1, 1], [], []>} : vector<6x32xbf16>, vector<32x64xbf16>, vector<6x64xf32> -> vector<6x64xf32>
    %c296 = arith.constant 296 : index
    %c0_154 = arith.constant 0 : index
    %469 = vector.load %arg3[%c296, %c0_154] : memref<328x128xf32, #tpu.memory_space<vmem>>, vector<1x64xf32>
    %470 = vector.broadcast %469 : vector<1x64xf32> to vector<6x64xf32>
    %471 = arith.addf %468, %470 : vector<6x64xf32>
    %472 = vector.extract_strided_slice %471 {offsets = [0, 0], sizes = [6, 32], strides = [1, 1]} : vector<6x64xf32> to vector<6x32xf32>
    %473 = vector.extract_strided_slice %471 {offsets = [0, 32], sizes = [6, 32], strides = [1, 1]} : vector<6x64xf32> to vector<6x32xf32>
    %474 = arith.truncf %465 : vector<16x32xf32> to vector<16x32xbf16>
    %475 = arith.truncf %472 : vector<6x32xf32> to vector<6x32xbf16>
    %476 = arith.truncf %473 : vector<6x32xf32> to vector<6x32xbf16>
    %477 = vector.extract_strided_slice %474 {offsets = [0, 0], sizes = [16, 8], strides = [1, 1]} : vector<16x32xbf16> to vector<16x8xbf16>
    %478 = vector.extract_strided_slice %475 {offsets = [0, 0], sizes = [6, 8], strides = [1, 1]} : vector<6x32xbf16> to vector<6x8xbf16>
    %cst_155 = arith.constant dense<0.000000e+00> : vector<16x6xf32>
    %479 = tpu.matmul %477, %478, %cst_155 {dimension_numbers = #tpu.dot_dimension_numbers<[1], [1], [0], [0], [0, 0, 1, 0], [], []>} : vector<16x8xbf16>, vector<6x8xbf16>, vector<16x6xf32> -> vector<16x6xf32>
    %480 = arith.addf %479, %54 : vector<16x6xf32>
    %cst_156 = arith.constant dense<0xFF800000> : vector<16xf32>
    %481 = vector.multi_reduction <maximumf>, %480, %cst_156 [1] : vector<16x6xf32> to vector<16xf32>
    %482 = vector.shape_cast %481 : vector<16xf32> to vector<16x1xf32>
    %483 = vector.broadcast %482 : vector<16x1xf32> to vector<16x6xf32>
    %484 = arith.subf %480, %483 : vector<16x6xf32>
    %485 = math.exp %484 : vector<16x6xf32>
    %cst_157 = arith.constant dense<0.000000e+00> : vector<16xf32>
    %486 = vector.multi_reduction <add>, %485, %cst_157 [1] : vector<16x6xf32> to vector<16xf32>
    %487 = vector.shape_cast %486 : vector<16xf32> to vector<16x1xf32>
    %488 = tpu.reciprocal %487 {approx = true} : vector<16x1xf32> -> vector<16x1xf32>
    %489 = vector.broadcast %488 : vector<16x1xf32> to vector<16x6xf32>
    %490 = arith.mulf %485, %489 : vector<16x6xf32>
    %491 = arith.truncf %490 : vector<16x6xf32> to vector<16x6xbf16>
    %492 = vector.extract_strided_slice %476 {offsets = [0, 0], sizes = [6, 8], strides = [1, 1]} : vector<6x32xbf16> to vector<6x8xbf16>
    %cst_158 = arith.constant dense<0.000000e+00> : vector<16x8xf32>
    %493 = tpu.matmul %491, %492, %cst_158 {dimension_numbers = #tpu.dot_dimension_numbers<[1], [0], [0], [1], [0, 0, 1, 1], [], []>} : vector<16x6xbf16>, vector<6x8xbf16>, vector<16x8xf32> -> vector<16x8xf32>
    %494 = vector.extract_strided_slice %474 {offsets = [0, 8], sizes = [16, 8], strides = [1, 1]} : vector<16x32xbf16> to vector<16x8xbf16>
    %495 = vector.extract_strided_slice %475 {offsets = [0, 8], sizes = [6, 8], strides = [1, 1]} : vector<6x32xbf16> to vector<6x8xbf16>
    %cst_159 = arith.constant dense<0.000000e+00> : vector<16x6xf32>
    %496 = tpu.matmul %494, %495, %cst_159 {dimension_numbers = #tpu.dot_dimension_numbers<[1], [1], [0], [0], [0, 0, 1, 0], [], []>} : vector<16x8xbf16>, vector<6x8xbf16>, vector<16x6xf32> -> vector<16x6xf32>
    %497 = arith.addf %496, %54 : vector<16x6xf32>
    %cst_160 = arith.constant dense<0xFF800000> : vector<16xf32>
    %498 = vector.multi_reduction <maximumf>, %497, %cst_160 [1] : vector<16x6xf32> to vector<16xf32>
    %499 = vector.shape_cast %498 : vector<16xf32> to vector<16x1xf32>
    %500 = vector.broadcast %499 : vector<16x1xf32> to vector<16x6xf32>
    %501 = arith.subf %497, %500 : vector<16x6xf32>
    %502 = math.exp %501 : vector<16x6xf32>
    %cst_161 = arith.constant dense<0.000000e+00> : vector<16xf32>
    %503 = vector.multi_reduction <add>, %502, %cst_161 [1] : vector<16x6xf32> to vector<16xf32>
    %504 = vector.shape_cast %503 : vector<16xf32> to vector<16x1xf32>
    %505 = tpu.reciprocal %504 {approx = true} : vector<16x1xf32> -> vector<16x1xf32>
    %506 = vector.broadcast %505 : vector<16x1xf32> to vector<16x6xf32>
    %507 = arith.mulf %502, %506 : vector<16x6xf32>
    %508 = arith.truncf %507 : vector<16x6xf32> to vector<16x6xbf16>
    %509 = vector.extract_strided_slice %476 {offsets = [0, 8], sizes = [6, 8], strides = [1, 1]} : vector<6x32xbf16> to vector<6x8xbf16>
    %cst_162 = arith.constant dense<0.000000e+00> : vector<16x8xf32>
    %510 = tpu.matmul %508, %509, %cst_162 {dimension_numbers = #tpu.dot_dimension_numbers<[1], [0], [0], [1], [0, 0, 1, 1], [], []>} : vector<16x6xbf16>, vector<6x8xbf16>, vector<16x8xf32> -> vector<16x8xf32>
    %511 = vector.extract_strided_slice %474 {offsets = [0, 16], sizes = [16, 8], strides = [1, 1]} : vector<16x32xbf16> to vector<16x8xbf16>
    %512 = vector.extract_strided_slice %475 {offsets = [0, 16], sizes = [6, 8], strides = [1, 1]} : vector<6x32xbf16> to vector<6x8xbf16>
    %cst_163 = arith.constant dense<0.000000e+00> : vector<16x6xf32>
    %513 = tpu.matmul %511, %512, %cst_163 {dimension_numbers = #tpu.dot_dimension_numbers<[1], [1], [0], [0], [0, 0, 1, 0], [], []>} : vector<16x8xbf16>, vector<6x8xbf16>, vector<16x6xf32> -> vector<16x6xf32>
    %514 = arith.addf %513, %54 : vector<16x6xf32>
    %cst_164 = arith.constant dense<0xFF800000> : vector<16xf32>
    %515 = vector.multi_reduction <maximumf>, %514, %cst_164 [1] : vector<16x6xf32> to vector<16xf32>
    %516 = vector.shape_cast %515 : vector<16xf32> to vector<16x1xf32>
    %517 = vector.broadcast %516 : vector<16x1xf32> to vector<16x6xf32>
    %518 = arith.subf %514, %517 : vector<16x6xf32>
    %519 = math.exp %518 : vector<16x6xf32>
    %cst_165 = arith.constant dense<0.000000e+00> : vector<16xf32>
    %520 = vector.multi_reduction <add>, %519, %cst_165 [1] : vector<16x6xf32> to vector<16xf32>
    %521 = vector.shape_cast %520 : vector<16xf32> to vector<16x1xf32>
    %522 = tpu.reciprocal %521 {approx = true} : vector<16x1xf32> -> vector<16x1xf32>
    %523 = vector.broadcast %522 : vector<16x1xf32> to vector<16x6xf32>
    %524 = arith.mulf %519, %523 : vector<16x6xf32>
    %525 = arith.truncf %524 : vector<16x6xf32> to vector<16x6xbf16>
    %526 = vector.extract_strided_slice %476 {offsets = [0, 16], sizes = [6, 8], strides = [1, 1]} : vector<6x32xbf16> to vector<6x8xbf16>
    %cst_166 = arith.constant dense<0.000000e+00> : vector<16x8xf32>
    %527 = tpu.matmul %525, %526, %cst_166 {dimension_numbers = #tpu.dot_dimension_numbers<[1], [0], [0], [1], [0, 0, 1, 1], [], []>} : vector<16x6xbf16>, vector<6x8xbf16>, vector<16x8xf32> -> vector<16x8xf32>
    %528 = vector.extract_strided_slice %474 {offsets = [0, 24], sizes = [16, 8], strides = [1, 1]} : vector<16x32xbf16> to vector<16x8xbf16>
    %529 = vector.extract_strided_slice %475 {offsets = [0, 24], sizes = [6, 8], strides = [1, 1]} : vector<6x32xbf16> to vector<6x8xbf16>
    %cst_167 = arith.constant dense<0.000000e+00> : vector<16x6xf32>
    %530 = tpu.matmul %528, %529, %cst_167 {dimension_numbers = #tpu.dot_dimension_numbers<[1], [1], [0], [0], [0, 0, 1, 0], [], []>} : vector<16x8xbf16>, vector<6x8xbf16>, vector<16x6xf32> -> vector<16x6xf32>
    %531 = arith.addf %530, %54 : vector<16x6xf32>
    %cst_168 = arith.constant dense<0xFF800000> : vector<16xf32>
    %532 = vector.multi_reduction <maximumf>, %531, %cst_168 [1] : vector<16x6xf32> to vector<16xf32>
    %533 = vector.shape_cast %532 : vector<16xf32> to vector<16x1xf32>
    %534 = vector.broadcast %533 : vector<16x1xf32> to vector<16x6xf32>
    %535 = arith.subf %531, %534 : vector<16x6xf32>
    %536 = math.exp %535 : vector<16x6xf32>
    %cst_169 = arith.constant dense<0.000000e+00> : vector<16xf32>
    %537 = vector.multi_reduction <add>, %536, %cst_169 [1] : vector<16x6xf32> to vector<16xf32>
    %538 = vector.shape_cast %537 : vector<16xf32> to vector<16x1xf32>
    %539 = tpu.reciprocal %538 {approx = true} : vector<16x1xf32> -> vector<16x1xf32>
    %540 = vector.broadcast %539 : vector<16x1xf32> to vector<16x6xf32>
    %541 = arith.mulf %536, %540 : vector<16x6xf32>
    %542 = arith.truncf %541 : vector<16x6xf32> to vector<16x6xbf16>
    %543 = vector.extract_strided_slice %476 {offsets = [0, 24], sizes = [6, 8], strides = [1, 1]} : vector<6x32xbf16> to vector<6x8xbf16>
    %cst_170 = arith.constant dense<0.000000e+00> : vector<16x8xf32>
    %544 = tpu.matmul %542, %543, %cst_170 {dimension_numbers = #tpu.dot_dimension_numbers<[1], [0], [0], [1], [0, 0, 1, 1], [], []>} : vector<16x6xbf16>, vector<6x8xbf16>, vector<16x8xf32> -> vector<16x8xf32>
    %545 = tpu.concatenate %493, %510, %527, %544 in 1 : vector<16x8xf32>, vector<16x8xf32>, vector<16x8xf32>, vector<16x8xf32> -> vector<16x32xf32>
    %546 = arith.truncf %545 : vector<16x32xf32> to vector<16x32xbf16>
    %c672 = arith.constant 672 : index
    %c0_171 = arith.constant 0 : index
    %547 = vector.load %arg4[%c672, %c0_171] : memref<864x128xbf16, #tpu.memory_space<vmem>>, vector<32x32xbf16>
    %cst_172 = arith.constant dense<0.000000e+00> : vector<16x32xf32>
    %548 = tpu.matmul %546, %547, %cst_172 {dimension_numbers = #tpu.dot_dimension_numbers<[1], [0], [0], [1], [0, 0, 1, 1], [], []>} : vector<16x32xbf16>, vector<32x32xbf16>, vector<16x32xf32> -> vector<16x32xf32>
    %c304 = arith.constant 304 : index
    %c0_173 = arith.constant 0 : index
    %549 = vector.load %arg3[%c304, %c0_173] : memref<328x128xf32, #tpu.memory_space<vmem>>, vector<1x32xf32>
    %550 = vector.broadcast %549 : vector<1x32xf32> to vector<16x32xf32>
    %551 = arith.addf %548, %550 : vector<16x32xf32>
    %552 = arith.addf %437, %551 : vector<16x32xf32>
    %c256_174 = arith.constant 256 : index
    %c0_175 = arith.constant 0 : index
    %553 = vector.load %arg3[%c256_174, %c0_175] : memref<328x128xf32, #tpu.memory_space<vmem>>, vector<1x32xf32>
    %c264 = arith.constant 264 : index
    %c0_176 = arith.constant 0 : index
    %554 = vector.load %arg3[%c264, %c0_176] : memref<328x128xf32, #tpu.memory_space<vmem>>, vector<1x32xf32>
    %cst_177 = arith.constant dense<0.000000e+00> : vector<16xf32>
    %555 = vector.multi_reduction <add>, %552, %cst_177 [1] : vector<16x32xf32> to vector<16xf32>
    %556 = vector.shape_cast %555 : vector<16xf32> to vector<16x1xf32>
    %cst_178 = arith.constant 3.200000e+01 : f32
    %557 = vector.broadcast %cst_178 : f32 to vector<16x1xf32>
    %558 = arith.divf %556, %557 : vector<16x1xf32>
    %559 = vector.broadcast %558 : vector<16x1xf32> to vector<16x32xf32>
    %560 = arith.subf %552, %559 : vector<16x32xf32>
    %561 = arith.mulf %560, %560 : vector<16x32xf32>
    %cst_179 = arith.constant dense<0.000000e+00> : vector<16xf32>
    %562 = vector.multi_reduction <add>, %561, %cst_179 [1] : vector<16x32xf32> to vector<16xf32>
    %563 = vector.shape_cast %562 : vector<16xf32> to vector<16x1xf32>
    %cst_180 = arith.constant 3.200000e+01 : f32
    %564 = vector.broadcast %cst_180 : f32 to vector<16x1xf32>
    %565 = arith.divf %563, %564 : vector<16x1xf32>
    %cst_181 = arith.constant 9.99999974E-6 : f32
    %566 = vector.broadcast %cst_181 : f32 to vector<16x1xf32>
    %567 = arith.addf %565, %566 : vector<16x1xf32>
    %568 = math.rsqrt %567 : vector<16x1xf32>
    %569 = vector.broadcast %568 : vector<16x1xf32> to vector<16x32xf32>
    %570 = arith.mulf %560, %569 : vector<16x32xf32>
    %571 = vector.broadcast %553 : vector<1x32xf32> to vector<16x32xf32>
    %572 = arith.mulf %570, %571 : vector<16x32xf32>
    %573 = vector.broadcast %554 : vector<1x32xf32> to vector<16x32xf32>
    %574 = arith.addf %572, %573 : vector<16x32xf32>
    %575 = arith.truncf %574 : vector<16x32xf32> to vector<16x32xbf16>
    %c704 = arith.constant 704 : index
    %c0_182 = arith.constant 0 : index
    %576 = vector.load %arg4[%c704, %c0_182] : memref<864x128xbf16, #tpu.memory_space<vmem>>, vector<32x128xbf16>
    %cst_183 = arith.constant dense<0.000000e+00> : vector<16x128xf32>
    %577 = tpu.matmul %575, %576, %cst_183 {dimension_numbers = #tpu.dot_dimension_numbers<[1], [0], [0], [1], [0, 0, 1, 1], [], []>} : vector<16x32xbf16>, vector<32x128xbf16>, vector<16x128xf32> -> vector<16x128xf32>
    %c312 = arith.constant 312 : index
    %c0_184 = arith.constant 0 : index
    %578 = vector.load %arg3[%c312, %c0_184] : memref<328x128xf32, #tpu.memory_space<vmem>>, vector<1x128xf32>
    %579 = vector.broadcast %578 : vector<1x128xf32> to vector<16x128xf32>
    %580 = arith.addf %577, %579 : vector<16x128xf32>
    %581 = arith.mulf %580, %580 : vector<16x128xf32>
    %582 = arith.mulf %580, %581 : vector<16x128xf32>
    %cst_185 = arith.constant 4.471500e-02 : f32
    %583 = vector.broadcast %cst_185 : f32 to vector<16x128xf32>
    %584 = arith.mulf %583, %582 : vector<16x128xf32>
    %585 = arith.addf %580, %584 : vector<16x128xf32>
    %cst_186 = arith.constant 0.797884583 : f32
    %586 = vector.broadcast %cst_186 : f32 to vector<16x128xf32>
    %587 = arith.mulf %586, %585 : vector<16x128xf32>
    %588 = math.tanh %587 : vector<16x128xf32>
    %cst_187 = arith.constant 1.000000e+00 : f32
    %589 = vector.broadcast %cst_187 : f32 to vector<16x128xf32>
    %590 = arith.addf %589, %588 : vector<16x128xf32>
    %cst_188 = arith.constant 5.000000e-01 : f32
    %591 = vector.broadcast %cst_188 : f32 to vector<16x128xf32>
    %592 = arith.mulf %591, %590 : vector<16x128xf32>
    %593 = arith.mulf %580, %592 : vector<16x128xf32>
    %594 = arith.truncf %593 : vector<16x128xf32> to vector<16x128xbf16>
    %c736 = arith.constant 736 : index
    %c0_189 = arith.constant 0 : index
    %595 = vector.load %arg4[%c736, %c0_189] : memref<864x128xbf16, #tpu.memory_space<vmem>>, vector<128x32xbf16>
    %cst_190 = arith.constant dense<0.000000e+00> : vector<16x32xf32>
    %596 = tpu.matmul %594, %595, %cst_190 {dimension_numbers = #tpu.dot_dimension_numbers<[1], [0], [0], [1], [0, 0, 1, 1], [], []>} : vector<16x128xbf16>, vector<128x32xbf16>, vector<16x32xf32> -> vector<16x32xf32>
    %c320_191 = arith.constant 320 : index
    %c0_192 = arith.constant 0 : index
    %597 = vector.load %arg3[%c320_191, %c0_192] : memref<328x128xf32, #tpu.memory_space<vmem>>, vector<1x32xf32>
    %598 = vector.broadcast %597 : vector<1x32xf32> to vector<16x32xf32>
    %599 = arith.addf %596, %598 : vector<16x32xf32>
    %600 = arith.addf %552, %599 : vector<16x32xf32>
    %c96 = arith.constant 96 : index
    %c0_193 = arith.constant 0 : index
    %601 = vector.load %arg3[%c96, %c0_193] : memref<328x128xf32, #tpu.memory_space<vmem>>, vector<1x32xf32>
    %c104 = arith.constant 104 : index
    %c0_194 = arith.constant 0 : index
    %602 = vector.load %arg3[%c104, %c0_194] : memref<328x128xf32, #tpu.memory_space<vmem>>, vector<1x32xf32>
    %cst_195 = arith.constant dense<0.000000e+00> : vector<16xf32>
    %603 = vector.multi_reduction <add>, %600, %cst_195 [1] : vector<16x32xf32> to vector<16xf32>
    %604 = vector.shape_cast %603 : vector<16xf32> to vector<16x1xf32>
    %cst_196 = arith.constant 3.200000e+01 : f32
    %605 = vector.broadcast %cst_196 : f32 to vector<16x1xf32>
    %606 = arith.divf %604, %605 : vector<16x1xf32>
    %607 = vector.broadcast %606 : vector<16x1xf32> to vector<16x32xf32>
    %608 = arith.subf %600, %607 : vector<16x32xf32>
    %609 = arith.mulf %608, %608 : vector<16x32xf32>
    %cst_197 = arith.constant dense<0.000000e+00> : vector<16xf32>
    %610 = vector.multi_reduction <add>, %609, %cst_197 [1] : vector<16x32xf32> to vector<16xf32>
    %611 = vector.shape_cast %610 : vector<16xf32> to vector<16x1xf32>
    %cst_198 = arith.constant 3.200000e+01 : f32
    %612 = vector.broadcast %cst_198 : f32 to vector<16x1xf32>
    %613 = arith.divf %611, %612 : vector<16x1xf32>
    %cst_199 = arith.constant 9.99999974E-6 : f32
    %614 = vector.broadcast %cst_199 : f32 to vector<16x1xf32>
    %615 = arith.addf %613, %614 : vector<16x1xf32>
    %616 = math.rsqrt %615 : vector<16x1xf32>
    %617 = vector.broadcast %616 : vector<16x1xf32> to vector<16x32xf32>
    %618 = arith.mulf %608, %617 : vector<16x32xf32>
    %619 = vector.broadcast %601 : vector<1x32xf32> to vector<16x32xf32>
    %620 = arith.mulf %618, %619 : vector<16x32xf32>
    %621 = vector.broadcast %602 : vector<1x32xf32> to vector<16x32xf32>
    %622 = arith.addf %620, %621 : vector<16x32xf32>
    %623 = arith.truncf %622 : vector<16x32xf32> to vector<16x32xbf16>
    %c192_200 = arith.constant 192 : index
    %c0_201 = arith.constant 0 : index
    %624 = vector.load %arg4[%c192_200, %c0_201] : memref<864x128xbf16, #tpu.memory_space<vmem>>, vector<32x128xbf16>
    %cst_202 = arith.constant dense<0.000000e+00> : vector<16x128xf32>
    %625 = tpu.matmul %623, %624, %cst_202 {dimension_numbers = #tpu.dot_dimension_numbers<[1], [0], [0], [1], [0, 0, 1, 1], [], []>} : vector<16x32xbf16>, vector<32x128xbf16>, vector<16x128xf32> -> vector<16x128xf32>
    %c112 = arith.constant 112 : index
    %c0_203 = arith.constant 0 : index
    %626 = vector.load %arg3[%c112, %c0_203] : memref<328x128xf32, #tpu.memory_space<vmem>>, vector<1x128xf32>
    %627 = vector.broadcast %626 : vector<1x128xf32> to vector<16x128xf32>
    %628 = arith.addf %625, %627 : vector<16x128xf32>
    %c0_204 = arith.constant 0 : index
    %c0_205 = arith.constant 0 : index
    %629 = vector.load %arg5[%c0_204, %c0_205] : memref<16x128xf32, #tpu.memory_space<vmem>>, vector<16x128xf32>
    tpu.vector_store %arg5[%c0_204, %c0_205], %628 {strides = array<i32>} : memref<16x128xf32, #tpu.memory_space<vmem>>, vector<16x128xf32>,
    return
  }
}

</mosaic_0001>

<llo_original>
// kernel: forward.1
$region0: #{forward.1}
  #allocation0 [shape = 'u32[]', space=smem, size = 0x4, offset = 0x4, fixed_abs, tag = 'smem constant byte address 0x4 - core index']
  #allocation1 [shape = 'u32[72,128]{1,0:T(1,128)}', space=vmem, size = 0x9000, scoped, tag = 'internal scratch']
  #allocation2 [shape = 'f32[6,32]{1,0:T(8,128)}', space=vmem, size = 0x1000, scoped, tag = 'scratch operand']
  %s0 = inlined_call_operand.vmem [shape: f32[16,4], index: 0, kind: input, shape index: {}]
  %s1 = inlined_call_operand.vmem [shape: f32[2,32], index: 1, kind: input, shape index: {}]
  %s2 = inlined_call_operand.vmem [shape: f32[4,4], index: 2, kind: input, shape index: {}]
  %s3 = inlined_call_operand.hbm [shape: f32[328,128], index: 3, kind: input, shape index: {}]
  %s4 = inlined_call_operand.hbm [shape: bf16[864,128], index: 4, kind: input, shape index: {}]
  %s5 = inlined_call_operand.vmem [shape: f32[16,128], index: 5, kind: output, shape index: {}]
  %s6 = sld [smem:[#allocation0]]
  $region38: #{forward.1} parent=0
    _
  %s8 = ssub.s32 1, %s6
  %s9 = scalar_select 0, %s8, %s6
  $region1: #{forward.1} parent=0
    #allocation3 [shape = 'u8[167936]{0}', space=vmem, size = 0x29000, scoped, tag = 'input window, operand 3, single buffered']
    #allocation4 [shape = 's32[1]{0}', space=sflag, size = 0x4, scoped, tag = 'scoped memory for forward.1']
    #allocation5 [shape = 'u8[221184]{0}', space=vmem, size = 0x36000, scoped, tag = 'input window, operand 4, single buffered']
    #allocation6 [shape = 's32[1]{0}', space=sflag, size = 0x4, scoped, tag = 'scoped memory for forward.1']
    %10 = vsyncpa [#allocation4], 0
    %11 = vsyncpa [#allocation6], 0
    // Predicated region
    $region2: #{forward.1} parent=1 // pred_check
      _
    $region3: #{forward.1} parent=1 // pred_check_branch
      %13 = sbr.rel (0) target = $region5
    $region4: #{forward.1} parent=1 // pred_region
      _
    $region5: #{forward.1} parent=1 // pred_fallthru
      _
    // Predicated region
    $region6: #{forward.1} parent=1 // pred_check
      _
    $region7: #{forward.1} parent=1 // pred_check_branch
      %15 = sbr.rel (0) target = $region9
    $region8: #{forward.1} parent=1 // pred_region
      _
    $region9: #{forward.1} parent=1 // pred_fallthru
      _
    // Predicated region
    $region10: #{forward.1} parent=1 // pred_check
      _
    $region11: #{forward.1} parent=1 // pred_check_branch
      %17 = sbr.rel (0) target = $region13
    $region12: #{forward.1} parent=1 // pred_region
      _
    $region13: #{forward.1} parent=1 // pred_fallthru
      _
    // Predicated region
    $region14: #{forward.1} parent=1 // pred_check
      _
    $region15: #{forward.1} parent=1 // pred_check_branch
      %19 = sbr.rel (0) target = $region17
    $region16: #{forward.1} parent=1 // pred_region
      %21 = vsyncadd [#allocation4], 0
      %s22 = sshll.u32 %s3, 4
      %s23 = int_to_ptr.hbm [resolvable:$true] %s22
      %s24 = sshll.u32 [#allocation3], 4
      %s25 = int_to_ptr.vmem [resolvable:$true] %s24
      %30 = dma.hbm_to_vmem [thread:$0]  %s23, 5248, %s25, [#allocation4], 128, 128, 8
    $region17: #{forward.1} parent=1 // pred_fallthru
      _
    // Predicated region
    $region18: #{forward.1} parent=1 // pred_check
      _
    $region19: #{forward.1} parent=1 // pred_check_branch
      %32 = sbr.rel (0) target = $region21
    $region20: #{forward.1} parent=1 // pred_region
      %34 = vsyncadd [#allocation6], 0
      %s35 = sshll.u32 %s4, 4
      %s36 = int_to_ptr.hbm [resolvable:$true] %s35
      %s37 = sshll.u32 [#allocation5], 4
      %s38 = int_to_ptr.vmem [resolvable:$true] %s37
      %43 = dma.hbm_to_vmem [thread:$0]  %s36, 6912, %s38, [#allocation6], 64, 64, 4
    $region21: #{forward.1} parent=1 // pred_fallthru
      _
    // Predicated region
    $region22: #{forward.1} parent=1 // pred_check
      _
    $region23: #{forward.1} parent=1 // pred_check_branch
      %45 = sbr.rel (0) target = $region25
    $region24: #{forward.1} parent=1 // pred_region
      %47 = dma.done [#allocation4], 5248
    $region25: #{forward.1} parent=1 // pred_fallthru
      _
    // Predicated region
    $region26: #{forward.1} parent=1 // pred_check
      _
    $region27: #{forward.1} parent=1 // pred_check_branch
      %49 = sbr.rel (0) target = $region29
    $region28: #{forward.1} parent=1 // pred_region
      %51 = dma.done [#allocation6], 6912
    $region29: #{forward.1} parent=1 // pred_fallthru
      _
    %v53 = vld [vmem:[%s1] sm:$0x3]
    %v54 = vld [vmem:[#allocation3 + $0x10] sm:$0x1]
    %v55 = vperm.slane %v54, 0
    %v56 = vadd.f32 %v53, %v55
    %vm57 = vcmask 254976
    %58 = vst.msk [vmem:[#allocation2] sm:$0x3] %vm57, %v56
    %v59 = vld [vmem:[%s2] sm:$0xf]
    %v60 = vpack.c.bf16 %v59, %v59
    %v61 = vld [vmem:[#allocation5 + $0x8] sm:$0x3]
    %v62 = vld [vmem:[#allocation3 + $0x48] sm:$0x1]
    %v63 = vperm.slane %v62, 0
    %vm64 = vcmask 31744
    %v66 = vsel %vm64, %v60, 0
    %vm68 = vcmask 1041408
    %v70 = vsel %vm68, %v61, 0
    %72 = vmatpush.bf16.msra.mxu0 0
    %73 = vmatpush.bf16.msra.mxu0 0
    %74 = vmatpush.bf16.msra.mxu0 0
    %75 = vmatpush.bf16.msra.mxu0 0
    %76 = vmatpush.bf16.msra.mxu0 0
    %77 = vmatpush.bf16.msra.mxu0 0
    %78 = vmatpush.bf16.msra.mxu0 0
    %79 = vmatpush.bf16.msra.mxu0 %v70
    %80 = vmatmul.bf16.gmra.mxu0 %v66
    %v81 = vpop.f32.mrf.mxu0
    %v82 = vadd.f32 %v63, %v81
    %v83 = vpop.f32.mrf.mxu0
    %84 = vdwg.mxu0
    %v85 = vld [vmem:[#allocation3 + $0x18] sm:$0xf]
    %v86 = vadd.f32 %v82, %v85
    %vm87 = vcmask 257024
    %88 = vst.msk [vmem:[#allocation2 + $0x2] sm:$0xf] %vm87, %v86
    %v89 = vld [vmem:[#allocation2] sm:$0x3f]
    %v90 = vpack.c.bf16 %v89, %v89
    %v91 = vld [vmem:[#allocation5 + $0x10] sm:$0xf]
    %v92 = vld [vmem:[#allocation5 + $0x14] sm:$0xf]
    %v93 = vld [vmem:[#allocation5 + $0x18] sm:$0xf]
    %v94 = vld [vmem:[#allocation5 + $0x1c] sm:$0xf]
    %v95 = vld [vmem:[#allocation3 + $0x50] sm:$0x1]
    %v96 = vperm.slane %v95, 0
    %v101 = vunpack.c.l.b16 %v91
    %v102 = vunpack.c.l.b16 %v92
    %v103 = vunpack.c.l.b16 %v93
    %v104 = vunpack.c.l.b16 %v94
    %v105 = vpack.c.b16 %v102, %v101
    %v106 = vpack.c.b16 %v104, %v103
    %vm109 = vcmask 261120
    %v111 = vsel %vm109, %v90, 0
    %113 = vmatpush.bf16.msra.mxu0 0
    %114 = vmatpush.bf16.msra.mxu0 0
    %115 = vmatpush.bf16.msra.mxu0 0
    %116 = vmatpush.bf16.msra.mxu0 0
    %117 = vmatpush.bf16.msra.mxu0 0
    %118 = vmatpush.bf16.msra.mxu0 0
    %119 = vmatpush.bf16.msra.mxu0 %v106
    %120 = vmatpush.bf16.msra.mxu0 %v105
    %121 = vmatmul.bf16.gmra.mxu0 %v111
    %v122 = vpop.f32.mrf.mxu0
    %v123 = vadd.f32 %v96, %v122
    %v124 = vpop.f32.mrf.mxu0
    %125 = vdwg.mxu0
    %v126 = vmax.f32 %v123, 0.0
    %vm127 = vcmp.ne.f32.partialorder %v123, %v123
    %v128 = vadd.f32 %v123, 0.0
    %v129 = vand.u32 2147483647, %v123
    %v130 = vsub.f32 0.0, %v129
    %v131 = vmul.f32 %v130, 1.442695
    %v132 = vpow.pop %v131
    %v133 = vadd.f32 %v132, 1.0
    %v134 = vlog2.pop %v133
    %v135 = vmul.f32 %v134, 0.6931472
    %v136 = vmul.f32 -0.5, %v132
    %v137 = vadd.f32 %v136, 1.0
    %v138 = vmul.f32 %v137, %v132
    %v139 = vand.u32 2147483647, %v132
    %vm140 = vcmp.lt.f32.partialorder %v139, 0.0004427343
    %v141 = vsel %vm140, %v138, %v135
    %v142 = vadd.f32 %v126, %v141
    %v143 = vsel %vm127, %v128, %v142
    %v144 = vtanh.pop %v143
    %v145 = vmul.f32 %v123, %v144
    %v146 = vpack.c.bf16 %v145, %v145
    %v147 = vld [vmem:[#allocation5 + $0x20] sm:$0xf]
    %v148 = vld [vmem:[#allocation5 + $0x24] sm:$0xf]
    %v149 = vld [vmem:[#allocation5 + $0x28] sm:$0xf]
    %v150 = vld [vmem:[#allocation5 + $0x2c] sm:$0xf]
    %v151 = vld [vmem:[#allocation5 + $0x30] sm:$0xf]
    %v152 = vld [vmem:[#allocation5 + $0x34] sm:$0xf]
    %v153 = vld [vmem:[#allocation5 + $0x38] sm:$0xf]
    %v154 = vld [vmem:[#allocation5 + $0x3c] sm:$0xf]
    %v155 = vld [vmem:[#allocation5 + $0x40] sm:$0xf]
    %v156 = vld [vmem:[#allocation5 + $0x44] sm:$0xf]
    %v157 = vld [vmem:[#allocation5 + $0x48] sm:$0xf]
    %v158 = vld [vmem:[#allocation5 + $0x4c] sm:$0xf]
    %v159 = vld [vmem:[#allocation5 + $0x50] sm:$0xf]
    %v160 = vld [vmem:[#allocation5 + $0x54] sm:$0xf]
    %v161 = vld [vmem:[#allocation5 + $0x58] sm:$0xf]
    %v162 = vld [vmem:[#allocation5 + $0x5c] sm:$0xf]
    %v163 = vld [vmem:[#allocation3 + $0x58] sm:$0x1]
    %v164 = vperm.slane %v163, 0
    %v181 = vunpack.c.l.b16 %v147
    %v182 = vunpack.c.l.b16 %v148
    %v183 = vunpack.c.l.b16 %v149
    %v184 = vunpack.c.l.b16 %v150
    %v185 = vunpack.c.l.b16 %v151
    %v186 = vunpack.c.l.b16 %v152
    %v187 = vunpack.c.l.b16 %v153
    %v188 = vunpack.c.l.b16 %v154
    %v189 = vunpack.c.l.b16 %v155
    %v190 = vunpack.c.l.b16 %v156
    %v191 = vunpack.c.l.b16 %v157
    %v192 = vunpack.c.l.b16 %v158
    %v193 = vunpack.c.l.b16 %v159
    %v194 = vunpack.c.l.b16 %v160
    %v195 = vunpack.c.l.b16 %v161
    %v196 = vunpack.c.l.b16 %v162
    %v197 = vpack.c.b16 %v182, %v181
    %v198 = vpack.c.b16 %v184, %v183
    %v199 = vpack.c.b16 %v186, %v185
    %v200 = vpack.c.b16 %v188, %v187
    %v201 = vpack.c.b16 %v190, %v189
    %v202 = vpack.c.b16 %v192, %v191
    %v203 = vpack.c.b16 %v194, %v193
    %v204 = vpack.c.b16 %v196, %v195
    %213 = vmatpush.bf16.msra.mxu0 %v204
    %214 = vmatpush.bf16.msra.mxu0 %v203
    %215 = vmatpush.bf16.msra.mxu0 %v202
    %216 = vmatpush.bf16.msra.mxu0 %v201
    %217 = vmatpush.bf16.msra.mxu0 %v200
    %218 = vmatpush.bf16.msra.mxu0 %v199
    %219 = vmatpush.bf16.msra.mxu0 %v198
    %220 = vmatpush.bf16.msra.mxu0 %v197
    %221 = vmatmul.bf16.gmra.mxu0 %v146
    %v222 = vpop.f32.mrf.mxu0
    %v223 = vadd.f32 %v164, %v222
    %v224 = vpop.f32.mrf.mxu0
    %225 = vdwg.mxu0
    %v226 = vld [vmem:[%s0] sm:$0xff]
    %v227 = vld [vmem:[%s0 + $0x8] sm:$0xff]
    %v228 = vpack.c.bf16 %v227, %v226
    %v229 = vld [vmem:[#allocation5] sm:$0x3]
    %v230 = vld [vmem:[#allocation3 + $0x40] sm:$0x1]
    %v231 = vperm.slane %v230, 0
    %v233 = vsel %vm64, %v228, 0
    %v236 = vsel %vm68, %v229, 0
    %238 = vmatpush.bf16.msra.mxu0 0
    %239 = vmatpush.bf16.msra.mxu0 0
    %240 = vmatpush.bf16.msra.mxu0 0
    %241 = vmatpush.bf16.msra.mxu0 0
    %242 = vmatpush.bf16.msra.mxu0 0
    %243 = vmatpush.bf16.msra.mxu0 0
    %244 = vmatpush.bf16.msra.mxu0 0
    %245 = vmatpush.bf16.msra.mxu0 %v236
    %246 = vmatmul.bf16.gmra.mxu0 %v233
    %v247 = vpop.f32.mrf.mxu0
    %v248 = vadd.f32 %v231, %v247
    %v249 = vpop.f32.mrf.mxu0
    %v250 = vadd.f32 %v231, %v249
    %251 = vdwg.mxu0
    %v252 = vld [vmem:[#allocation3] sm:$0xff]
    %v253 = vld [vmem:[#allocation3 + $0x8] sm:$0xff]
    %v254 = vadd.f32 %v248, %v252
    %v255 = vadd.f32 %v250, %v253
    %v256 = vld [vmem:[#allocation3 + $0x20] sm:$0xff]
    %v257 = vld [vmem:[#allocation3 + $0x28] sm:$0xff]
    %v258 = vld [vmem:[#allocation3 + $0x30] sm:$0xff]
    %v259 = vld [vmem:[#allocation3 + $0x38] sm:$0xff]
    %v260 = vld [vmem:[#allocation3 + $0x78] sm:$0x1]
    %v261 = vld [vmem:[#allocation3 + $0x80] sm:$0x1]
    %v262 = vsel %vm109, %v254, 0.0
    %263 = vadd.xlane.f32.xlu0 %v262
    %v264 = vpop.xlane.xlu0 %263
    %v265 = vsel %vm109, %v255, 0.0
    %266 = vadd.xlane.f32.xlu0 %v265
    %v267 = vpop.xlane.xlu0 %266
    %v268 = vrcp.pop 32.0
    %v269 = vmul.f32 32.0, %v268
    %v270 = vsub.f32 1.0, %v269
    %v271 = vmul.f32 %v268, %v270
    %v272 = vadd.f32 %v268, %v271
    %vm273 = vweird.f32 %v268
    %v274 = vsel %vm273, %v268, %v272
    %v275 = vmul.f32 %v264, %v274
    %v276 = vmul.f32 %v267, %v274
    %v277 = vsub.f32 %v254, %v275
    %v278 = vsub.f32 %v255, %v276
    %v279 = vmul.f32 %v277, %v277
    %v280 = vmul.f32 %v278, %v278
    %v281 = vsel %vm109, %v279, 0.0
    %282 = vadd.xlane.f32.xlu0 %v281
    %v283 = vpop.xlane.xlu0 %282
    %v284 = vsel %vm109, %v280, 0.0
    %285 = vadd.xlane.f32.xlu0 %v284
    %v286 = vpop.xlane.xlu0 %285
    %v287 = vmul.f32 %v283, %v274
    %v288 = vmul.f32 %v286, %v274
    %v289 = vadd.f32 %v287, 1e-05
    %v290 = vadd.f32 %v288, 1e-05
    %v291 = vrsqrt.pop %v289
    %v292 = vmul.f32 %v291, %v289
    %v293 = vmul.f32 %v292, %v291
    %v294 = vmul.f32 0.5, %v293
    %v295 = vsub.f32 1.5, %v294
    %v296 = vmul.f32 %v291, %v295
    %vm297 = vweird.f32 %v289
    %vm298 = vweird.f32 %v291
    %vm299 = vmor %vm297, %vm298
    %v300 = vsel %vm299, %v291, %v296
    %v301 = vrsqrt.pop %v290
    %v302 = vmul.f32 %v301, %v290
    %v303 = vmul.f32 %v302, %v301
    %v304 = vmul.f32 0.5, %v303
    %v305 = vsub.f32 1.5, %v304
    %v306 = vmul.f32 %v301, %v305
    %vm307 = vweird.f32 %v290
    %vm308 = vweird.f32 %v301
    %vm309 = vmor %vm307, %vm308
    %v310 = vsel %vm309, %v301, %v306
    %v311 = vmul.f32 %v277, %v300
    %v312 = vmul.f32 %v278, %v310
    %v313 = vperm.slane %v260, 0
    %v314 = vmul.f32 %v311, %v313
    %v315 = vmul.f32 %v312, %v313
    %v316 = vperm.slane %v261, 0
    %v317 = vadd.f32 %v314, %v316
    %v318 = vadd.f32 %v315, %v316
    %v319 = vpack.c.bf16 %v318, %v317
    %v320 = vld [vmem:[#allocation5 + $0x70] sm:$0xf]
    %v321 = vld [vmem:[#allocation5 + $0x74] sm:$0xf]
    %v322 = vld [vmem:[#allocation5 + $0x78] sm:$0xf]
    %v323 = vld [vmem:[#allocation5 + $0x7c] sm:$0xf]
    %v324 = vld [vmem:[#allocation3 + $0xa8] sm:$0x1]
    %v325 = vperm.slane %v324, 0
    %v330 = vunpack.c.l.b16 %v320
    %v331 = vunpack.c.l.b16 %v321
    %v332 = vunpack.c.l.b16 %v322
    %v333 = vunpack.c.l.b16 %v323
    %v334 = vpack.c.b16 %v331, %v330
    %v335 = vpack.c.b16 %v333, %v332
    %v339 = vsel %vm109, %v319, 0
    %341 = vmatpush.bf16.msra.mxu0 0
    %342 = vmatpush.bf16.msra.mxu0 0
    %343 = vmatpush.bf16.msra.mxu0 0
    %344 = vmatpush.bf16.msra.mxu0 0
    %345 = vmatpush.bf16.msra.mxu0 0
    %346 = vmatpush.bf16.msra.mxu0 0
    %347 = vmatpush.bf16.msra.mxu0 %v335
    %348 = vmatpush.bf16.msra.mxu0 %v334
    %349 = vmatmul.bf16.gmra.mxu0 %v339
    %v350 = vpop.f32.mrf.mxu0
    %v351 = vadd.f32 %v325, %v350
    %v352 = vpop.f32.mrf.mxu0
    %v353 = vadd.f32 %v325, %v352
    %354 = vdwg.mxu0
    %v355 = vpack.c.bf16 %v351, %v351
    %v356 = vpack.c.bf16 %v353, %v353
    %v359 = vunpack.c.l.b16 %v355
    %v360 = vunpack.c.l.b16 %v356
    %v361 = vpack.c.b16 %v360, %v359
    %362 = vrot.lane.b32.xlu0 %v361, 96
    %v363 = vpop.permute.xlu0 %362
    %vm364 = vcmask 64512
    %v366 = vsel %vm364, %v361, 0
    %v369 = vsel %vm364, %v363, 0
    %371 = vmatpush.bf16.xpose.msra.mxu0 0
    %372 = vmatpush.bf16.xpose.msra.mxu0 0
    %373 = vmatpush.bf16.xpose.msra.mxu0 0
    %374 = vmatpush.bf16.xpose.msra.mxu0 0
    %375 = vmatpush.bf16.xpose.msra.mxu0 0
    %376 = vmatpush.bf16.xpose.msra.mxu0 0
    %377 = vmatpush.bf16.xpose.msra.mxu0 0
    %378 = vmatpush.bf16.xpose.msra.mxu0 %v369
    %379 = vmatmul.bf16.gmra.mxu0 %v366
    %v380 = vpop.f32.mrf.mxu0
    %v381 = vadd.f32 %v256, %v380
    %v382 = vpop.f32.mrf.mxu0
    %v383 = vadd.f32 %v257, %v382
    %384 = vdwg.mxu0
    %vm385 = vcmask 130048
    %v386 = vsel %vm385, %v381, -inf
    %387 = vmax.xlane.f32.xlu0 %v386
    %v388 = vpop.xlane.xlu0 %387
    %v389 = vsel %vm385, %v383, -inf
    %390 = vmax.xlane.f32.xlu0 %v389
    %v391 = vpop.xlane.xlu0 %390
    %v392 = vsub.f32 %v381, %v388
    %v393 = vsub.f32 %v383, %v391
    %v394 = vmul.f32 %v392, 1.442695
    %v395 = vpow.pop %v394
    %v396 = vmul.f32 %v393, 1.442695
    %v397 = vpow.pop %v396
    %v398 = vsel %vm385, %v395, 0.0
    %399 = vadd.xlane.f32.xlu0 %v398
    %v400 = vpop.xlane.xlu0 %399
    %v401 = vsel %vm385, %v397, 0.0
    %402 = vadd.xlane.f32.xlu0 %v401
    %v403 = vpop.xlane.xlu0 %402
    %v404 = vrcp.pop %v400
    %v405 = vrcp.pop %v403
    %v406 = vmul.f32 %v395, %v404
    %v407 = vmul.f32 %v397, %v405
    %v408 = vpack.c.bf16 %v407, %v406
    %409 = vrot.lane.b32.xlu0 %v361, 64
    %v410 = vpop.permute.xlu0 %409
    %v413 = vsel %vm385, %v408, 0
    %415 = vmatpush.bf16.msra.mxu0 0
    %416 = vmatpush.bf16.msra.mxu0 0
    %417 = vmatpush.bf16.msra.mxu0 0
    %418 = vmatpush.bf16.msra.mxu0 0
    %419 = vmatpush.bf16.msra.mxu0 0
    %420 = vmatpush.bf16.msra.mxu0 0
    %421 = vmatpush.bf16.msra.mxu0 0
    %422 = vmatpush.bf16.msra.mxu0 %v410
    %423 = vmatmul.bf16.gmra.mxu0 %v413
    %v424 = vpop.f32.mrf.mxu0
    %v425 = vadd.f32 0.0, %v424
    %v426 = vpop.f32.mrf.mxu0
    %v427 = vadd.f32 0.0, %v426
    %428 = vdwg.mxu0
    %429 = vrot.lane.b32.xlu0 %v361, 120
    %v430 = vpop.permute.xlu0 %429
    %431 = vrot.lane.b32.xlu0 %v361, 88
    %v432 = vpop.permute.xlu0 %431
    %v434 = vsel %vm364, %v430, 0
    %v437 = vsel %vm364, %v432, 0
    %439 = vmatpush.bf16.xpose.msra.mxu0 0
    %440 = vmatpush.bf16.xpose.msra.mxu0 0
    %441 = vmatpush.bf16.xpose.msra.mxu0 0
    %442 = vmatpush.bf16.xpose.msra.mxu0 0
    %443 = vmatpush.bf16.xpose.msra.mxu0 0
    %444 = vmatpush.bf16.xpose.msra.mxu0 0
    %445 = vmatpush.bf16.xpose.msra.mxu0 0
    %446 = vmatpush.bf16.xpose.msra.mxu0 %v437
    %447 = vmatmul.bf16.gmra.mxu0 %v434
    %v448 = vpop.f32.mrf.mxu0
    %v449 = vadd.f32 %v256, %v448
    %v450 = vpop.f32.mrf.mxu0
    %v451 = vadd.f32 %v257, %v450
    %452 = vdwg.mxu0
    %v453 = vsel %vm385, %v449, -inf
    %454 = vmax.xlane.f32.xlu0 %v453
    %v455 = vpop.xlane.xlu0 %454
    %v456 = vsel %vm385, %v451, -inf
    %457 = vmax.xlane.f32.xlu0 %v456
    %v458 = vpop.xlane.xlu0 %457
    %v459 = vsub.f32 %v449, %v455
    %v460 = vsub.f32 %v451, %v458
    %v461 = vmul.f32 %v459, 1.442695
    %v462 = vpow.pop %v461
    %v463 = vmul.f32 %v460, 1.442695
    %v464 = vpow.pop %v463
    %v465 = vsel %vm385, %v462, 0.0
    %466 = vadd.xlane.f32.xlu0 %v465
    %v467 = vpop.xlane.xlu0 %466
    %v468 = vsel %vm385, %v464, 0.0
    %469 = vadd.xlane.f32.xlu0 %v468
    %v470 = vpop.xlane.xlu0 %469
    %v471 = vrcp.pop %v467
    %v472 = vrcp.pop %v470
    %v473 = vmul.f32 %v462, %v471
    %v474 = vmul.f32 %v464, %v472
    %v475 = vpack.c.bf16 %v474, %v473
    %476 = vrot.lane.b32.xlu0 %v361, 56
    %v477 = vpop.permute.xlu0 %476
    %v480 = vsel %vm385, %v475, 0
    %482 = vmatpush.bf16.msra.mxu0 0
    %483 = vmatpush.bf16.msra.mxu0 0
    %484 = vmatpush.bf16.msra.mxu0 0
    %485 = vmatpush.bf16.msra.mxu0 0
    %486 = vmatpush.bf16.msra.mxu0 0
    %487 = vmatpush.bf16.msra.mxu0 0
    %488 = vmatpush.bf16.msra.mxu0 0
    %489 = vmatpush.bf16.msra.mxu0 %v477
    %490 = vmatmul.bf16.gmra.mxu0 %v480
    %v491 = vpop.f32.mrf.mxu0
    %v492 = vadd.f32 0.0, %v491
    %v493 = vpop.f32.mrf.mxu0
    %v494 = vadd.f32 0.0, %v493
    %495 = vdwg.mxu0
    %496 = vrot.lane.b32.xlu0 %v361, 112
    %v497 = vpop.permute.xlu0 %496
    %498 = vrot.lane.b32.xlu0 %v361, 80
    %v499 = vpop.permute.xlu0 %498
    %v501 = vsel %vm364, %v497, 0
    %v504 = vsel %vm364, %v499, 0
    %506 = vmatpush.bf16.xpose.msra.mxu0 0
    %507 = vmatpush.bf16.xpose.msra.mxu0 0
    %508 = vmatpush.bf16.xpose.msra.mxu0 0
    %509 = vmatpush.bf16.xpose.msra.mxu0 0
    %510 = vmatpush.bf16.xpose.msra.mxu0 0
    %511 = vmatpush.bf16.xpose.msra.mxu0 0
    %512 = vmatpush.bf16.xpose.msra.mxu0 0
    %513 = vmatpush.bf16.xpose.msra.mxu0 %v504
    %514 = vmatmul.bf16.gmra.mxu0 %v501
    %v515 = vpop.f32.mrf.mxu0
    %v516 = vadd.f32 %v256, %v515
    %v517 = vpop.f32.mrf.mxu0
    %v518 = vadd.f32 %v257, %v517
    %519 = vdwg.mxu0
    %v520 = vsel %vm385, %v516, -inf
    %521 = vmax.xlane.f32.xlu0 %v520
    %v522 = vpop.xlane.xlu0 %521
    %v523 = vsel %vm385, %v518, -inf
    %524 = vmax.xlane.f32.xlu0 %v523
    %v525 = vpop.xlane.xlu0 %524
    %v526 = vsub.f32 %v516, %v522
    %v527 = vsub.f32 %v518, %v525
    %v528 = vmul.f32 %v526, 1.442695
    %v529 = vpow.pop %v528
    %v530 = vmul.f32 %v527, 1.442695
    %v531 = vpow.pop %v530
    %v532 = vsel %vm385, %v529, 0.0
    %533 = vadd.xlane.f32.xlu0 %v532
    %v534 = vpop.xlane.xlu0 %533
    %v535 = vsel %vm385, %v531, 0.0
    %536 = vadd.xlane.f32.xlu0 %v535
    %v537 = vpop.xlane.xlu0 %536
    %v538 = vrcp.pop %v534
    %v539 = vrcp.pop %v537
    %v540 = vmul.f32 %v529, %v538
    %v541 = vmul.f32 %v531, %v539
    %v542 = vpack.c.bf16 %v541, %v540
    %543 = vrot.lane.b32.xlu0 %v361, 48
    %v544 = vpop.permute.xlu0 %543
    %v547 = vsel %vm385, %v542, 0
    %549 = vmatpush.bf16.msra.mxu0 0
    %550 = vmatpush.bf16.msra.mxu0 0
    %551 = vmatpush.bf16.msra.mxu0 0
    %552 = vmatpush.bf16.msra.mxu0 0
    %553 = vmatpush.bf16.msra.mxu0 0
    %554 = vmatpush.bf16.msra.mxu0 0
    %555 = vmatpush.bf16.msra.mxu0 0
    %556 = vmatpush.bf16.msra.mxu0 %v544
    %557 = vmatmul.bf16.gmra.mxu0 %v547
    %v558 = vpop.f32.mrf.mxu0
    %v559 = vadd.f32 0.0, %v558
    %v560 = vpop.f32.mrf.mxu0
    %v561 = vadd.f32 0.0, %v560
    %562 = vdwg.mxu0
    %563 = vrot.lane.b32.xlu0 %v361, 104
    %v564 = vpop.permute.xlu0 %563
    %565 = vrot.lane.b32.xlu0 %v361, 72
    %v566 = vpop.permute.xlu0 %565
    %v568 = vsel %vm364, %v564, 0
    %v571 = vsel %vm364, %v566, 0
    %573 = vmatpush.bf16.xpose.msra.mxu0 0
    %574 = vmatpush.bf16.xpose.msra.mxu0 0
    %575 = vmatpush.bf16.xpose.msra.mxu0 0
    %576 = vmatpush.bf16.xpose.msra.mxu0 0
    %577 = vmatpush.bf16.xpose.msra.mxu0 0
    %578 = vmatpush.bf16.xpose.msra.mxu0 0
    %579 = vmatpush.bf16.xpose.msra.mxu0 0
    %580 = vmatpush.bf16.xpose.msra.mxu0 %v571
    %581 = vmatmul.bf16.gmra.mxu0 %v568
    %v582 = vpop.f32.mrf.mxu0
    %v583 = vadd.f32 %v256, %v582
    %v584 = vpop.f32.mrf.mxu0
    %v585 = vadd.f32 %v257, %v584
    %586 = vdwg.mxu0
    %v587 = vsel %vm385, %v583, -inf
    %588 = vmax.xlane.f32.xlu0 %v587
    %v589 = vpop.xlane.xlu0 %588
    %v590 = vsel %vm385, %v585, -inf
    %591 = vmax.xlane.f32.xlu0 %v590
    %v592 = vpop.xlane.xlu0 %591
    %v593 = vsub.f32 %v583, %v589
    %v594 = vsub.f32 %v585, %v592
    %v595 = vmul.f32 %v593, 1.442695
    %v596 = vpow.pop %v595
    %v597 = vmul.f32 %v594, 1.442695
    %v598 = vpow.pop %v597
    %v599 = vsel %vm385, %v596, 0.0
    %600 = vadd.xlane.f32.xlu0 %v599
    %v601 = vpop.xlane.xlu0 %600
    %v602 = vsel %vm385, %v598, 0.0
    %603 = vadd.xlane.f32.xlu0 %v602
    %v604 = vpop.xlane.xlu0 %603
    %v605 = vrcp.pop %v601
    %v606 = vrcp.pop %v604
    %v607 = vmul.f32 %v596, %v605
    %v608 = vmul.f32 %v598, %v606
    %v609 = vpack.c.bf16 %v608, %v607
    %610 = vrot.lane.b32.xlu0 %v361, 40
    %v611 = vpop.permute.xlu0 %610
    %v614 = vsel %vm385, %v609, 0
    %616 = vmatpush.bf16.msra.mxu0 0
    %617 = vmatpush.bf16.msra.mxu0 0
    %618 = vmatpush.bf16.msra.mxu0 0
    %619 = vmatpush.bf16.msra.mxu0 0
    %620 = vmatpush.bf16.msra.mxu0 0
    %621 = vmatpush.bf16.msra.mxu0 0
    %622 = vmatpush.bf16.msra.mxu0 0
    %623 = vmatpush.bf16.msra.mxu0 %v611
    %624 = vmatmul.bf16.gmra.mxu0 %v614
    %v625 = vpop.f32.mrf.mxu0
    %v626 = vadd.f32 0.0, %v625
    %v627 = vpop.f32.mrf.mxu0
    %v628 = vadd.f32 0.0, %v627
    %629 = vdwg.mxu0
    %632 = vrot.lane.b32.xlu0 %v492, 8
    %v633 = vpop.permute.xlu0 %632
    %634 = vrot.lane.b32.xlu0 %v494, 8
    %v635 = vpop.permute.xlu0 %634
    %640 = vrot.lane.b32.xlu0 %v559, 16
    %v641 = vpop.permute.xlu0 %640
    %642 = vrot.lane.b32.xlu0 %v561, 16
    %v643 = vpop.permute.xlu0 %642
    %648 = vrot.lane.b32.xlu0 %v626, 24
    %v649 = vpop.permute.xlu0 %648
    %650 = vrot.lane.b32.xlu0 %v628, 24
    %v651 = vpop.permute.xlu0 %650
    %v654 = vsel %vm364, %v425, %v633
    %v655 = vsel %vm364, %v427, %v635
    %v656 = vsel %vm385, %v654, %v641
    %v657 = vsel %vm385, %v655, %v643
    %vm658 = vcmask 195584
    %v659 = vsel %vm658, %v656, %v649
    %v660 = vsel %vm658, %v657, %v651
    %v661 = vpack.c.bf16 %v660, %v659
    %v662 = vld [vmem:[#allocation5 + $0x80] sm:$0xf]
    %v663 = vld [vmem:[#allocation5 + $0x84] sm:$0xf]
    %v664 = vld [vmem:[#allocation5 + $0x88] sm:$0xf]
    %v665 = vld [vmem:[#allocation5 + $0x8c] sm:$0xf]
    %v666 = vld [vmem:[#allocation3 + $0xb0] sm:$0x1]
    %v667 = vperm.slane %v666, 0
    %v672 = vunpack.c.l.b16 %v662
    %v673 = vunpack.c.l.b16 %v663
    %v674 = vunpack.c.l.b16 %v664
    %v675 = vunpack.c.l.b16 %v665
    %v676 = vpack.c.b16 %v673, %v672
    %v677 = vpack.c.b16 %v675, %v674
    %v681 = vsel %vm109, %v661, 0
    %683 = vmatpush.bf16.msra.mxu0 0
    %684 = vmatpush.bf16.msra.mxu0 0
    %685 = vmatpush.bf16.msra.mxu0 0
    %686 = vmatpush.bf16.msra.mxu0 0
    %687 = vmatpush.bf16.msra.mxu0 0
    %688 = vmatpush.bf16.msra.mxu0 0
    %689 = vmatpush.bf16.msra.mxu0 %v677
    %690 = vmatpush.bf16.msra.mxu0 %v676
    %691 = vmatmul.bf16.gmra.mxu0 %v681
    %v692 = vpop.f32.mrf.mxu0
    %v693 = vadd.f32 %v667, %v692
    %v694 = vpop.f32.mrf.mxu0
    %v695 = vadd.f32 %v667, %v694
    %696 = vdwg.mxu0
    %v697 = vadd.f32 %v254, %v693
    %v698 = vadd.f32 %v255, %v695
    %v699 = vld [vmem:[#allocation3 + $0x88] sm:$0x1]
    %v700 = vld [vmem:[#allocation3 + $0x90] sm:$0x1]
    %v701 = vsel %vm109, %v697, 0.0
    %702 = vadd.xlane.f32.xlu0 %v701
    %v703 = vpop.xlane.xlu0 %702
    %v704 = vsel %vm109, %v698, 0.0
    %705 = vadd.xlane.f32.xlu0 %v704
    %v706 = vpop.xlane.xlu0 %705
    %v707 = vmul.f32 %v703, %v274
    %v708 = vmul.f32 %v706, %v274
    %v709 = vsub.f32 %v697, %v707
    %v710 = vsub.f32 %v698, %v708
    %v711 = vmul.f32 %v709, %v709
    %v712 = vmul.f32 %v710, %v710
    %v713 = vsel %vm109, %v711, 0.0
    %714 = vadd.xlane.f32.xlu0 %v713
    %v715 = vpop.xlane.xlu0 %714
    %v716 = vsel %vm109, %v712, 0.0
    %717 = vadd.xlane.f32.xlu0 %v716
    %v718 = vpop.xlane.xlu0 %717
    %v719 = vmul.f32 %v715, %v274
    %v720 = vmul.f32 %v718, %v274
    %v721 = vadd.f32 %v719, 1e-05
    %v722 = vadd.f32 %v720, 1e-05
    %v723 = vrsqrt.pop %v721
    %v724 = vmul.f32 %v723, %v721
    %v725 = vmul.f32 %v724, %v723
    %v726 = vmul.f32 0.5, %v725
    %v727 = vsub.f32 1.5, %v726
    %v728 = vmul.f32 %v723, %v727
    %vm729 = vweird.f32 %v721
    %vm730 = vweird.f32 %v723
    %vm731 = vmor %vm729, %vm730
    %v732 = vsel %vm731, %v723, %v728
    %v733 = vrsqrt.pop %v722
    %v734 = vmul.f32 %v733, %v722
    %v735 = vmul.f32 %v734, %v733
    %v736 = vmul.f32 0.5, %v735
    %v737 = vsub.f32 1.5, %v736
    %v738 = vmul.f32 %v733, %v737
    %vm739 = vweird.f32 %v722
    %vm740 = vweird.f32 %v733
    %vm741 = vmor %vm739, %vm740
    %v742 = vsel %vm741, %v733, %v738
    %v743 = vmul.f32 %v709, %v732
    %v744 = vmul.f32 %v710, %v742
    %v745 = vperm.slane %v699, 0
    %v746 = vmul.f32 %v743, %v745
    %v747 = vmul.f32 %v744, %v745
    %v748 = vperm.slane %v700, 0
    %v749 = vadd.f32 %v746, %v748
    %v750 = vadd.f32 %v747, %v748
    %v751 = vpack.c.bf16 %v750, %v749
    %v752 = vld [vmem:[#allocation5 + $0x90] sm:$0xf]
    %v753 = vld [vmem:[#allocation5 + $0x94] sm:$0xf]
    %v754 = vld [vmem:[#allocation5 + $0x98] sm:$0xf]
    %v755 = vld [vmem:[#allocation5 + $0x9c] sm:$0xf]
    %v756 = vld [vmem:[#allocation3 + $0xb8] sm:$0x1]
    %v757 = vperm.slane %v756, 0
    %v762 = vunpack.c.l.b16 %v752
    %v763 = vunpack.c.l.b16 %v753
    %v764 = vunpack.c.l.b16 %v754
    %v765 = vunpack.c.l.b16 %v755
    %v766 = vpack.c.b16 %v763, %v762
    %v767 = vpack.c.b16 %v765, %v764
    %v771 = vsel %vm109, %v751, 0
    %773 = vmatpush.bf16.msra.mxu0 0
    %774 = vmatpush.bf16.msra.mxu0 0
    %775 = vmatpush.bf16.msra.mxu0 0
    %776 = vmatpush.bf16.msra.mxu0 0
    %777 = vmatpush.bf16.msra.mxu0 0
    %778 = vmatpush.bf16.msra.mxu0 0
    %779 = vmatpush.bf16.msra.mxu0 %v767
    %780 = vmatpush.bf16.msra.mxu0 %v766
    %781 = vmatmul.bf16.gmra.mxu0 %v771
    %v782 = vpop.f32.mrf.mxu0
    %v783 = vadd.f32 %v757, %v782
    %v784 = vpop.f32.mrf.mxu0
    %v785 = vadd.f32 %v757, %v784
    %786 = vdwg.mxu0
    %v787 = vpack.c.bf16 %v223, %v223
    %v788 = vld [vmem:[#allocation5 + $0xa0] sm:$0xf]
    %v789 = vld [vmem:[#allocation5 + $0xa4] sm:$0xf]
    %v790 = vld [vmem:[#allocation5 + $0xa8] sm:$0xf]
    %v791 = vld [vmem:[#allocation5 + $0xac] sm:$0xf]
    %v792 = vld [vmem:[#allocation3 + $0xc0] sm:$0x1]
    %v793 = vperm.slane %v792, 0
    %v798 = vunpack.c.l.b16 %v788
    %v799 = vunpack.c.l.b16 %v789
    %v800 = vunpack.c.l.b16 %v790
    %v801 = vunpack.c.l.b16 %v791
    %v802 = vpack.c.b16 %v799, %v798
    %v803 = vpack.c.b16 %v801, %v800
    %v807 = vsel %vm109, %v787, 0
    %809 = vmatpush.bf16.msra.mxu0 0
    %810 = vmatpush.bf16.msra.mxu0 0
    %811 = vmatpush.bf16.msra.mxu0 0
    %812 = vmatpush.bf16.msra.mxu0 0
    %813 = vmatpush.bf16.msra.mxu0 0
    %814 = vmatpush.bf16.msra.mxu0 0
    %815 = vmatpush.bf16.msra.mxu0 %v803
    %816 = vmatpush.bf16.msra.mxu0 %v802
    %817 = vmatmul.bf16.gmra.mxu0 %v807
    %v818 = vpop.f32.mrf.mxu0
    %v819 = vadd.f32 %v793, %v818
    %v820 = vpop.f32.mrf.mxu0
    %821 = vdwg.mxu0
    %v822 = vpack.c.bf16 %v783, %v783
    %v823 = vpack.c.bf16 %v785, %v785
    %v824 = vpack.c.bf16 %v819, %v819
    %v827 = vunpack.c.l.b16 %v822
    %v828 = vunpack.c.l.b16 %v823
    %v829 = vpack.c.b16 %v828, %v827
    %v831 = vsel %vm364, %v829, 0
    %v834 = vsel %vm364, %v824, 0
    %836 = vmatpush.bf16.xpose.msra.mxu0 0
    %837 = vmatpush.bf16.xpose.msra.mxu0 0
    %838 = vmatpush.bf16.xpose.msra.mxu0 0
    %839 = vmatpush.bf16.xpose.msra.mxu0 0
    %840 = vmatpush.bf16.xpose.msra.mxu0 0
    %841 = vmatpush.bf16.xpose.msra.mxu0 0
    %842 = vmatpush.bf16.xpose.msra.mxu0 0
    %843 = vmatpush.bf16.xpose.msra.mxu0 %v834
    %844 = vmatmul.bf16.gmra.mxu0 %v831
    %v845 = vpop.f32.mrf.mxu0
    %v846 = vadd.f32 %v258, %v845
    %v847 = vpop.f32.mrf.mxu0
    %v848 = vadd.f32 %v259, %v847
    %849 = vdwg.mxu0
    %vm850 = vcmask 48128
    %v851 = vsel %vm850, %v846, -inf
    %852 = vmax.xlane.f32.xlu0 %v851
    %v853 = vpop.xlane.xlu0 %852
    %v854 = vsel %vm850, %v848, -inf
    %855 = vmax.xlane.f32.xlu0 %v854
    %v856 = vpop.xlane.xlu0 %855
    %v857 = vsub.f32 %v846, %v853
    %v858 = vsub.f32 %v848, %v856
    %v859 = vmul.f32 %v857, 1.442695
    %v860 = vpow.pop %v859
    %v861 = vmul.f32 %v858, 1.442695
    %v862 = vpow.pop %v861
    %v863 = vsel %vm850, %v860, 0.0
    %864 = vadd.xlane.f32.xlu0 %v863
    %v865 = vpop.xlane.xlu0 %864
    %v866 = vsel %vm850, %v862, 0.0
    %867 = vadd.xlane.f32.xlu0 %v866
    %v868 = vpop.xlane.xlu0 %867
    %v869 = vrcp.pop %v865
    %v870 = vrcp.pop %v868
    %v871 = vmul.f32 %v860, %v869
    %v872 = vmul.f32 %v862, %v870
    %v873 = vpack.c.bf16 %v872, %v871
    %v875 = vunpack.c.l.b16 %v824
    %v876 = vpack.c.b16 %v875, %v875
    %877 = vrot.lane.b32.xlu0 %v876, 96
    %v878 = vpop.permute.xlu0 %877
    %v880 = vsel %vm850, %v873, 0
    %vm882 = vcmask 1042432
    %v884 = vsel %vm882, %v878, 0
    %886 = vmatpush.bf16.msra.mxu0 0
    %887 = vmatpush.bf16.msra.mxu0 0
    %888 = vmatpush.bf16.msra.mxu0 0
    %889 = vmatpush.bf16.msra.mxu0 0
    %890 = vmatpush.bf16.msra.mxu0 0
    %891 = vmatpush.bf16.msra.mxu0 0
    %892 = vmatpush.bf16.msra.mxu0 0
    %893 = vmatpush.bf16.msra.mxu0 %v884
    %894 = vmatmul.bf16.gmra.mxu0 %v880
    %v895 = vpop.f32.mrf.mxu0
    %v896 = vadd.f32 0.0, %v895
    %v897 = vpop.f32.mrf.mxu0
    %v898 = vadd.f32 0.0, %v897
    %899 = vdwg.mxu0
    %900 = vrot.lane.b32.xlu0 %v829, 120
    %v901 = vpop.permute.xlu0 %900
    %902 = vrot.lane.b32.xlu0 %v876, 120
    %v903 = vpop.permute.xlu0 %902
    %v905 = vsel %vm364, %v901, 0
    %v908 = vsel %vm364, %v903, 0
    %910 = vmatpush.bf16.xpose.msra.mxu0 0
    %911 = vmatpush.bf16.xpose.msra.mxu0 0
    %912 = vmatpush.bf16.xpose.msra.mxu0 0
    %913 = vmatpush.bf16.xpose.msra.mxu0 0
    %914 = vmatpush.bf16.xpose.msra.mxu0 0
    %915 = vmatpush.bf16.xpose.msra.mxu0 0
    %916 = vmatpush.bf16.xpose.msra.mxu0 0
    %917 = vmatpush.bf16.xpose.msra.mxu0 %v908
    %918 = vmatmul.bf16.gmra.mxu0 %v905
    %v919 = vpop.f32.mrf.mxu0
    %v920 = vadd.f32 %v258, %v919
    %v921 = vpop.f32.mrf.mxu0
    %v922 = vadd.f32 %v259, %v921
    %923 = vdwg.mxu0
    %v924 = vsel %vm850, %v920, -inf
    %925 = vmax.xlane.f32.xlu0 %v924
    %v926 = vpop.xlane.xlu0 %925
    %v927 = vsel %vm850, %v922, -inf
    %928 = vmax.xlane.f32.xlu0 %v927
    %v929 = vpop.xlane.xlu0 %928
    %v930 = vsub.f32 %v920, %v926
    %v931 = vsub.f32 %v922, %v929
    %v932 = vmul.f32 %v930, 1.442695
    %v933 = vpow.pop %v932
    %v934 = vmul.f32 %v931, 1.442695
    %v935 = vpow.pop %v934
    %v936 = vsel %vm850, %v933, 0.0
    %937 = vadd.xlane.f32.xlu0 %v936
    %v938 = vpop.xlane.xlu0 %937
    %v939 = vsel %vm850, %v935, 0.0
    %940 = vadd.xlane.f32.xlu0 %v939
    %v941 = vpop.xlane.xlu0 %940
    %v942 = vrcp.pop %v938
    %v943 = vrcp.pop %v941
    %v944 = vmul.f32 %v933, %v942
    %v945 = vmul.f32 %v935, %v943
    %v946 = vpack.c.bf16 %v945, %v944
    %947 = vrot.lane.b32.xlu0 %v876, 88
    %v948 = vpop.permute.xlu0 %947
    %v950 = vsel %vm850, %v946, 0
    %v953 = vsel %vm882, %v948, 0
    %955 = vmatpush.bf16.msra.mxu0 0
    %956 = vmatpush.bf16.msra.mxu0 0
    %957 = vmatpush.bf16.msra.mxu0 0
    %958 = vmatpush.bf16.msra.mxu0 0
    %959 = vmatpush.bf16.msra.mxu0 0
    %960 = vmatpush.bf16.msra.mxu0 0
    %961 = vmatpush.bf16.msra.mxu0 0
    %962 = vmatpush.bf16.msra.mxu0 %v953
    %963 = vmatmul.bf16.gmra.mxu0 %v950
    %v964 = vpop.f32.mrf.mxu0
    %v965 = vadd.f32 0.0, %v964
    %v966 = vpop.f32.mrf.mxu0
    %v967 = vadd.f32 0.0, %v966
    %968 = vdwg.mxu0
    %969 = vrot.lane.b32.xlu0 %v829, 112
    %v970 = vpop.permute.xlu0 %969
    %971 = vrot.lane.b32.xlu0 %v876, 112
    %v972 = vpop.permute.xlu0 %971
    %v974 = vsel %vm364, %v970, 0
    %v977 = vsel %vm364, %v972, 0
    %979 = vmatpush.bf16.xpose.msra.mxu0 0
    %980 = vmatpush.bf16.xpose.msra.mxu0 0
    %981 = vmatpush.bf16.xpose.msra.mxu0 0
    %982 = vmatpush.bf16.xpose.msra.mxu0 0
    %983 = vmatpush.bf16.xpose.msra.mxu0 0
    %984 = vmatpush.bf16.xpose.msra.mxu0 0
    %985 = vmatpush.bf16.xpose.msra.mxu0 0
    %986 = vmatpush.bf16.xpose.msra.mxu0 %v977
    %987 = vmatmul.bf16.gmra.mxu0 %v974
    %v988 = vpop.f32.mrf.mxu0
    %v989 = vadd.f32 %v258, %v988
    %v990 = vpop.f32.mrf.mxu0
    %v991 = vadd.f32 %v259, %v990
    %992 = vdwg.mxu0
    %v993 = vsel %vm850, %v989, -inf
    %994 = vmax.xlane.f32.xlu0 %v993
    %v995 = vpop.xlane.xlu0 %994
    %v996 = vsel %vm850, %v991, -inf
    %997 = vmax.xlane.f32.xlu0 %v996
    %v998 = vpop.xlane.xlu0 %997
    %v999 = vsub.f32 %v989, %v995
    %v1000 = vsub.f32 %v991, %v998
    %v1001 = vmul.f32 %v999, 1.442695
    %v1002 = vpow.pop %v1001
    %v1003 = vmul.f32 %v1000, 1.442695
    %v1004 = vpow.pop %v1003
    %v1005 = vsel %vm850, %v1002, 0.0
    %1006 = vadd.xlane.f32.xlu0 %v1005
    %v1007 = vpop.xlane.xlu0 %1006
    %v1008 = vsel %vm850, %v1004, 0.0
    %1009 = vadd.xlane.f32.xlu0 %v1008
    %v1010 = vpop.xlane.xlu0 %1009
    %v1011 = vrcp.pop %v1007
    %v1012 = vrcp.pop %v1010
    %v1013 = vmul.f32 %v1002, %v1011
    %v1014 = vmul.f32 %v1004, %v1012
    %v1015 = vpack.c.bf16 %v1014, %v1013
    %1016 = vrot.lane.b32.xlu0 %v876, 80
    %v1017 = vpop.permute.xlu0 %1016
    %v1019 = vsel %vm850, %v1015, 0
    %v1022 = vsel %vm882, %v1017, 0
    %1024 = vmatpush.bf16.msra.mxu0 0
    %1025 = vmatpush.bf16.msra.mxu0 0
    %1026 = vmatpush.bf16.msra.mxu0 0
    %1027 = vmatpush.bf16.msra.mxu0 0
    %1028 = vmatpush.bf16.msra.mxu0 0
    %1029 = vmatpush.bf16.msra.mxu0 0
    %1030 = vmatpush.bf16.msra.mxu0 0
    %1031 = vmatpush.bf16.msra.mxu0 %v1022
    %1032 = vmatmul.bf16.gmra.mxu0 %v1019
    %v1033 = vpop.f32.mrf.mxu0
    %v1034 = vadd.f32 0.0, %v1033
    %v1035 = vpop.f32.mrf.mxu0
    %v1036 = vadd.f32 0.0, %v1035
    %1037 = vdwg.mxu0
    %1038 = vrot.lane.b32.xlu0 %v829, 104
    %v1039 = vpop.permute.xlu0 %1038
    %1040 = vrot.lane.b32.xlu0 %v876, 104
    %v1041 = vpop.permute.xlu0 %1040
    %v1043 = vsel %vm364, %v1039, 0
    %v1046 = vsel %vm364, %v1041, 0
    %1048 = vmatpush.bf16.xpose.msra.mxu0 0
    %1049 = vmatpush.bf16.xpose.msra.mxu0 0
    %1050 = vmatpush.bf16.xpose.msra.mxu0 0
    %1051 = vmatpush.bf16.xpose.msra.mxu0 0
    %1052 = vmatpush.bf16.xpose.msra.mxu0 0
    %1053 = vmatpush.bf16.xpose.msra.mxu0 0
    %1054 = vmatpush.bf16.xpose.msra.mxu0 0
    %1055 = vmatpush.bf16.xpose.msra.mxu0 %v1046
    %1056 = vmatmul.bf16.gmra.mxu0 %v1043
    %v1057 = vpop.f32.mrf.mxu0
    %v1058 = vadd.f32 %v258, %v1057
    %v1059 = vpop.f32.mrf.mxu0
    %v1060 = vadd.f32 %v259, %v1059
    %1061 = vdwg.mxu0
    %v1062 = vsel %vm850, %v1058, -inf
    %1063 = vmax.xlane.f32.xlu0 %v1062
    %v1064 = vpop.xlane.xlu0 %1063
    %v1065 = vsel %vm850, %v1060, -inf
    %1066 = vmax.xlane.f32.xlu0 %v1065
    %v1067 = vpop.xlane.xlu0 %1066
    %v1068 = vsub.f32 %v1058, %v1064
    %v1069 = vsub.f32 %v1060, %v1067
    %v1070 = vmul.f32 %v1068, 1.442695
    %v1071 = vpow.pop %v1070
    %v1072 = vmul.f32 %v1069, 1.442695
    %v1073 = vpow.pop %v1072
    %v1074 = vsel %vm850, %v1071, 0.0
    %1075 = vadd.xlane.f32.xlu0 %v1074
    %v1076 = vpop.xlane.xlu0 %1075
    %v1077 = vsel %vm850, %v1073, 0.0
    %1078 = vadd.xlane.f32.xlu0 %v1077
    %v1079 = vpop.xlane.xlu0 %1078
    %v1080 = vrcp.pop %v1076
    %v1081 = vrcp.pop %v1079
    %v1082 = vmul.f32 %v1071, %v1080
    %v1083 = vmul.f32 %v1073, %v1081
    %v1084 = vpack.c.bf16 %v1083, %v1082
    %1085 = vrot.lane.b32.xlu0 %v876, 72
    %v1086 = vpop.permute.xlu0 %1085
    %v1088 = vsel %vm850, %v1084, 0
    %v1091 = vsel %vm882, %v1086, 0
    %1093 = vmatpush.bf16.msra.mxu0 0
    %1094 = vmatpush.bf16.msra.mxu0 0
    %1095 = vmatpush.bf16.msra.mxu0 0
    %1096 = vmatpush.bf16.msra.mxu0 0
    %1097 = vmatpush.bf16.msra.mxu0 0
    %1098 = vmatpush.bf16.msra.mxu0 0
    %1099 = vmatpush.bf16.msra.mxu0 0
    %1100 = vmatpush.bf16.msra.mxu0 %v1091
    %1101 = vmatmul.bf16.gmra.mxu0 %v1088
    %v1102 = vpop.f32.mrf.mxu0
    %v1103 = vadd.f32 0.0, %v1102
    %v1104 = vpop.f32.mrf.mxu0
    %v1105 = vadd.f32 0.0, %v1104
    %1106 = vdwg.mxu0
    %1109 = vrot.lane.b32.xlu0 %v965, 8
    %v1110 = vpop.permute.xlu0 %1109
    %1111 = vrot.lane.b32.xlu0 %v967, 8
    %v1112 = vpop.permute.xlu0 %1111
    %1117 = vrot.lane.b32.xlu0 %v1034, 16
    %v1118 = vpop.permute.xlu0 %1117
    %1119 = vrot.lane.b32.xlu0 %v1036, 16
    %v1120 = vpop.permute.xlu0 %1119
    %1125 = vrot.lane.b32.xlu0 %v1103, 24
    %v1126 = vpop.permute.xlu0 %1125
    %1127 = vrot.lane.b32.xlu0 %v1105, 24
    %v1128 = vpop.permute.xlu0 %1127
    %v1131 = vsel %vm364, %v896, %v1110
    %v1132 = vsel %vm364, %v898, %v1112
    %v1133 = vsel %vm385, %v1131, %v1118
    %v1134 = vsel %vm385, %v1132, %v1120
    %v1135 = vsel %vm658, %v1133, %v1126
    %v1136 = vsel %vm658, %v1134, %v1128
    %v1137 = vpack.c.bf16 %v1136, %v1135
    %v1138 = vld [vmem:[#allocation5 + $0xb0] sm:$0xf]
    %v1139 = vld [vmem:[#allocation5 + $0xb4] sm:$0xf]
    %v1140 = vld [vmem:[#allocation5 + $0xb8] sm:$0xf]
    %v1141 = vld [vmem:[#allocation5 + $0xbc] sm:$0xf]
    %v1142 = vld [vmem:[#allocation3 + $0xc8] sm:$0x1]
    %v1143 = vperm.slane %v1142, 0
    %v1148 = vunpack.c.l.b16 %v1138
    %v1149 = vunpack.c.l.b16 %v1139
    %v1150 = vunpack.c.l.b16 %v1140
    %v1151 = vunpack.c.l.b16 %v1141
    %v1152 = vpack.c.b16 %v1149, %v1148
    %v1153 = vpack.c.b16 %v1151, %v1150
    %v1157 = vsel %vm109, %v1137, 0
    %1159 = vmatpush.bf16.msra.mxu0 0
    %1160 = vmatpush.bf16.msra.mxu0 0
    %1161 = vmatpush.bf16.msra.mxu0 0
    %1162 = vmatpush.bf16.msra.mxu0 0
    %1163 = vmatpush.bf16.msra.mxu0 0
    %1164 = vmatpush.bf16.msra.mxu0 0
    %1165 = vmatpush.bf16.msra.mxu0 %v1153
    %1166 = vmatpush.bf16.msra.mxu0 %v1152
    %1167 = vmatmul.bf16.gmra.mxu0 %v1157
    %v1168 = vpop.f32.mrf.mxu0
    %v1169 = vadd.f32 %v1143, %v1168
    %v1170 = vpop.f32.mrf.mxu0
    %v1171 = vadd.f32 %v1143, %v1170
    %1172 = vdwg.mxu0
    %v1173 = vadd.f32 %v697, %v1169
    %v1174 = vadd.f32 %v698, %v1171
    %v1175 = vld [vmem:[#allocation3 + $0x98] sm:$0x1]
    %v1176 = vld [vmem:[#allocation3 + $0xa0] sm:$0x1]
    %v1177 = vsel %vm109, %v1173, 0.0
    %1178 = vadd.xlane.f32.xlu0 %v1177
    %v1179 = vpop.xlane.xlu0 %1178
    %v1180 = vsel %vm109, %v1174, 0.0
    %1181 = vadd.xlane.f32.xlu0 %v1180
    %v1182 = vpop.xlane.xlu0 %1181
    %v1183 = vmul.f32 %v1179, %v274
    %v1184 = vmul.f32 %v1182, %v274
    %v1185 = vsub.f32 %v1173, %v1183
    %v1186 = vsub.f32 %v1174, %v1184
    %v1187 = vmul.f32 %v1185, %v1185
    %v1188 = vmul.f32 %v1186, %v1186
    %v1189 = vsel %vm109, %v1187, 0.0
    %1190 = vadd.xlane.f32.xlu0 %v1189
    %v1191 = vpop.xlane.xlu0 %1190
    %v1192 = vsel %vm109, %v1188, 0.0
    %1193 = vadd.xlane.f32.xlu0 %v1192
    %v1194 = vpop.xlane.xlu0 %1193
    %v1195 = vmul.f32 %v1191, %v274
    %v1196 = vmul.f32 %v1194, %v274
    %v1197 = vadd.f32 %v1195, 1e-05
    %v1198 = vadd.f32 %v1196, 1e-05
    %v1199 = vrsqrt.pop %v1197
    %v1200 = vmul.f32 %v1199, %v1197
    %v1201 = vmul.f32 %v1200, %v1199
    %v1202 = vmul.f32 0.5, %v1201
    %v1203 = vsub.f32 1.5, %v1202
    %v1204 = vmul.f32 %v1199, %v1203
    %vm1205 = vweird.f32 %v1197
    %vm1206 = vweird.f32 %v1199
    %vm1207 = vmor %vm1205, %vm1206
    %v1208 = vsel %vm1207, %v1199, %v1204
    %v1209 = vrsqrt.pop %v1198
    %v1210 = vmul.f32 %v1209, %v1198
    %v1211 = vmul.f32 %v1210, %v1209
    %v1212 = vmul.f32 0.5, %v1211
    %v1213 = vsub.f32 1.5, %v1212
    %v1214 = vmul.f32 %v1209, %v1213
    %vm1215 = vweird.f32 %v1198
    %vm1216 = vweird.f32 %v1209
    %vm1217 = vmor %vm1215, %vm1216
    %v1218 = vsel %vm1217, %v1209, %v1214
    %v1219 = vmul.f32 %v1185, %v1208
    %v1220 = vmul.f32 %v1186, %v1218
    %v1221 = vperm.slane %v1175, 0
    %v1222 = vmul.f32 %v1219, %v1221
    %v1223 = vmul.f32 %v1220, %v1221
    %v1224 = vperm.slane %v1176, 0
    %v1225 = vadd.f32 %v1222, %v1224
    %v1226 = vadd.f32 %v1223, %v1224
    %v1227 = vpack.c.bf16 %v1226, %v1225
    %v1228 = vld [vmem:[#allocation5 + $0xc0] sm:$0xf]
    %v1229 = vld [vmem:[#allocation5 + $0xc4] sm:$0xf]
    %v1230 = vld [vmem:[#allocation5 + $0xc8] sm:$0xf]
    %v1231 = vld [vmem:[#allocation5 + $0xcc] sm:$0xf]
    %v1232 = vld [vmem:[#allocation3 + $0xd0] sm:$0x1]
    %v1233 = vperm.slane %v1232, 0
    %v1238 = vunpack.c.l.b16 %v1228
    %v1239 = vunpack.c.l.b16 %v1229
    %v1240 = vunpack.c.l.b16 %v1230
    %v1241 = vunpack.c.l.b16 %v1231
    %v1242 = vpack.c.b16 %v1239, %v1238
    %v1243 = vpack.c.b16 %v1241, %v1240
    %v1247 = vsel %vm109, %v1227, 0
    %1249 = vmatpush.bf16.msra.mxu0 0
    %1250 = vmatpush.bf16.msra.mxu0 0
    %1251 = vmatpush.bf16.msra.mxu0 0
    %1252 = vmatpush.bf16.msra.mxu0 0
    %1253 = vmatpush.bf16.msra.mxu0 0
    %1254 = vmatpush.bf16.msra.mxu0 0
    %1255 = vmatpush.bf16.msra.mxu0 %v1243
    %1256 = vmatpush.bf16.msra.mxu0 %v1242
    %1257 = vmatmul.bf16.gmra.mxu0 %v1247
    %v1258 = vpop.f32.mrf.mxu0
    %v1259 = vadd.f32 %v1233, %v1258
    %v1260 = vpop.f32.mrf.mxu0
    %v1261 = vadd.f32 %v1233, %v1260
    %1262 = vdwg.mxu0
    %v1263 = vmul.f32 %v1259, %v1259
    %v1264 = vmul.f32 %v1261, %v1261
    %v1265 = vmul.f32 %v1259, %v1263
    %v1266 = vmul.f32 %v1261, %v1264
    %v1267 = vmul.f32 %v1265, 0.044715
    %v1268 = vmul.f32 %v1266, 0.044715
    %v1269 = vadd.f32 %v1259, %v1267
    %v1270 = vadd.f32 %v1261, %v1268
    %v1271 = vmul.f32 %v1269, 0.7978846
    %v1272 = vmul.f32 %v1270, 0.7978846
    %v1273 = vtanh.pop %v1271
    %v1274 = vtanh.pop %v1272
    %v1275 = vadd.f32 %v1273, 1.0
    %v1276 = vadd.f32 %v1274, 1.0
    %v1277 = vmul.f32 %v1275, 0.5
    %v1278 = vmul.f32 %v1276, 0.5
    %v1279 = vmul.f32 %v1259, %v1277
    %v1280 = vmul.f32 %v1261, %v1278
    %v1281 = vpack.c.bf16 %v1280, %v1279
    %v1282 = vld [vmem:[#allocation5 + $0xd0] sm:$0xf]
    %v1283 = vld [vmem:[#allocation5 + $0xd4] sm:$0xf]
    %v1284 = vld [vmem:[#allocation5 + $0xd8] sm:$0xf]
    %v1285 = vld [vmem:[#allocation5 + $0xdc] sm:$0xf]
    %v1286 = vld [vmem:[#allocation5 + $0xe0] sm:$0xf]
    %v1287 = vld [vmem:[#allocation5 + $0xe4] sm:$0xf]
    %v1288 = vld [vmem:[#allocation5 + $0xe8] sm:$0xf]
    %v1289 = vld [vmem:[#allocation5 + $0xec] sm:$0xf]
    %v1290 = vld [vmem:[#allocation5 + $0xf0] sm:$0xf]
    %v1291 = vld [vmem:[#allocation5 + $0xf4] sm:$0xf]
    %v1292 = vld [vmem:[#allocation5 + $0xf8] sm:$0xf]
    %v1293 = vld [vmem:[#allocation5 + $0xfc] sm:$0xf]
    %v1294 = vld [vmem:[#allocation5 + $0x100] sm:$0xf]
    %v1295 = vld [vmem:[#allocation5 + $0x104] sm:$0xf]
    %v1296 = vld [vmem:[#allocation5 + $0x108] sm:$0xf]
    %v1297 = vld [vmem:[#allocation5 + $0x10c] sm:$0xf]
    %v1298 = vld [vmem:[#allocation3 + $0xd8] sm:$0x1]
    %v1299 = vperm.slane %v1298, 0
    %v1316 = vunpack.c.l.b16 %v1282
    %v1317 = vunpack.c.l.b16 %v1283
    %v1318 = vunpack.c.l.b16 %v1284
    %v1319 = vunpack.c.l.b16 %v1285
    %v1320 = vunpack.c.l.b16 %v1286
    %v1321 = vunpack.c.l.b16 %v1287
    %v1322 = vunpack.c.l.b16 %v1288
    %v1323 = vunpack.c.l.b16 %v1289
    %v1324 = vunpack.c.l.b16 %v1290
    %v1325 = vunpack.c.l.b16 %v1291
    %v1326 = vunpack.c.l.b16 %v1292
    %v1327 = vunpack.c.l.b16 %v1293
    %v1328 = vunpack.c.l.b16 %v1294
    %v1329 = vunpack.c.l.b16 %v1295
    %v1330 = vunpack.c.l.b16 %v1296
    %v1331 = vunpack.c.l.b16 %v1297
    %v1332 = vpack.c.b16 %v1317, %v1316
    %v1333 = vpack.c.b16 %v1319, %v1318
    %v1334 = vpack.c.b16 %v1321, %v1320
    %v1335 = vpack.c.b16 %v1323, %v1322
    %v1336 = vpack.c.b16 %v1325, %v1324
    %v1337 = vpack.c.b16 %v1327, %v1326
    %v1338 = vpack.c.b16 %v1329, %v1328
    %v1339 = vpack.c.b16 %v1331, %v1330
    %1348 = vmatpush.bf16.msra.mxu0 %v1339
    %1349 = vmatpush.bf16.msra.mxu0 %v1338
    %1350 = vmatpush.bf16.msra.mxu0 %v1337
    %1351 = vmatpush.bf16.msra.mxu0 %v1336
    %1352 = vmatpush.bf16.msra.mxu0 %v1335
    %1353 = vmatpush.bf16.msra.mxu0 %v1334
    %1354 = vmatpush.bf16.msra.mxu0 %v1333
    %1355 = vmatpush.bf16.msra.mxu0 %v1332
    %1356 = vmatmul.bf16.gmra.mxu0 %v1281
    %v1357 = vpop.f32.mrf.mxu0
    %v1358 = vadd.f32 %v1299, %v1357
    %v1359 = vpop.f32.mrf.mxu0
    %v1360 = vadd.f32 %v1299, %v1359
    %1361 = vdwg.mxu0
    %v1362 = vadd.f32 %v1173, %v1358
    %v1363 = vadd.f32 %v1174, %v1360
    %v1364 = vld [vmem:[#allocation3 + $0xe0] sm:$0x1]
    %v1365 = vld [vmem:[#allocation3 + $0xe8] sm:$0x1]
    %v1366 = vsel %vm109, %v1362, 0.0
    %1367 = vadd.xlane.f32.xlu0 %v1366
    %v1368 = vpop.xlane.xlu0 %1367
    %v1369 = vsel %vm109, %v1363, 0.0
    %1370 = vadd.xlane.f32.xlu0 %v1369
    %v1371 = vpop.xlane.xlu0 %1370
    %v1372 = vmul.f32 %v1368, %v274
    %v1373 = vmul.f32 %v1371, %v274
    %v1374 = vsub.f32 %v1362, %v1372
    %v1375 = vsub.f32 %v1363, %v1373
    %v1376 = vmul.f32 %v1374, %v1374
    %v1377 = vmul.f32 %v1375, %v1375
    %v1378 = vsel %vm109, %v1376, 0.0
    %1379 = vadd.xlane.f32.xlu0 %v1378
    %v1380 = vpop.xlane.xlu0 %1379
    %v1381 = vsel %vm109, %v1377, 0.0
    %1382 = vadd.xlane.f32.xlu0 %v1381
    %v1383 = vpop.xlane.xlu0 %1382
    %v1384 = vmul.f32 %v1380, %v274
    %v1385 = vmul.f32 %v1383, %v274
    %v1386 = vadd.f32 %v1384, 1e-05
    %v1387 = vadd.f32 %v1385, 1e-05
    %v1388 = vrsqrt.pop %v1386
    %v1389 = vmul.f32 %v1388, %v1386
    %v1390 = vmul.f32 %v1389, %v1388
    %v1391 = vmul.f32 0.5, %v1390
    %v1392 = vsub.f32 1.5, %v1391
    %v1393 = vmul.f32 %v1388, %v1392
    %vm1394 = vweird.f32 %v1386
    %vm1395 = vweird.f32 %v1388
    %vm1396 = vmor %vm1394, %vm1395
    %v1397 = vsel %vm1396, %v1388, %v1393
    %v1398 = vrsqrt.pop %v1387
    %v1399 = vmul.f32 %v1398, %v1387
    %v1400 = vmul.f32 %v1399, %v1398
    %v1401 = vmul.f32 0.5, %v1400
    %v1402 = vsub.f32 1.5, %v1401
    %v1403 = vmul.f32 %v1398, %v1402
    %vm1404 = vweird.f32 %v1387
    %vm1405 = vweird.f32 %v1398
    %vm1406 = vmor %vm1404, %vm1405
    %v1407 = vsel %vm1406, %v1398, %v1403
    %v1408 = vmul.f32 %v1374, %v1397
    %v1409 = vmul.f32 %v1375, %v1407
    %v1410 = vperm.slane %v1364, 0
    %v1411 = vmul.f32 %v1408, %v1410
    %v1412 = vmul.f32 %v1409, %v1410
    %v1413 = vperm.slane %v1365, 0
    %v1414 = vadd.f32 %v1411, %v1413
    %v1415 = vadd.f32 %v1412, %v1413
    %v1416 = vpack.c.bf16 %v1415, %v1414
    %v1417 = vld [vmem:[#allocation5 + $0x110] sm:$0xf]
    %v1418 = vld [vmem:[#allocation5 + $0x114] sm:$0xf]
    %v1419 = vld [vmem:[#allocation5 + $0x118] sm:$0xf]
    %v1420 = vld [vmem:[#allocation5 + $0x11c] sm:$0xf]
    %v1421 = vld [vmem:[#allocation3 + $0x110] sm:$0x1]
    %v1422 = vperm.slane %v1421, 0
    %v1427 = vunpack.c.l.b16 %v1417
    %v1428 = vunpack.c.l.b16 %v1418
    %v1429 = vunpack.c.l.b16 %v1419
    %v1430 = vunpack.c.l.b16 %v1420
    %v1431 = vpack.c.b16 %v1428, %v1427
    %v1432 = vpack.c.b16 %v1430, %v1429
    %v1436 = vsel %vm109, %v1416, 0
    %1438 = vmatpush.bf16.msra.mxu0 0
    %1439 = vmatpush.bf16.msra.mxu0 0
    %1440 = vmatpush.bf16.msra.mxu0 0
    %1441 = vmatpush.bf16.msra.mxu0 0
    %1442 = vmatpush.bf16.msra.mxu0 0
    %1443 = vmatpush.bf16.msra.mxu0 0
    %1444 = vmatpush.bf16.msra.mxu0 %v1432
    %1445 = vmatpush.bf16.msra.mxu0 %v1431
    %1446 = vmatmul.bf16.gmra.mxu0 %v1436
    %v1447 = vpop.f32.mrf.mxu0
    %v1448 = vadd.f32 %v1422, %v1447
    %v1449 = vpop.f32.mrf.mxu0
    %v1450 = vadd.f32 %v1422, %v1449
    %1451 = vdwg.mxu0
    %v1452 = vpack.c.bf16 %v1448, %v1448
    %v1453 = vpack.c.bf16 %v1450, %v1450
    %v1456 = vunpack.c.l.b16 %v1452
    %v1457 = vunpack.c.l.b16 %v1453
    %v1458 = vpack.c.b16 %v1457, %v1456
    %1459 = vrot.lane.b32.xlu0 %v1458, 96
    %v1460 = vpop.permute.xlu0 %1459
    %v1462 = vsel %vm364, %v1458, 0
    %v1465 = vsel %vm364, %v1460, 0
    %1467 = vmatpush.bf16.xpose.msra.mxu0 0
    %1468 = vmatpush.bf16.xpose.msra.mxu0 0
    %1469 = vmatpush.bf16.xpose.msra.mxu0 0
    %1470 = vmatpush.bf16.xpose.msra.mxu0 0
    %1471 = vmatpush.bf16.xpose.msra.mxu0 0
    %1472 = vmatpush.bf16.xpose.msra.mxu0 0
    %1473 = vmatpush.bf16.xpose.msra.mxu0 0
    %1474 = vmatpush.bf16.xpose.msra.mxu0 %v1465
    %1475 = vmatmul.bf16.gmra.mxu0 %v1462
    %v1476 = vpop.f32.mrf.mxu0
    %v1477 = vadd.f32 %v256, %v1476
    %v1478 = vpop.f32.mrf.mxu0
    %v1479 = vadd.f32 %v257, %v1478
    %1480 = vdwg.mxu0
    %v1481 = vsel %vm385, %v1477, -inf
    %1482 = vmax.xlane.f32.xlu0 %v1481
    %v1483 = vpop.xlane.xlu0 %1482
    %v1484 = vsel %vm385, %v1479, -inf
    %1485 = vmax.xlane.f32.xlu0 %v1484
    %v1486 = vpop.xlane.xlu0 %1485
    %v1487 = vsub.f32 %v1477, %v1483
    %v1488 = vsub.f32 %v1479, %v1486
    %v1489 = vmul.f32 %v1487, 1.442695
    %v1490 = vpow.pop %v1489
    %v1491 = vmul.f32 %v1488, 1.442695
    %v1492 = vpow.pop %v1491
    %v1493 = vsel %vm385, %v1490, 0.0
    %1494 = vadd.xlane.f32.xlu0 %v1493
    %v1495 = vpop.xlane.xlu0 %1494
    %v1496 = vsel %vm385, %v1492, 0.0
    %1497 = vadd.xlane.f32.xlu0 %v1496
    %v1498 = vpop.xlane.xlu0 %1497
    %v1499 = vrcp.pop %v1495
    %v1500 = vrcp.pop %v1498
    %v1501 = vmul.f32 %v1490, %v1499
    %v1502 = vmul.f32 %v1492, %v1500
    %v1503 = vpack.c.bf16 %v1502, %v1501
    %1504 = vrot.lane.b32.xlu0 %v1458, 64
    %v1505 = vpop.permute.xlu0 %1504
    %v1508 = vsel %vm385, %v1503, 0
    %1510 = vmatpush.bf16.msra.mxu0 0
    %1511 = vmatpush.bf16.msra.mxu0 0
    %1512 = vmatpush.bf16.msra.mxu0 0
    %1513 = vmatpush.bf16.msra.mxu0 0
    %1514 = vmatpush.bf16.msra.mxu0 0
    %1515 = vmatpush.bf16.msra.mxu0 0
    %1516 = vmatpush.bf16.msra.mxu0 0
    %1517 = vmatpush.bf16.msra.mxu0 %v1505
    %1518 = vmatmul.bf16.gmra.mxu0 %v1508
    %v1519 = vpop.f32.mrf.mxu0
    %v1520 = vadd.f32 0.0, %v1519
    %v1521 = vpop.f32.mrf.mxu0
    %v1522 = vadd.f32 0.0, %v1521
    %1523 = vdwg.mxu0
    %1524 = vrot.lane.b32.xlu0 %v1458, 120
    %v1525 = vpop.permute.xlu0 %1524
    %1526 = vrot.lane.b32.xlu0 %v1458, 88
    %v1527 = vpop.permute.xlu0 %1526
    %v1529 = vsel %vm364, %v1525, 0
    %v1532 = vsel %vm364, %v1527, 0
    %1534 = vmatpush.bf16.xpose.msra.mxu0 0
    %1535 = vmatpush.bf16.xpose.msra.mxu0 0
    %1536 = vmatpush.bf16.xpose.msra.mxu0 0
    %1537 = vmatpush.bf16.xpose.msra.mxu0 0
    %1538 = vmatpush.bf16.xpose.msra.mxu0 0
    %1539 = vmatpush.bf16.xpose.msra.mxu0 0
    %1540 = vmatpush.bf16.xpose.msra.mxu0 0
    %1541 = vmatpush.bf16.xpose.msra.mxu0 %v1532
    %1542 = vmatmul.bf16.gmra.mxu0 %v1529
    %v1543 = vpop.f32.mrf.mxu0
    %v1544 = vadd.f32 %v256, %v1543
    %v1545 = vpop.f32.mrf.mxu0
    %v1546 = vadd.f32 %v257, %v1545
    %1547 = vdwg.mxu0
    %v1548 = vsel %vm385, %v1544, -inf
    %1549 = vmax.xlane.f32.xlu0 %v1548
    %v1550 = vpop.xlane.xlu0 %1549
    %v1551 = vsel %vm385, %v1546, -inf
    %1552 = vmax.xlane.f32.xlu0 %v1551
    %v1553 = vpop.xlane.xlu0 %1552
    %v1554 = vsub.f32 %v1544, %v1550
    %v1555 = vsub.f32 %v1546, %v1553
    %v1556 = vmul.f32 %v1554, 1.442695
    %v1557 = vpow.pop %v1556
    %v1558 = vmul.f32 %v1555, 1.442695
    %v1559 = vpow.pop %v1558
    %v1560 = vsel %vm385, %v1557, 0.0
    %1561 = vadd.xlane.f32.xlu0 %v1560
    %v1562 = vpop.xlane.xlu0 %1561
    %v1563 = vsel %vm385, %v1559, 0.0
    %1564 = vadd.xlane.f32.xlu0 %v1563
    %v1565 = vpop.xlane.xlu0 %1564
    %v1566 = vrcp.pop %v1562
    %v1567 = vrcp.pop %v1565
    %v1568 = vmul.f32 %v1557, %v1566
    %v1569 = vmul.f32 %v1559, %v1567
    %v1570 = vpack.c.bf16 %v1569, %v1568
    %1571 = vrot.lane.b32.xlu0 %v1458, 56
    %v1572 = vpop.permute.xlu0 %1571
    %v1575 = vsel %vm385, %v1570, 0
    %1577 = vmatpush.bf16.msra.mxu0 0
    %1578 = vmatpush.bf16.msra.mxu0 0
    %1579 = vmatpush.bf16.msra.mxu0 0
    %1580 = vmatpush.bf16.msra.mxu0 0
    %1581 = vmatpush.bf16.msra.mxu0 0
    %1582 = vmatpush.bf16.msra.mxu0 0
    %1583 = vmatpush.bf16.msra.mxu0 0
    %1584 = vmatpush.bf16.msra.mxu0 %v1572
    %1585 = vmatmul.bf16.gmra.mxu0 %v1575
    %v1586 = vpop.f32.mrf.mxu0
    %v1587 = vadd.f32 0.0, %v1586
    %v1588 = vpop.f32.mrf.mxu0
    %v1589 = vadd.f32 0.0, %v1588
    %1590 = vdwg.mxu0
    %1591 = vrot.lane.b32.xlu0 %v1458, 112
    %v1592 = vpop.permute.xlu0 %1591
    %1593 = vrot.lane.b32.xlu0 %v1458, 80
    %v1594 = vpop.permute.xlu0 %1593
    %v1596 = vsel %vm364, %v1592, 0
    %v1599 = vsel %vm364, %v1594, 0
    %1601 = vmatpush.bf16.xpose.msra.mxu0 0
    %1602 = vmatpush.bf16.xpose.msra.mxu0 0
    %1603 = vmatpush.bf16.xpose.msra.mxu0 0
    %1604 = vmatpush.bf16.xpose.msra.mxu0 0
    %1605 = vmatpush.bf16.xpose.msra.mxu0 0
    %1606 = vmatpush.bf16.xpose.msra.mxu0 0
    %1607 = vmatpush.bf16.xpose.msra.mxu0 0
    %1608 = vmatpush.bf16.xpose.msra.mxu0 %v1599
    %1609 = vmatmul.bf16.gmra.mxu0 %v1596
    %v1610 = vpop.f32.mrf.mxu0
    %v1611 = vadd.f32 %v256, %v1610
    %v1612 = vpop.f32.mrf.mxu0
    %v1613 = vadd.f32 %v257, %v1612
    %1614 = vdwg.mxu0
    %v1615 = vsel %vm385, %v1611, -inf
    %1616 = vmax.xlane.f32.xlu0 %v1615
    %v1617 = vpop.xlane.xlu0 %1616
    %v1618 = vsel %vm385, %v1613, -inf
    %1619 = vmax.xlane.f32.xlu0 %v1618
    %v1620 = vpop.xlane.xlu0 %1619
    %v1621 = vsub.f32 %v1611, %v1617
    %v1622 = vsub.f32 %v1613, %v1620
    %v1623 = vmul.f32 %v1621, 1.442695
    %v1624 = vpow.pop %v1623
    %v1625 = vmul.f32 %v1622, 1.442695
    %v1626 = vpow.pop %v1625
    %v1627 = vsel %vm385, %v1624, 0.0
    %1628 = vadd.xlane.f32.xlu0 %v1627
    %v1629 = vpop.xlane.xlu0 %1628
    %v1630 = vsel %vm385, %v1626, 0.0
    %1631 = vadd.xlane.f32.xlu0 %v1630
    %v1632 = vpop.xlane.xlu0 %1631
    %v1633 = vrcp.pop %v1629
    %v1634 = vrcp.pop %v1632
    %v1635 = vmul.f32 %v1624, %v1633
    %v1636 = vmul.f32 %v1626, %v1634
    %v1637 = vpack.c.bf16 %v1636, %v1635
    %1638 = vrot.lane.b32.xlu0 %v1458, 48
    %v1639 = vpop.permute.xlu0 %1638
    %v1642 = vsel %vm385, %v1637, 0
    %1644 = vmatpush.bf16.msra.mxu0 0
    %1645 = vmatpush.bf16.msra.mxu0 0
    %1646 = vmatpush.bf16.msra.mxu0 0
    %1647 = vmatpush.bf16.msra.mxu0 0
    %1648 = vmatpush.bf16.msra.mxu0 0
    %1649 = vmatpush.bf16.msra.mxu0 0
    %1650 = vmatpush.bf16.msra.mxu0 0
    %1651 = vmatpush.bf16.msra.mxu0 %v1639
    %1652 = vmatmul.bf16.gmra.mxu0 %v1642
    %v1653 = vpop.f32.mrf.mxu0
    %v1654 = vadd.f32 0.0, %v1653
    %v1655 = vpop.f32.mrf.mxu0
    %v1656 = vadd.f32 0.0, %v1655
    %1657 = vdwg.mxu0
    %1658 = vrot.lane.b32.xlu0 %v1458, 104
    %v1659 = vpop.permute.xlu0 %1658
    %1660 = vrot.lane.b32.xlu0 %v1458, 72
    %v1661 = vpop.permute.xlu0 %1660
    %v1663 = vsel %vm364, %v1659, 0
    %v1666 = vsel %vm364, %v1661, 0
    %1668 = vmatpush.bf16.xpose.msra.mxu0 0
    %1669 = vmatpush.bf16.xpose.msra.mxu0 0
    %1670 = vmatpush.bf16.xpose.msra.mxu0 0
    %1671 = vmatpush.bf16.xpose.msra.mxu0 0
    %1672 = vmatpush.bf16.xpose.msra.mxu0 0
    %1673 = vmatpush.bf16.xpose.msra.mxu0 0
    %1674 = vmatpush.bf16.xpose.msra.mxu0 0
    %1675 = vmatpush.bf16.xpose.msra.mxu0 %v1666
    %1676 = vmatmul.bf16.gmra.mxu0 %v1663
    %v1677 = vpop.f32.mrf.mxu0
    %v1678 = vadd.f32 %v256, %v1677
    %v1679 = vpop.f32.mrf.mxu0
    %v1680 = vadd.f32 %v257, %v1679
    %1681 = vdwg.mxu0
    %v1682 = vsel %vm385, %v1678, -inf
    %1683 = vmax.xlane.f32.xlu0 %v1682
    %v1684 = vpop.xlane.xlu0 %1683
    %v1685 = vsel %vm385, %v1680, -inf
    %1686 = vmax.xlane.f32.xlu0 %v1685
    %v1687 = vpop.xlane.xlu0 %1686
    %v1688 = vsub.f32 %v1678, %v1684
    %v1689 = vsub.f32 %v1680, %v1687
    %v1690 = vmul.f32 %v1688, 1.442695
    %v1691 = vpow.pop %v1690
    %v1692 = vmul.f32 %v1689, 1.442695
    %v1693 = vpow.pop %v1692
    %v1694 = vsel %vm385, %v1691, 0.0
    %1695 = vadd.xlane.f32.xlu0 %v1694
    %v1696 = vpop.xlane.xlu0 %1695
    %v1697 = vsel %vm385, %v1693, 0.0
    %1698 = vadd.xlane.f32.xlu0 %v1697
    %v1699 = vpop.xlane.xlu0 %1698
    %v1700 = vrcp.pop %v1696
    %v1701 = vrcp.pop %v1699
    %v1702 = vmul.f32 %v1691, %v1700
    %v1703 = vmul.f32 %v1693, %v1701
    %v1704 = vpack.c.bf16 %v1703, %v1702
    %1705 = vrot.lane.b32.xlu0 %v1458, 40
    %v1706 = vpop.permute.xlu0 %1705
    %v1709 = vsel %vm385, %v1704, 0
    %1711 = vmatpush.bf16.msra.mxu0 0
    %1712 = vmatpush.bf16.msra.mxu0 0
    %1713 = vmatpush.bf16.msra.mxu0 0
    %1714 = vmatpush.bf16.msra.mxu0 0
    %1715 = vmatpush.bf16.msra.mxu0 0
    %1716 = vmatpush.bf16.msra.mxu0 0
    %1717 = vmatpush.bf16.msra.mxu0 0
    %1718 = vmatpush.bf16.msra.mxu0 %v1706
    %1719 = vmatmul.bf16.gmra.mxu0 %v1709
    %v1720 = vpop.f32.mrf.mxu0
    %v1721 = vadd.f32 0.0, %v1720
    %v1722 = vpop.f32.mrf.mxu0
    %v1723 = vadd.f32 0.0, %v1722
    %1724 = vdwg.mxu0
    %1727 = vrot.lane.b32.xlu0 %v1587, 8
    %v1728 = vpop.permute.xlu0 %1727
    %1729 = vrot.lane.b32.xlu0 %v1589, 8
    %v1730 = vpop.permute.xlu0 %1729
    %1735 = vrot.lane.b32.xlu0 %v1654, 16
    %v1736 = vpop.permute.xlu0 %1735
    %1737 = vrot.lane.b32.xlu0 %v1656, 16
    %v1738 = vpop.permute.xlu0 %1737
    %1743 = vrot.lane.b32.xlu0 %v1721, 24
    %v1744 = vpop.permute.xlu0 %1743
    %1745 = vrot.lane.b32.xlu0 %v1723, 24
    %v1746 = vpop.permute.xlu0 %1745
    %v1749 = vsel %vm364, %v1520, %v1728
    %v1750 = vsel %vm364, %v1522, %v1730
    %v1751 = vsel %vm385, %v1749, %v1736
    %v1752 = vsel %vm385, %v1750, %v1738
    %v1753 = vsel %vm658, %v1751, %v1744
    %v1754 = vsel %vm658, %v1752, %v1746
    %v1755 = vpack.c.bf16 %v1754, %v1753
    %v1756 = vld [vmem:[#allocation5 + $0x120] sm:$0xf]
    %v1757 = vld [vmem:[#allocation5 + $0x124] sm:$0xf]
    %v1758 = vld [vmem:[#allocation5 + $0x128] sm:$0xf]
    %v1759 = vld [vmem:[#allocation5 + $0x12c] sm:$0xf]
    %v1760 = vld [vmem:[#allocation3 + $0x118] sm:$0x1]
    %v1761 = vperm.slane %v1760, 0
    %v1766 = vunpack.c.l.b16 %v1756
    %v1767 = vunpack.c.l.b16 %v1757
    %v1768 = vunpack.c.l.b16 %v1758
    %v1769 = vunpack.c.l.b16 %v1759
    %v1770 = vpack.c.b16 %v1767, %v1766
    %v1771 = vpack.c.b16 %v1769, %v1768
    %v1775 = vsel %vm109, %v1755, 0
    %1777 = vmatpush.bf16.msra.mxu0 0
    %1778 = vmatpush.bf16.msra.mxu0 0
    %1779 = vmatpush.bf16.msra.mxu0 0
    %1780 = vmatpush.bf16.msra.mxu0 0
    %1781 = vmatpush.bf16.msra.mxu0 0
    %1782 = vmatpush.bf16.msra.mxu0 0
    %1783 = vmatpush.bf16.msra.mxu0 %v1771
    %1784 = vmatpush.bf16.msra.mxu0 %v1770
    %1785 = vmatmul.bf16.gmra.mxu0 %v1775
    %v1786 = vpop.f32.mrf.mxu0
    %v1787 = vadd.f32 %v1761, %v1786
    %v1788 = vpop.f32.mrf.mxu0
    %v1789 = vadd.f32 %v1761, %v1788
    %1790 = vdwg.mxu0
    %v1791 = vadd.f32 %v1362, %v1787
    %v1792 = vadd.f32 %v1363, %v1789
    %v1793 = vld [vmem:[#allocation3 + $0xf0] sm:$0x1]
    %v1794 = vld [vmem:[#allocation3 + $0xf8] sm:$0x1]
    %v1795 = vsel %vm109, %v1791, 0.0
    %1796 = vadd.xlane.f32.xlu0 %v1795
    %v1797 = vpop.xlane.xlu0 %1796
    %v1798 = vsel %vm109, %v1792, 0.0
    %1799 = vadd.xlane.f32.xlu0 %v1798
    %v1800 = vpop.xlane.xlu0 %1799
    %v1801 = vmul.f32 %v1797, %v274
    %v1802 = vmul.f32 %v1800, %v274
    %v1803 = vsub.f32 %v1791, %v1801
    %v1804 = vsub.f32 %v1792, %v1802
    %v1805 = vmul.f32 %v1803, %v1803
    %v1806 = vmul.f32 %v1804, %v1804
    %v1807 = vsel %vm109, %v1805, 0.0
    %1808 = vadd.xlane.f32.xlu0 %v1807
    %v1809 = vpop.xlane.xlu0 %1808
    %v1810 = vsel %vm109, %v1806, 0.0
    %1811 = vadd.xlane.f32.xlu0 %v1810
    %v1812 = vpop.xlane.xlu0 %1811
    %v1813 = vmul.f32 %v1809, %v274
    %v1814 = vmul.f32 %v1812, %v274
    %v1815 = vadd.f32 %v1813, 1e-05
    %v1816 = vadd.f32 %v1814, 1e-05
    %v1817 = vrsqrt.pop %v1815
    %v1818 = vmul.f32 %v1817, %v1815
    %v1819 = vmul.f32 %v1818, %v1817
    %v1820 = vmul.f32 0.5, %v1819
    %v1821 = vsub.f32 1.5, %v1820
    %v1822 = vmul.f32 %v1817, %v1821
    %vm1823 = vweird.f32 %v1815
    %vm1824 = vweird.f32 %v1817
    %vm1825 = vmor %vm1823, %vm1824
    %v1826 = vsel %vm1825, %v1817, %v1822
    %v1827 = vrsqrt.pop %v1816
    %v1828 = vmul.f32 %v1827, %v1816
    %v1829 = vmul.f32 %v1828, %v1827
    %v1830 = vmul.f32 0.5, %v1829
    %v1831 = vsub.f32 1.5, %v1830
    %v1832 = vmul.f32 %v1827, %v1831
    %vm1833 = vweird.f32 %v1816
    %vm1834 = vweird.f32 %v1827
    %vm1835 = vmor %vm1833, %vm1834
    %v1836 = vsel %vm1835, %v1827, %v1832
    %v1837 = vmul.f32 %v1803, %v1826
    %v1838 = vmul.f32 %v1804, %v1836
    %v1839 = vperm.slane %v1793, 0
    %v1840 = vmul.f32 %v1837, %v1839
    %v1841 = vmul.f32 %v1838, %v1839
    %v1842 = vperm.slane %v1794, 0
    %v1843 = vadd.f32 %v1840, %v1842
    %v1844 = vadd.f32 %v1841, %v1842
    %v1845 = vpack.c.bf16 %v1844, %v1843
    %v1846 = vld [vmem:[#allocation5 + $0x130] sm:$0xf]
    %v1847 = vld [vmem:[#allocation5 + $0x134] sm:$0xf]
    %v1848 = vld [vmem:[#allocation5 + $0x138] sm:$0xf]
    %v1849 = vld [vmem:[#allocation5 + $0x13c] sm:$0xf]
    %v1850 = vld [vmem:[#allocation3 + $0x120] sm:$0x1]
    %v1851 = vperm.slane %v1850, 0
    %v1856 = vunpack.c.l.b16 %v1846
    %v1857 = vunpack.c.l.b16 %v1847
    %v1858 = vunpack.c.l.b16 %v1848
    %v1859 = vunpack.c.l.b16 %v1849
    %v1860 = vpack.c.b16 %v1857, %v1856
    %v1861 = vpack.c.b16 %v1859, %v1858
    %v1865 = vsel %vm109, %v1845, 0
    %1867 = vmatpush.bf16.msra.mxu0 0
    %1868 = vmatpush.bf16.msra.mxu0 0
    %1869 = vmatpush.bf16.msra.mxu0 0
    %1870 = vmatpush.bf16.msra.mxu0 0
    %1871 = vmatpush.bf16.msra.mxu0 0
    %1872 = vmatpush.bf16.msra.mxu0 0
    %1873 = vmatpush.bf16.msra.mxu0 %v1861
    %1874 = vmatpush.bf16.msra.mxu0 %v1860
    %1875 = vmatmul.bf16.gmra.mxu0 %v1865
    %v1876 = vpop.f32.mrf.mxu0
    %v1877 = vadd.f32 %v1851, %v1876
    %v1878 = vpop.f32.mrf.mxu0
    %v1879 = vadd.f32 %v1851, %v1878
    %1880 = vdwg.mxu0
    %v1881 = vld [vmem:[#allocation5 + $0x140] sm:$0xf]
    %v1882 = vld [vmem:[#allocation5 + $0x144] sm:$0xf]
    %v1883 = vld [vmem:[#allocation5 + $0x148] sm:$0xf]
    %v1884 = vld [vmem:[#allocation5 + $0x14c] sm:$0xf]
    %v1885 = vld [vmem:[#allocation3 + $0x128] sm:$0x1]
    %v1886 = vperm.slane %v1885, 0
    %v1891 = vunpack.c.l.b16 %v1881
    %v1892 = vunpack.c.l.b16 %v1882
    %v1893 = vunpack.c.l.b16 %v1883
    %v1894 = vunpack.c.l.b16 %v1884
    %v1895 = vpack.c.b16 %v1892, %v1891
    %v1896 = vpack.c.b16 %v1894, %v1893
    %1899 = vmatpush.bf16.msra.mxu0 0
    %1900 = vmatpush.bf16.msra.mxu0 0
    %1901 = vmatpush.bf16.msra.mxu0 0
    %1902 = vmatpush.bf16.msra.mxu0 0
    %1903 = vmatpush.bf16.msra.mxu0 0
    %1904 = vmatpush.bf16.msra.mxu0 0
    %1905 = vmatpush.bf16.msra.mxu0 %v1896
    %1906 = vmatpush.bf16.msra.mxu0 %v1895
    %1907 = vmatmul.bf16.gmra.mxu0 %v807
    %v1908 = vpop.f32.mrf.mxu0
    %v1909 = vadd.f32 %v1886, %v1908
    %v1910 = vpop.f32.mrf.mxu0
    %1911 = vdwg.mxu0
    %v1912 = vpack.c.bf16 %v1877, %v1877
    %v1913 = vpack.c.bf16 %v1879, %v1879
    %v1914 = vpack.c.bf16 %v1909, %v1909
    %v1917 = vunpack.c.l.b16 %v1912
    %v1918 = vunpack.c.l.b16 %v1913
    %v1919 = vpack.c.b16 %v1918, %v1917
    %v1921 = vsel %vm364, %v1919, 0
    %v1924 = vsel %vm364, %v1914, 0
    %1926 = vmatpush.bf16.xpose.msra.mxu0 0
    %1927 = vmatpush.bf16.xpose.msra.mxu0 0
    %1928 = vmatpush.bf16.xpose.msra.mxu0 0
    %1929 = vmatpush.bf16.xpose.msra.mxu0 0
    %1930 = vmatpush.bf16.xpose.msra.mxu0 0
    %1931 = vmatpush.bf16.xpose.msra.mxu0 0
    %1932 = vmatpush.bf16.xpose.msra.mxu0 0
    %1933 = vmatpush.bf16.xpose.msra.mxu0 %v1924
    %1934 = vmatmul.bf16.gmra.mxu0 %v1921
    %v1935 = vpop.f32.mrf.mxu0
    %v1936 = vadd.f32 %v258, %v1935
    %v1937 = vpop.f32.mrf.mxu0
    %v1938 = vadd.f32 %v259, %v1937
    %1939 = vdwg.mxu0
    %v1940 = vsel %vm850, %v1936, -inf
    %1941 = vmax.xlane.f32.xlu0 %v1940
    %v1942 = vpop.xlane.xlu0 %1941
    %v1943 = vsel %vm850, %v1938, -inf
    %1944 = vmax.xlane.f32.xlu0 %v1943
    %v1945 = vpop.xlane.xlu0 %1944
    %v1946 = vsub.f32 %v1936, %v1942
    %v1947 = vsub.f32 %v1938, %v1945
    %v1948 = vmul.f32 %v1946, 1.442695
    %v1949 = vpow.pop %v1948
    %v1950 = vmul.f32 %v1947, 1.442695
    %v1951 = vpow.pop %v1950
    %v1952 = vsel %vm850, %v1949, 0.0
    %1953 = vadd.xlane.f32.xlu0 %v1952
    %v1954 = vpop.xlane.xlu0 %1953
    %v1955 = vsel %vm850, %v1951, 0.0
    %1956 = vadd.xlane.f32.xlu0 %v1955
    %v1957 = vpop.xlane.xlu0 %1956
    %v1958 = vrcp.pop %v1954
    %v1959 = vrcp.pop %v1957
    %v1960 = vmul.f32 %v1949, %v1958
    %v1961 = vmul.f32 %v1951, %v1959
    %v1962 = vpack.c.bf16 %v1961, %v1960
    %v1964 = vunpack.c.l.b16 %v1914
    %v1965 = vpack.c.b16 %v1964, %v1964
    %1966 = vrot.lane.b32.xlu0 %v1965, 96
    %v1967 = vpop.permute.xlu0 %1966
    %v1969 = vsel %vm850, %v1962, 0
    %v1972 = vsel %vm882, %v1967, 0
    %1974 = vmatpush.bf16.msra.mxu0 0
    %1975 = vmatpush.bf16.msra.mxu0 0
    %1976 = vmatpush.bf16.msra.mxu0 0
    %1977 = vmatpush.bf16.msra.mxu0 0
    %1978 = vmatpush.bf16.msra.mxu0 0
    %1979 = vmatpush.bf16.msra.mxu0 0
    %1980 = vmatpush.bf16.msra.mxu0 0
    %1981 = vmatpush.bf16.msra.mxu0 %v1972
    %1982 = vmatmul.bf16.gmra.mxu0 %v1969
    %v1983 = vpop.f32.mrf.mxu0
    %v1984 = vadd.f32 0.0, %v1983
    %v1985 = vpop.f32.mrf.mxu0
    %v1986 = vadd.f32 0.0, %v1985
    %1987 = vdwg.mxu0
    %1988 = vrot.lane.b32.xlu0 %v1919, 120
    %v1989 = vpop.permute.xlu0 %1988
    %1990 = vrot.lane.b32.xlu0 %v1965, 120
    %v1991 = vpop.permute.xlu0 %1990
    %v1993 = vsel %vm364, %v1989, 0
    %v1996 = vsel %vm364, %v1991, 0
    %1998 = vmatpush.bf16.xpose.msra.mxu0 0
    %1999 = vmatpush.bf16.xpose.msra.mxu0 0
    %2000 = vmatpush.bf16.xpose.msra.mxu0 0
    %2001 = vmatpush.bf16.xpose.msra.mxu0 0
    %2002 = vmatpush.bf16.xpose.msra.mxu0 0
    %2003 = vmatpush.bf16.xpose.msra.mxu0 0
    %2004 = vmatpush.bf16.xpose.msra.mxu0 0
    %2005 = vmatpush.bf16.xpose.msra.mxu0 %v1996
    %2006 = vmatmul.bf16.gmra.mxu0 %v1993
    %v2007 = vpop.f32.mrf.mxu0
    %v2008 = vadd.f32 %v258, %v2007
    %v2009 = vpop.f32.mrf.mxu0
    %v2010 = vadd.f32 %v259, %v2009
    %2011 = vdwg.mxu0
    %v2012 = vsel %vm850, %v2008, -inf
    %2013 = vmax.xlane.f32.xlu0 %v2012
    %v2014 = vpop.xlane.xlu0 %2013
    %v2015 = vsel %vm850, %v2010, -inf
    %2016 = vmax.xlane.f32.xlu0 %v2015
    %v2017 = vpop.xlane.xlu0 %2016
    %v2018 = vsub.f32 %v2008, %v2014
    %v2019 = vsub.f32 %v2010, %v2017
    %v2020 = vmul.f32 %v2018, 1.442695
    %v2021 = vpow.pop %v2020
    %v2022 = vmul.f32 %v2019, 1.442695
    %v2023 = vpow.pop %v2022
    %v2024 = vsel %vm850, %v2021, 0.0
    %2025 = vadd.xlane.f32.xlu0 %v2024
    %v2026 = vpop.xlane.xlu0 %2025
    %v2027 = vsel %vm850, %v2023, 0.0
    %2028 = vadd.xlane.f32.xlu0 %v2027
    %v2029 = vpop.xlane.xlu0 %2028
    %v2030 = vrcp.pop %v2026
    %v2031 = vrcp.pop %v2029
    %v2032 = vmul.f32 %v2021, %v2030
    %v2033 = vmul.f32 %v2023, %v2031
    %v2034 = vpack.c.bf16 %v2033, %v2032
    %2035 = vrot.lane.b32.xlu0 %v1965, 88
    %v2036 = vpop.permute.xlu0 %2035
    %v2038 = vsel %vm850, %v2034, 0
    %v2041 = vsel %vm882, %v2036, 0
    %2043 = vmatpush.bf16.msra.mxu0 0
    %2044 = vmatpush.bf16.msra.mxu0 0
    %2045 = vmatpush.bf16.msra.mxu0 0
    %2046 = vmatpush.bf16.msra.mxu0 0
    %2047 = vmatpush.bf16.msra.mxu0 0
    %2048 = vmatpush.bf16.msra.mxu0 0
    %2049 = vmatpush.bf16.msra.mxu0 0
    %2050 = vmatpush.bf16.msra.mxu0 %v2041
    %2051 = vmatmul.bf16.gmra.mxu0 %v2038
    %v2052 = vpop.f32.mrf.mxu0
    %v2053 = vadd.f32 0.0, %v2052
    %v2054 = vpop.f32.mrf.mxu0
    %v2055 = vadd.f32 0.0, %v2054
    %2056 = vdwg.mxu0
    %2057 = vrot.lane.b32.xlu0 %v1919, 112
    %v2058 = vpop.permute.xlu0 %2057
    %2059 = vrot.lane.b32.xlu0 %v1965, 112
    %v2060 = vpop.permute.xlu0 %2059
    %v2062 = vsel %vm364, %v2058, 0
    %v2065 = vsel %vm364, %v2060, 0
    %2067 = vmatpush.bf16.xpose.msra.mxu0 0
    %2068 = vmatpush.bf16.xpose.msra.mxu0 0
    %2069 = vmatpush.bf16.xpose.msra.mxu0 0
    %2070 = vmatpush.bf16.xpose.msra.mxu0 0
    %2071 = vmatpush.bf16.xpose.msra.mxu0 0
    %2072 = vmatpush.bf16.xpose.msra.mxu0 0
    %2073 = vmatpush.bf16.xpose.msra.mxu0 0
    %2074 = vmatpush.bf16.xpose.msra.mxu0 %v2065
    %2075 = vmatmul.bf16.gmra.mxu0 %v2062
    %v2076 = vpop.f32.mrf.mxu0
    %v2077 = vadd.f32 %v258, %v2076
    %v2078 = vpop.f32.mrf.mxu0
    %v2079 = vadd.f32 %v259, %v2078
    %2080 = vdwg.mxu0
    %v2081 = vsel %vm850, %v2077, -inf
    %2082 = vmax.xlane.f32.xlu0 %v2081
    %v2083 = vpop.xlane.xlu0 %2082
    %v2084 = vsel %vm850, %v2079, -inf
    %2085 = vmax.xlane.f32.xlu0 %v2084
    %v2086 = vpop.xlane.xlu0 %2085
    %v2087 = vsub.f32 %v2077, %v2083
    %v2088 = vsub.f32 %v2079, %v2086
    %v2089 = vmul.f32 %v2087, 1.442695
    %v2090 = vpow.pop %v2089
    %v2091 = vmul.f32 %v2088, 1.442695
    %v2092 = vpow.pop %v2091
    %v2093 = vsel %vm850, %v2090, 0.0
    %2094 = vadd.xlane.f32.xlu0 %v2093
    %v2095 = vpop.xlane.xlu0 %2094
    %v2096 = vsel %vm850, %v2092, 0.0
    %2097 = vadd.xlane.f32.xlu0 %v2096
    %v2098 = vpop.xlane.xlu0 %2097
    %v2099 = vrcp.pop %v2095
    %v2100 = vrcp.pop %v2098
    %v2101 = vmul.f32 %v2090, %v2099
    %v2102 = vmul.f32 %v2092, %v2100
    %v2103 = vpack.c.bf16 %v2102, %v2101
    %2104 = vrot.lane.b32.xlu0 %v1965, 80
    %v2105 = vpop.permute.xlu0 %2104
    %v2107 = vsel %vm850, %v2103, 0
    %v2110 = vsel %vm882, %v2105, 0
    %2112 = vmatpush.bf16.msra.mxu0 0
    %2113 = vmatpush.bf16.msra.mxu0 0
    %2114 = vmatpush.bf16.msra.mxu0 0
    %2115 = vmatpush.bf16.msra.mxu0 0
    %2116 = vmatpush.bf16.msra.mxu0 0
    %2117 = vmatpush.bf16.msra.mxu0 0
    %2118 = vmatpush.bf16.msra.mxu0 0
    %2119 = vmatpush.bf16.msra.mxu0 %v2110
    %2120 = vmatmul.bf16.gmra.mxu0 %v2107
    %v2121 = vpop.f32.mrf.mxu0
    %v2122 = vadd.f32 0.0, %v2121
    %v2123 = vpop.f32.mrf.mxu0
    %v2124 = vadd.f32 0.0, %v2123
    %2125 = vdwg.mxu0
    %2126 = vrot.lane.b32.xlu0 %v1919, 104
    %v2127 = vpop.permute.xlu0 %2126
    %2128 = vrot.lane.b32.xlu0 %v1965, 104
    %v2129 = vpop.permute.xlu0 %2128
    %v2131 = vsel %vm364, %v2127, 0
    %v2134 = vsel %vm364, %v2129, 0
    %2136 = vmatpush.bf16.xpose.msra.mxu0 0
    %2137 = vmatpush.bf16.xpose.msra.mxu0 0
    %2138 = vmatpush.bf16.xpose.msra.mxu0 0
    %2139 = vmatpush.bf16.xpose.msra.mxu0 0
    %2140 = vmatpush.bf16.xpose.msra.mxu0 0
    %2141 = vmatpush.bf16.xpose.msra.mxu0 0
    %2142 = vmatpush.bf16.xpose.msra.mxu0 0
    %2143 = vmatpush.bf16.xpose.msra.mxu0 %v2134
    %2144 = vmatmul.bf16.gmra.mxu0 %v2131
    %v2145 = vpop.f32.mrf.mxu0
    %v2146 = vadd.f32 %v258, %v2145
    %v2147 = vpop.f32.mrf.mxu0
    %v2148 = vadd.f32 %v259, %v2147
    %2149 = vdwg.mxu0
    %v2150 = vsel %vm850, %v2146, -inf
    %2151 = vmax.xlane.f32.xlu0 %v2150
    %v2152 = vpop.xlane.xlu0 %2151
    %v2153 = vsel %vm850, %v2148, -inf
    %2154 = vmax.xlane.f32.xlu0 %v2153
    %v2155 = vpop.xlane.xlu0 %2154
    %v2156 = vsub.f32 %v2146, %v2152
    %v2157 = vsub.f32 %v2148, %v2155
    %v2158 = vmul.f32 %v2156, 1.442695
    %v2159 = vpow.pop %v2158
    %v2160 = vmul.f32 %v2157, 1.442695
    %v2161 = vpow.pop %v2160
    %v2162 = vsel %vm850, %v2159, 0.0
    %2163 = vadd.xlane.f32.xlu0 %v2162
    %v2164 = vpop.xlane.xlu0 %2163
    %v2165 = vsel %vm850, %v2161, 0.0
    %2166 = vadd.xlane.f32.xlu0 %v2165
    %v2167 = vpop.xlane.xlu0 %2166
    %v2168 = vrcp.pop %v2164
    %v2169 = vrcp.pop %v2167
    %v2170 = vmul.f32 %v2159, %v2168
    %v2171 = vmul.f32 %v2161, %v2169
    %v2172 = vpack.c.bf16 %v2171, %v2170
    %2173 = vrot.lane.b32.xlu0 %v1965, 72
    %v2174 = vpop.permute.xlu0 %2173
    %v2176 = vsel %vm850, %v2172, 0
    %v2179 = vsel %vm882, %v2174, 0
    %2181 = vmatpush.bf16.msra.mxu0 0
    %2182 = vmatpush.bf16.msra.mxu0 0
    %2183 = vmatpush.bf16.msra.mxu0 0
    %2184 = vmatpush.bf16.msra.mxu0 0
    %2185 = vmatpush.bf16.msra.mxu0 0
    %2186 = vmatpush.bf16.msra.mxu0 0
    %2187 = vmatpush.bf16.msra.mxu0 0
    %2188 = vmatpush.bf16.msra.mxu0 %v2179
    %2189 = vmatmul.bf16.gmra.mxu0 %v2176
    %v2190 = vpop.f32.mrf.mxu0
    %v2191 = vadd.f32 0.0, %v2190
    %v2192 = vpop.f32.mrf.mxu0
    %v2193 = vadd.f32 0.0, %v2192
    %2194 = vdwg.mxu0
    %2197 = vrot.lane.b32.xlu0 %v2053, 8
    %v2198 = vpop.permute.xlu0 %2197
    %2199 = vrot.lane.b32.xlu0 %v2055, 8
    %v2200 = vpop.permute.xlu0 %2199
    %2205 = vrot.lane.b32.xlu0 %v2122, 16
    %v2206 = vpop.permute.xlu0 %2205
    %2207 = vrot.lane.b32.xlu0 %v2124, 16
    %v2208 = vpop.permute.xlu0 %2207
    %2213 = vrot.lane.b32.xlu0 %v2191, 24
    %v2214 = vpop.permute.xlu0 %2213
    %2215 = vrot.lane.b32.xlu0 %v2193, 24
    %v2216 = vpop.permute.xlu0 %2215
    %v2219 = vsel %vm364, %v1984, %v2198
    %v2220 = vsel %vm364, %v1986, %v2200
    %v2221 = vsel %vm385, %v2219, %v2206
    %v2222 = vsel %vm385, %v2220, %v2208
    %v2223 = vsel %vm658, %v2221, %v2214
    %v2224 = vsel %vm658, %v2222, %v2216
    %v2225 = vpack.c.bf16 %v2224, %v2223
    %v2226 = vld [vmem:[#allocation5 + $0x150] sm:$0xf]
    %v2227 = vld [vmem:[#allocation5 + $0x154] sm:$0xf]
    %v2228 = vld [vmem:[#allocation5 + $0x158] sm:$0xf]
    %v2229 = vld [vmem:[#allocation5 + $0x15c] sm:$0xf]
    %v2230 = vld [vmem:[#allocation3 + $0x130] sm:$0x1]
    %v2231 = vperm.slane %v2230, 0
    %v2236 = vunpack.c.l.b16 %v2226
    %v2237 = vunpack.c.l.b16 %v2227
    %v2238 = vunpack.c.l.b16 %v2228
    %v2239 = vunpack.c.l.b16 %v2229
    %v2240 = vpack.c.b16 %v2237, %v2236
    %v2241 = vpack.c.b16 %v2239, %v2238
    %v2245 = vsel %vm109, %v2225, 0
    %2247 = vmatpush.bf16.msra.mxu0 0
    %2248 = vmatpush.bf16.msra.mxu0 0
    %2249 = vmatpush.bf16.msra.mxu0 0
    %2250 = vmatpush.bf16.msra.mxu0 0
    %2251 = vmatpush.bf16.msra.mxu0 0
    %2252 = vmatpush.bf16.msra.mxu0 0
    %2253 = vmatpush.bf16.msra.mxu0 %v2241
    %2254 = vmatpush.bf16.msra.mxu0 %v2240
    %2255 = vmatmul.bf16.gmra.mxu0 %v2245
    %v2256 = vpop.f32.mrf.mxu0
    %v2257 = vadd.f32 %v2231, %v2256
    %v2258 = vpop.f32.mrf.mxu0
    %v2259 = vadd.f32 %v2231, %v2258
    %2260 = vdwg.mxu0
    %v2261 = vadd.f32 %v1791, %v2257
    %v2262 = vadd.f32 %v1792, %v2259
    %v2263 = vld [vmem:[#allocation3 + $0x100] sm:$0x1]
    %v2264 = vld [vmem:[#allocation3 + $0x108] sm:$0x1]
    %v2265 = vsel %vm109, %v2261, 0.0
    %2266 = vadd.xlane.f32.xlu0 %v2265
    %v2267 = vpop.xlane.xlu0 %2266
    %v2268 = vsel %vm109, %v2262, 0.0
    %2269 = vadd.xlane.f32.xlu0 %v2268
    %v2270 = vpop.xlane.xlu0 %2269
    %v2271 = vmul.f32 %v2267, %v274
    %v2272 = vmul.f32 %v2270, %v274
    %v2273 = vsub.f32 %v2261, %v2271
    %v2274 = vsub.f32 %v2262, %v2272
    %v2275 = vmul.f32 %v2273, %v2273
    %v2276 = vmul.f32 %v2274, %v2274
    %v2277 = vsel %vm109, %v2275, 0.0
    %2278 = vadd.xlane.f32.xlu0 %v2277
    %v2279 = vpop.xlane.xlu0 %2278
    %v2280 = vsel %vm109, %v2276, 0.0
    %2281 = vadd.xlane.f32.xlu0 %v2280
    %v2282 = vpop.xlane.xlu0 %2281
    %v2283 = vmul.f32 %v2279, %v274
    %v2284 = vmul.f32 %v2282, %v274
    %v2285 = vadd.f32 %v2283, 1e-05
    %v2286 = vadd.f32 %v2284, 1e-05
    %v2287 = vrsqrt.pop %v2285
    %v2288 = vmul.f32 %v2287, %v2285
    %v2289 = vmul.f32 %v2288, %v2287
    %v2290 = vmul.f32 0.5, %v2289
    %v2291 = vsub.f32 1.5, %v2290
    %v2292 = vmul.f32 %v2287, %v2291
    %vm2293 = vweird.f32 %v2285
    %vm2294 = vweird.f32 %v2287
    %vm2295 = vmor %vm2293, %vm2294
    %v2296 = vsel %vm2295, %v2287, %v2292
    %v2297 = vrsqrt.pop %v2286
    %v2298 = vmul.f32 %v2297, %v2286
    %v2299 = vmul.f32 %v2298, %v2297
    %v2300 = vmul.f32 0.5, %v2299
    %v2301 = vsub.f32 1.5, %v2300
    %v2302 = vmul.f32 %v2297, %v2301
    %vm2303 = vweird.f32 %v2286
    %vm2304 = vweird.f32 %v2297
    %vm2305 = vmor %vm2303, %vm2304
    %v2306 = vsel %vm2305, %v2297, %v2302
    %v2307 = vmul.f32 %v2273, %v2296
    %v2308 = vmul.f32 %v2274, %v2306
    %v2309 = vperm.slane %v2263, 0
    %v2310 = vmul.f32 %v2307, %v2309
    %v2311 = vmul.f32 %v2308, %v2309
    %v2312 = vperm.slane %v2264, 0
    %v2313 = vadd.f32 %v2310, %v2312
    %v2314 = vadd.f32 %v2311, %v2312
    %v2315 = vpack.c.bf16 %v2314, %v2313
    %v2316 = vld [vmem:[#allocation5 + $0x160] sm:$0xf]
    %v2317 = vld [vmem:[#allocation5 + $0x164] sm:$0xf]
    %v2318 = vld [vmem:[#allocation5 + $0x168] sm:$0xf]
    %v2319 = vld [vmem:[#allocation5 + $0x16c] sm:$0xf]
    %v2320 = vld [vmem:[#allocation3 + $0x138] sm:$0x1]
    %v2321 = vperm.slane %v2320, 0
    %v2326 = vunpack.c.l.b16 %v2316
    %v2327 = vunpack.c.l.b16 %v2317
    %v2328 = vunpack.c.l.b16 %v2318
    %v2329 = vunpack.c.l.b16 %v2319
    %v2330 = vpack.c.b16 %v2327, %v2326
    %v2331 = vpack.c.b16 %v2329, %v2328
    %v2335 = vsel %vm109, %v2315, 0
    %2337 = vmatpush.bf16.msra.mxu0 0
    %2338 = vmatpush.bf16.msra.mxu0 0
    %2339 = vmatpush.bf16.msra.mxu0 0
    %2340 = vmatpush.bf16.msra.mxu0 0
    %2341 = vmatpush.bf16.msra.mxu0 0
    %2342 = vmatpush.bf16.msra.mxu0 0
    %2343 = vmatpush.bf16.msra.mxu0 %v2331
    %2344 = vmatpush.bf16.msra.mxu0 %v2330
    %2345 = vmatmul.bf16.gmra.mxu0 %v2335
    %v2346 = vpop.f32.mrf.mxu0
    %v2347 = vadd.f32 %v2321, %v2346
    %v2348 = vpop.f32.mrf.mxu0
    %v2349 = vadd.f32 %v2321, %v2348
    %2350 = vdwg.mxu0
    %v2351 = vmul.f32 %v2347, %v2347
    %v2352 = vmul.f32 %v2349, %v2349
    %v2353 = vmul.f32 %v2347, %v2351
    %v2354 = vmul.f32 %v2349, %v2352
    %v2355 = vmul.f32 %v2353, 0.044715
    %v2356 = vmul.f32 %v2354, 0.044715
    %v2357 = vadd.f32 %v2347, %v2355
    %v2358 = vadd.f32 %v2349, %v2356
    %v2359 = vmul.f32 %v2357, 0.7978846
    %v2360 = vmul.f32 %v2358, 0.7978846
    %v2361 = vtanh.pop %v2359
    %v2362 = vtanh.pop %v2360
    %v2363 = vadd.f32 %v2361, 1.0
    %v2364 = vadd.f32 %v2362, 1.0
    %v2365 = vmul.f32 %v2363, 0.5
    %v2366 = vmul.f32 %v2364, 0.5
    %v2367 = vmul.f32 %v2347, %v2365
    %v2368 = vmul.f32 %v2349, %v2366
    %v2369 = vpack.c.bf16 %v2368, %v2367
    %v2370 = vld [vmem:[#allocation5 + $0x170] sm:$0xf]
    %v2371 = vld [vmem:[#allocation5 + $0x174] sm:$0xf]
    %v2372 = vld [vmem:[#allocation5 + $0x178] sm:$0xf]
    %v2373 = vld [vmem:[#allocation5 + $0x17c] sm:$0xf]
    %v2374 = vld [vmem:[#allocation5 + $0x180] sm:$0xf]
    %v2375 = vld [vmem:[#allocation5 + $0x184] sm:$0xf]
    %v2376 = vld [vmem:[#allocation5 + $0x188] sm:$0xf]
    %v2377 = vld [vmem:[#allocation5 + $0x18c] sm:$0xf]
    %v2378 = vld [vmem:[#allocation5 + $0x190] sm:$0xf]
    %v2379 = vld [vmem:[#allocation5 + $0x194] sm:$0xf]
    %v2380 = vld [vmem:[#allocation5 + $0x198] sm:$0xf]
    %v2381 = vld [vmem:[#allocation5 + $0x19c] sm:$0xf]
    %v2382 = vld [vmem:[#allocation5 + $0x1a0] sm:$0xf]
    %v2383 = vld [vmem:[#allocation5 + $0x1a4] sm:$0xf]
    %v2384 = vld [vmem:[#allocation5 + $0x1a8] sm:$0xf]
    %v2385 = vld [vmem:[#allocation5 + $0x1ac] sm:$0xf]
    %v2386 = vld [vmem:[#allocation3 + $0x140] sm:$0x1]
    %v2387 = vperm.slane %v2386, 0
    %v2404 = vunpack.c.l.b16 %v2370
    %v2405 = vunpack.c.l.b16 %v2371
    %v2406 = vunpack.c.l.b16 %v2372
    %v2407 = vunpack.c.l.b16 %v2373
    %v2408 = vunpack.c.l.b16 %v2374
    %v2409 = vunpack.c.l.b16 %v2375
    %v2410 = vunpack.c.l.b16 %v2376
    %v2411 = vunpack.c.l.b16 %v2377
    %v2412 = vunpack.c.l.b16 %v2378
    %v2413 = vunpack.c.l.b16 %v2379
    %v2414 = vunpack.c.l.b16 %v2380
    %v2415 = vunpack.c.l.b16 %v2381
    %v2416 = vunpack.c.l.b16 %v2382
    %v2417 = vunpack.c.l.b16 %v2383
    %v2418 = vunpack.c.l.b16 %v2384
    %v2419 = vunpack.c.l.b16 %v2385
    %v2420 = vpack.c.b16 %v2405, %v2404
    %v2421 = vpack.c.b16 %v2407, %v2406
    %v2422 = vpack.c.b16 %v2409, %v2408
    %v2423 = vpack.c.b16 %v2411, %v2410
    %v2424 = vpack.c.b16 %v2413, %v2412
    %v2425 = vpack.c.b16 %v2415, %v2414
    %v2426 = vpack.c.b16 %v2417, %v2416
    %v2427 = vpack.c.b16 %v2419, %v2418
    %2436 = vmatpush.bf16.msra.mxu0 %v2427
    %2437 = vmatpush.bf16.msra.mxu0 %v2426
    %2438 = vmatpush.bf16.msra.mxu0 %v2425
    %2439 = vmatpush.bf16.msra.mxu0 %v2424
    %2440 = vmatpush.bf16.msra.mxu0 %v2423
    %2441 = vmatpush.bf16.msra.mxu0 %v2422
    %2442 = vmatpush.bf16.msra.mxu0 %v2421
    %2443 = vmatpush.bf16.msra.mxu0 %v2420
    %2444 = vmatmul.bf16.gmra.mxu0 %v2369
    %v2445 = vpop.f32.mrf.mxu0
    %v2446 = vadd.f32 %v2387, %v2445
    %v2447 = vpop.f32.mrf.mxu0
    %v2448 = vadd.f32 %v2387, %v2447
    %2449 = vdwg.mxu0
    %v2450 = vadd.f32 %v2261, %v2446
    %v2451 = vadd.f32 %v2262, %v2448
    %v2452 = vld [vmem:[#allocation3 + $0x60] sm:$0x1]
    %v2453 = vld [vmem:[#allocation3 + $0x68] sm:$0x1]
    %v2454 = vsel %vm109, %v2450, 0.0
    %2455 = vadd.xlane.f32.xlu0 %v2454
    %v2456 = vpop.xlane.xlu0 %2455
    %v2457 = vsel %vm109, %v2451, 0.0
    %2458 = vadd.xlane.f32.xlu0 %v2457
    %v2459 = vpop.xlane.xlu0 %2458
    %v2460 = vmul.f32 %v2456, %v274
    %v2461 = vmul.f32 %v2459, %v274
    %v2462 = vsub.f32 %v2450, %v2460
    %v2463 = vsub.f32 %v2451, %v2461
    %v2464 = vmul.f32 %v2462, %v2462
    %v2465 = vmul.f32 %v2463, %v2463
    %v2466 = vsel %vm109, %v2464, 0.0
    %2467 = vadd.xlane.f32.xlu0 %v2466
    %v2468 = vpop.xlane.xlu0 %2467
    %v2469 = vsel %vm109, %v2465, 0.0
    %2470 = vadd.xlane.f32.xlu0 %v2469
    %v2471 = vpop.xlane.xlu0 %2470
    %v2472 = vmul.f32 %v2468, %v274
    %v2473 = vmul.f32 %v2471, %v274
    %v2474 = vadd.f32 %v2472, 1e-05
    %v2475 = vadd.f32 %v2473, 1e-05
    %v2476 = vrsqrt.pop %v2474
    %v2477 = vmul.f32 %v2476, %v2474
    %v2478 = vmul.f32 %v2477, %v2476
    %v2479 = vmul.f32 0.5, %v2478
    %v2480 = vsub.f32 1.5, %v2479
    %v2481 = vmul.f32 %v2476, %v2480
    %vm2482 = vweird.f32 %v2474
    %vm2483 = vweird.f32 %v2476
    %vm2484 = vmor %vm2482, %vm2483
    %v2485 = vsel %vm2484, %v2476, %v2481
    %v2486 = vrsqrt.pop %v2475
    %v2487 = vmul.f32 %v2486, %v2475
    %v2488 = vmul.f32 %v2487, %v2486
    %v2489 = vmul.f32 0.5, %v2488
    %v2490 = vsub.f32 1.5, %v2489
    %v2491 = vmul.f32 %v2486, %v2490
    %vm2492 = vweird.f32 %v2475
    %vm2493 = vweird.f32 %v2486
    %vm2494 = vmor %vm2492, %vm2493
    %v2495 = vsel %vm2494, %v2486, %v2491
    %v2496 = vmul.f32 %v2462, %v2485
    %v2497 = vmul.f32 %v2463, %v2495
    %v2498 = vperm.slane %v2452, 0
    %v2499 = vmul.f32 %v2496, %v2498
    %v2500 = vmul.f32 %v2497, %v2498
    %v2501 = vperm.slane %v2453, 0
    %v2502 = vadd.f32 %v2499, %v2501
    %v2503 = vadd.f32 %v2500, %v2501
    %v2504 = vpack.c.bf16 %v2503, %v2502
    %v2505 = vld [vmem:[#allocation5 + $0x60] sm:$0xf]
    %v2506 = vld [vmem:[#allocation5 + $0x64] sm:$0xf]
    %v2507 = vld [vmem:[#allocation5 + $0x68] sm:$0xf]
    %v2508 = vld [vmem:[#allocation5 + $0x6c] sm:$0xf]
    %v2509 = vld [vmem:[#allocation3 + $0x70] sm:$0x1]
    %v2510 = vperm.slane %v2509, 0
    %v2515 = vunpack.c.l.b16 %v2505
    %v2516 = vunpack.c.l.b16 %v2506
    %v2517 = vunpack.c.l.b16 %v2507
    %v2518 = vunpack.c.l.b16 %v2508
    %v2519 = vpack.c.b16 %v2516, %v2515
    %v2520 = vpack.c.b16 %v2518, %v2517
    %v2524 = vsel %vm109, %v2504, 0
    %2526 = vmatpush.bf16.msra.mxu0 0
    %2527 = vmatpush.bf16.msra.mxu0 0
    %2528 = vmatpush.bf16.msra.mxu0 0
    %2529 = vmatpush.bf16.msra.mxu0 0
    %2530 = vmatpush.bf16.msra.mxu0 0
    %2531 = vmatpush.bf16.msra.mxu0 0
    %2532 = vmatpush.bf16.msra.mxu0 %v2520
    %2533 = vmatpush.bf16.msra.mxu0 %v2519
    %2534 = vmatmul.bf16.gmra.mxu0 %v2524
    %v2535 = vpop.f32.mrf.mxu0
    %v2536 = vadd.f32 %v2510, %v2535
    %v2537 = vpop.f32.mrf.mxu0
    %v2538 = vadd.f32 %v2510, %v2537
    %2539 = vdwg.mxu0
    %2540 = vst [vmem:[%s5] sm:$0xff] %v2536
    %2541 = vst [vmem:[%s5 + $0x8] sm:$0xff] %v2538
    // Predicated region
    $region30: #{forward.1} parent=1 // pred_check
      _
    $region31: #{forward.1} parent=1 // pred_check_branch
      %2543 = sbr.rel (0) target = $region33
    $region32: #{forward.1} parent=1 // pred_region
      _
    $region33: #{forward.1} parent=1 // pred_fallthru
      _
    // Predicated region
    $region34: #{forward.1} parent=1 // pred_check
      _
    $region35: #{forward.1} parent=1 // pred_check_branch
      %2545 = sbr.rel (0) target = $region37
    $region36: #{forward.1} parent=1 // pred_region
      _
    $region37: #{forward.1} parent=1 // pred_fallthru
      _
    %2546 = vsyncpa [#allocation4], 1
    %2547 = vsyncpa [#allocation6], 1

</llo_original>
